<compile_context>
chip_gen: v6e
topology: v6e:2x2x1
jax: 0.10.0
libtpu: 0.0.40
codegen_flags: <defaults>
</compile_context>

<pallas_src>
import jax
import jax.numpy as jnp
from jax.experimental import pallas as pl
from jax.experimental.pallas import tpu as pltpu

NUM_LAYERS = 2
SELU_ALPHA = 1.6732632423543772
SELU_SCALE = 1.0507009873554805


# ------------------------------------------------------------------
# Whole-network kernel factory.
# PyTorch GRU gate math (gate order [r, z, n]):
#   r = sigmoid(W_ir x + b_ir + W_hr h + b_hr)
#   z = sigmoid(W_iz x + b_iz + W_hz h + b_hz)
#   n = tanh  (W_in x + b_in + r * (W_hn h + b_hn))
#   h' = (1 - z) * n + z * h
# b_ir+b_hr, b_iz+b_hz, b_in are pre-folded into the hoisted input projection;
# b_hn stays inside the recurrence (it sits inside the r * (...) term).
# ------------------------------------------------------------------
def _make_rnn_kernel(T, B, H, num_layers):
    H2, H4, H6 = 2 * H, 4 * H, 6 * H

    def kernel(*refs):
        it = iter(refs)
        x_ref = next(it)                                     # (T*B, D0)  bf16, row = t*B + b
        h0_ref = next(it)                                    # (2L, B, H) f32
        layer_w = [(next(it), next(it), next(it), next(it))  # wih (D_l,6H) bf16, bi (1,6H) f32,
                   for _ in range(num_layers)]               # whh (2H,6H) bf16, bhn (1,2H) f32
        fc1_w_ref = next(it)                                 # (2H, H1) bf16
        fc1_b_ref = next(it)                                 # (1, H1)  f32
        fc2_w_ref = next(it)                                 # (H1, C)  bf16
        fc2_b_ref = next(it)                                 # (1, C)   f32
        logits_ref = next(it)                                # (B, C)   f32 out
        hn_ref = next(it)                                    # (2L, B, H) f32 out
        out_scr = next(it)                                   # (2, T, B, H) f32 VMEM scratch

        # Lane mask for the interleaved gate layout [r_f r_b z_f z_b n_f n_b]:
        # True on forward-direction columns. Hoisted once for the whole kernel.
        col = jax.lax.broadcasted_iota(jnp.int32, (B, H6), 1)
        fwd_mask = (col % H2) < H

        x_flat = x_ref[...]                                  # (T*B, D_l) bf16
        for l, (wih_ref, bi_ref, whh_ref, bhn_ref) in enumerate(layer_w):
            # -------- Hoisted input projection: ONE (T*B, D)@(D, 6H) matmul for
            # both directions x all 3 gates, biases pre-folded (f32 accumulate).
            gi = jnp.dot(x_flat, wih_ref[...],
                         preferred_element_type=jnp.float32) + bi_ref[...]

            # Pre-combine per-step gate inputs OFF the serial critical path:
            # recurrence step s needs fwd-gate columns of time s and bwd-gate
            # columns of time T-1-s. All slicing / selecting happens here.
            gi_steps = [
                jnp.where(fwd_mask,
                          gi[s * B:(s + 1) * B],
                          gi[(T - 1 - s) * B:(T - s) * B])
                for s in range(T)
            ]

            whh = whh_ref[...]                               # (2H, 6H) block-diag by direction
            # Hoist the (1,2H)->(B,2H) n-gate hidden-bias broadcast out of loop.
            bhn = jnp.broadcast_to(bhn_ref[...], (B, H2))

            # h_cat = [h_fwd | h_bwd]: one MXU operand for both directions.
            h_cat = jnp.concatenate([h0_ref[2 * l], h0_ref[2 * l + 1]], axis=-1)

            # -------- Serial recurrence: fwd walks t = s, bwd walks t = T-1-s.
            # TODO(synk): switch to lax.fori_loop + T-chunked gi streaming for
            # production-scale T (and split directions across v7x's 2 TCs).
            for s in range(T):
                gh = jnp.dot(h_cat.astype(jnp.bfloat16), whh,
                             preferred_element_type=jnp.float32)     # (B, 6H)
                gi_s = gi_steps[s]
                rz = jax.nn.sigmoid(gi_s[:, :H4] + gh[:, :H4])
                r = rz[:, :H2]                                       # [r_f | r_b]
                z = rz[:, H2:]                                       # [z_f | z_b]
                n = jnp.tanh(gi_s[:, H4:] + r * (gh[:, H4:] + bhn))  # [n_f | n_b]
                h_cat = (1.0 - z) * n + z * h_cat
                # Per-step outputs to VMEM scratch (bounds live ranges, no
                # Python-list concats): forward row s, backward row T-1-s.
                out_scr[0, s] = h_cat[:, :H]
                out_scr[1, T - 1 - s] = h_cat[:, H:]

            # Final hidden states, written exactly once per layer/direction.
            hn_ref[2 * l] = h_cat[:, :H]
            hn_ref[2 * l + 1] = h_cat[:, H:]

            if l + 1 < num_layers:
                # Next-layer input: [h_f(t) | h_b(t)] per time step, flattened
                # time-major. Single hoisted concat + leading-dim collapse.
                seq = jnp.concatenate([out_scr[0], out_scr[1]], axis=-1)
                x_flat = seq.reshape(T * B, H2).astype(jnp.bfloat16)

        # -------- Fused MLP head on out[:, -1, :] = [h_f(T-1) | h_b(T-1)]:
        #          fc1 -> SELU -> dropout(p=0, identity) -> fc2 -> ReLU
        feat = jnp.concatenate([out_scr[0, T - 1], out_scr[1, T - 1]], axis=-1)
        h1 = jnp.dot(feat.astype(jnp.bfloat16), fc1_w_ref[...],
                     preferred_element_type=jnp.float32) + fc1_b_ref[...]
        # exp only on the negative branch so the masked side can't hit inf.
        h1 = SELU_SCALE * jnp.where(
            h1 > 0, h1, SELU_ALPHA * (jnp.exp(jnp.minimum(h1, 0.0)) - 1.0))
        h2 = jnp.dot(h1.astype(jnp.bfloat16), fc2_w_ref[...],
                     preferred_element_type=jnp.float32) + fc2_b_ref[...]
        logits_ref[...] = jnp.maximum(h2, 0.0)

    return kernel


# ------------------------------------------------------------------
# Full forward pass: one pallas_call. Returns (output, hidden) like PyTorch:
#   output: (B, num_classes), hidden: (num_layers*2, B, H)
# ------------------------------------------------------------------
def rnn_forward(params, x_btd, hidden=None):
    B, T, D = x_btd.shape
    H = params["hidden_size"]
    L = params["num_layers"]
    C = params["fc2_w_t"].shape[-1]
    if hidden is None:
        hidden = jnp.zeros((2 * L, B, H), jnp.float32)

    # Time-major flatten in the wrapper (row index = t*B + b). bf16 operands
    # halve HBM/VMEM bytes and double MXU rate on v6e/v7x.
    x_flat = jnp.transpose(x_btd, (1, 0, 2)).reshape(T * B, D).astype(jnp.bfloat16)

    args = [x_flat, hidden]
    for l in range(L):
        args.extend(params["layers"][l])
    args.extend([params["fc1_w_t"], params["fc1_b"],
                 params["fc2_w_t"], params["fc2_b"]])

    logits, h_n = pl.pallas_call(
        _make_rnn_kernel(T, B, H, L),
        out_shape=(jax.ShapeDtypeStruct((B, C), jnp.float32),
                   jax.ShapeDtypeStruct((2 * L, B, H), jnp.float32)),
        scratch_shapes=[pltpu.VMEM((2, T, B, H), jnp.float32)],
        compiler_params=pltpu.CompilerParams(vmem_limit_bytes=32 * 1024 * 1024),
    )(*args)
    return logits, h_n


# ------------------------------------------------------------------
# Deterministic PyTorch-style uniform(-k, k) init, stored directly in the
# kernel's fused-slab layout:
#   wih:  (d_in, 6H) bf16, columns interleaved [r_f r_b z_f z_b n_f n_b]
#   bi:   (1, 6H)   f32,  b_ih (+ b_hh folded for r, z columns)
#   whh:  (2H, 6H)  bf16, block-structured: rows 0:H act on h_f, rows H:2H on h_b
#   bhn:  (1, 2H)   f32,  [b_hn_f | b_hn_b] (stays inside the r*(...) term)
# ------------------------------------------------------------------
def init_params(key, input_size, hidden_size, hidden1, num_classes,
                num_layers=NUM_LAYERS):
    H = hidden_size
    params = {"hidden_size": H, "num_layers": num_layers, "layers": []}
    keys = jax.random.split(key, num_layers * 2 * 4 + 4)
    idx = 0
    k = 1.0 / float(H) ** 0.5
    for l in range(num_layers):
        d_in = input_size if l == 0 else 2 * H
        wih_cols = [None] * 6
        whh_cols = [None] * 6
        bi_cols = [None] * 6
        bhn_cols = [None] * 2
        for d in range(2):                                  # 0 = forward, 1 = backward
            wih = jax.random.uniform(keys[idx], (3 * H, d_in), minval=-k, maxval=k); idx += 1
            whh = jax.random.uniform(keys[idx], (3 * H, H), minval=-k, maxval=k); idx += 1
            bih = jax.random.uniform(keys[idx], (3 * H,), minval=-k, maxval=k); idx += 1
            bhh = jax.random.uniform(keys[idx], (3 * H,), minval=-k, maxval=k); idx += 1
            for g in range(3):                              # PyTorch gate order [r, z, n]
                sl = slice(g * H, (g + 1) * H)
                slot = 2 * g + d                            # interleaved [f, b] per gate
                wih_cols[slot] = wih[sl].T                  # (d_in, H)
                blk = jnp.zeros((2 * H, H), jnp.float32)    # block-diag by direction
                whh_cols[slot] = blk.at[d * H:(d + 1) * H].set(whh[sl].T)
                fold = bhh[sl] if g < 2 else jnp.zeros((H,), jnp.float32)
                bi_cols[slot] = bih[sl] + fold              # b_ih (+ b_hh for r, z)
            bhn_cols[d] = bhh[2 * H:3 * H]                  # b_hn kept separate
        params["layers"].append((
            jnp.concatenate(wih_cols, axis=-1).astype(jnp.bfloat16),            # (d_in, 6H)
            jnp.concatenate(bi_cols, axis=-1).reshape(1, 6 * H).astype(jnp.float32),
            jnp.concatenate(whh_cols, axis=-1).astype(jnp.bfloat16),            # (2H, 6H)
            jnp.concatenate(bhn_cols, axis=-1).reshape(1, 2 * H).astype(jnp.float32),
        ))
    k1 = 1.0 / float(2 * H) ** 0.5
    params["fc1_w_t"] = jax.random.uniform(
        keys[idx], (hidden1, 2 * H), minval=-k1, maxval=k1).T.astype(jnp.bfloat16); idx += 1
    params["fc1_b"] = jax.random.uniform(
        keys[idx], (hidden1,), minval=-k1, maxval=k1).reshape(1, hidden1); idx += 1
    k2 = 1.0 / float(hidden1) ** 0.5
    params["fc2_w_t"] = jax.random.uniform(
        keys[idx], (num_classes, hidden1), minval=-k2, maxval=k2).T.astype(jnp.bfloat16); idx += 1
    params["fc2_b"] = jax.random.uniform(
        keys[idx], (num_classes,), minval=-k2, maxval=k2).reshape(1, num_classes); idx += 1
    return params


if __name__ == "__main__":
    B, T = 2, 8
    input_size, hidden_size, hidden1, num_classes = 16, 32, 16, 24

    key = jax.random.PRNGKey(0)
    pkey, xkey = jax.random.split(key)
    params = init_params(pkey, input_size, hidden_size, hidden1, num_classes)
    x = jax.random.normal(xkey, (B, T, input_size), dtype=jnp.float32)

    out, h_n = rnn_forward(params, x)
    jax.block_until_ready(out)
    jax.block_until_ready(h_n)

    assert out.shape == (B, num_classes)
    assert h_n.shape == (NUM_LAYERS * 2, B, hidden_size)
    assert bool(jnp.all(out >= 0.0))   # ReLU output
    assert bool(jnp.all(jnp.isfinite(out))) and bool(jnp.all(jnp.isfinite(h_n)))
    print("KERNEL_OK")
</pallas_src>

<mosaic_0001>
module attributes {stable_mosaic.version = 11 : i64} {
  func.func @kernel(%arg0: memref<16x16xbf16, #tpu.memory_space<vmem>>, %arg1: memref<4x2x32xf32, #tpu.memory_space<vmem>>, %arg2: memref<16x192xbf16, #tpu.memory_space<vmem>>, %arg3: memref<1x192xf32, #tpu.memory_space<vmem>>, %arg4: memref<64x192xbf16, #tpu.memory_space<vmem>>, %arg5: memref<1x64xf32, #tpu.memory_space<vmem>>, %arg6: memref<64x192xbf16, #tpu.memory_space<vmem>>, %arg7: memref<1x192xf32, #tpu.memory_space<vmem>>, %arg8: memref<64x192xbf16, #tpu.memory_space<vmem>>, %arg9: memref<1x64xf32, #tpu.memory_space<vmem>>, %arg10: memref<64x16xbf16, #tpu.memory_space<vmem>>, %arg11: memref<1x16xf32, #tpu.memory_space<vmem>>, %arg12: memref<16x24xbf16, #tpu.memory_space<vmem>>, %arg13: memref<1x24xf32, #tpu.memory_space<vmem>>, %arg14: memref<2x24xf32, #tpu.memory_space<vmem>>, %arg15: memref<4x2x32xf32, #tpu.memory_space<vmem>>, %arg16: memref<2x8x2x32xf32, #tpu.memory_space<vmem>>) attributes {dimension_semantics = [], scalar_prefetch = 0 : i64, scratch_operands = 1 : i64, tpu.core_type = #tpu.core_type<tc>} {
    %0 = tpu.iota {dimensions = array<i32: 1>} : vector<2x192xi32>
    %c64_i32 = arith.constant 64 : i32
    %c0_i32 = arith.constant 0 : i32
    %1 = arith.cmpi eq, %c64_i32, %c0_i32 : i32
    %c1_i32 = arith.constant 1 : i32
    %2 = arith.select %1, %c1_i32, %c64_i32 : i32
    %3 = vector.broadcast %2 : i32 to vector<2x192xi32>
    %4 = arith.remsi %0, %3 : vector<2x192xi32>
    %c0_i32_0 = arith.constant 0 : i32
    %5 = vector.broadcast %c0_i32_0 : i32 to vector<2x192xi32>
    %6 = arith.cmpi ne, %4, %5 : vector<2x192xi32>
    %c0_i32_1 = arith.constant 0 : i32
    %7 = vector.broadcast %c0_i32_1 : i32 to vector<2x192xi32>
    %8 = arith.cmpi slt, %4, %7 : vector<2x192xi32>
    %c0_i32_2 = arith.constant 0 : i32
    %9 = arith.cmpi slt, %2, %c0_i32_2 : i32
    %10 = vector.broadcast %9 : i1 to vector<2x192xi1>
    %11 = vector.broadcast %10 : vector<2x192xi1> to vector<2x192xi1>
    %12 = arith.xori %8, %11 : vector<2x192xi1>
    %13 = arith.andi %12, %6 : vector<2x192xi1>
    %14 = vector.broadcast %2 : i32 to vector<2x192xi32>
    %15 = arith.addi %4, %14 : vector<2x192xi32>
    %16 = arith.select %13, %15, %4 : vector<2x192xi1>, vector<2x192xi32>
    %c32_i32 = arith.constant 32 : i32
    %17 = vector.broadcast %c32_i32 : i32 to vector<2x192xi32>
    %18 = arith.cmpi slt, %16, %17 : vector<2x192xi32>
    %c0 = arith.constant 0 : index
    %c0_3 = arith.constant 0 : index
    %19 = vector.load %arg0[%c0, %c0_3] : memref<16x16xbf16, #tpu.memory_space<vmem>>, vector<16x16xbf16>
    %c0_4 = arith.constant 0 : index
    %c0_5 = arith.constant 0 : index
    %20 = vector.load %arg2[%c0_4, %c0_5] : memref<16x192xbf16, #tpu.memory_space<vmem>>, vector<16x192xbf16>
    %cst = arith.constant dense<0.000000e+00> : vector<16x192xf32>
    %21 = tpu.matmul %19, %20, %cst {dimension_numbers = #tpu.dot_dimension_numbers<[1], [0], [0], [1], [0, 0, 1, 1], [], []>} : vector<16x16xbf16>, vector<16x192xbf16>, vector<16x192xf32> -> vector<16x192xf32>
    %c0_6 = arith.constant 0 : index
    %c0_7 = arith.constant 0 : index
    %22 = vector.load %arg3[%c0_6, %c0_7] : memref<1x192xf32, #tpu.memory_space<vmem>>, vector<1x192xf32>
    %23 = vector.broadcast %22 : vector<1x192xf32> to vector<16x192xf32>
    %24 = arith.addf %21, %23 : vector<16x192xf32>
    %25 = vector.extract_strided_slice %24 {offsets = [0, 0], sizes = [2, 192], strides = [1, 1]} : vector<16x192xf32> to vector<2x192xf32>
    %26 = vector.extract_strided_slice %24 {offsets = [14, 0], sizes = [2, 192], strides = [1, 1]} : vector<16x192xf32> to vector<2x192xf32>
    %27 = arith.select %18, %25, %26 : vector<2x192xi1>, vector<2x192xf32>
    %28 = vector.extract_strided_slice %24 {offsets = [2, 0], sizes = [2, 192], strides = [1, 1]} : vector<16x192xf32> to vector<2x192xf32>
    %29 = vector.extract_strided_slice %24 {offsets = [12, 0], sizes = [2, 192], strides = [1, 1]} : vector<16x192xf32> to vector<2x192xf32>
    %30 = arith.select %18, %28, %29 : vector<2x192xi1>, vector<2x192xf32>
    %31 = vector.extract_strided_slice %24 {offsets = [4, 0], sizes = [2, 192], strides = [1, 1]} : vector<16x192xf32> to vector<2x192xf32>
    %32 = vector.extract_strided_slice %24 {offsets = [10, 0], sizes = [2, 192], strides = [1, 1]} : vector<16x192xf32> to vector<2x192xf32>
    %33 = arith.select %18, %31, %32 : vector<2x192xi1>, vector<2x192xf32>
    %34 = vector.extract_strided_slice %24 {offsets = [6, 0], sizes = [2, 192], strides = [1, 1]} : vector<16x192xf32> to vector<2x192xf32>
    %35 = vector.extract_strided_slice %24 {offsets = [8, 0], sizes = [2, 192], strides = [1, 1]} : vector<16x192xf32> to vector<2x192xf32>
    %36 = arith.select %18, %34, %35 : vector<2x192xi1>, vector<2x192xf32>
    %37 = vector.extract_strided_slice %24 {offsets = [8, 0], sizes = [2, 192], strides = [1, 1]} : vector<16x192xf32> to vector<2x192xf32>
    %38 = vector.extract_strided_slice %24 {offsets = [6, 0], sizes = [2, 192], strides = [1, 1]} : vector<16x192xf32> to vector<2x192xf32>
    %39 = arith.select %18, %37, %38 : vector<2x192xi1>, vector<2x192xf32>
    %40 = vector.extract_strided_slice %24 {offsets = [10, 0], sizes = [2, 192], strides = [1, 1]} : vector<16x192xf32> to vector<2x192xf32>
    %41 = vector.extract_strided_slice %24 {offsets = [4, 0], sizes = [2, 192], strides = [1, 1]} : vector<16x192xf32> to vector<2x192xf32>
    %42 = arith.select %18, %40, %41 : vector<2x192xi1>, vector<2x192xf32>
    %43 = vector.extract_strided_slice %24 {offsets = [12, 0], sizes = [2, 192], strides = [1, 1]} : vector<16x192xf32> to vector<2x192xf32>
    %44 = vector.extract_strided_slice %24 {offsets = [2, 0], sizes = [2, 192], strides = [1, 1]} : vector<16x192xf32> to vector<2x192xf32>
    %45 = arith.select %18, %43, %44 : vector<2x192xi1>, vector<2x192xf32>
    %46 = vector.extract_strided_slice %24 {offsets = [14, 0], sizes = [2, 192], strides = [1, 1]} : vector<16x192xf32> to vector<2x192xf32>
    %47 = vector.extract_strided_slice %24 {offsets = [0, 0], sizes = [2, 192], strides = [1, 1]} : vector<16x192xf32> to vector<2x192xf32>
    %48 = arith.select %18, %46, %47 : vector<2x192xi1>, vector<2x192xf32>
    %c0_8 = arith.constant 0 : index
    %c0_9 = arith.constant 0 : index
    %49 = vector.load %arg4[%c0_8, %c0_9] : memref<64x192xbf16, #tpu.memory_space<vmem>>, vector<64x192xbf16>
    %c0_10 = arith.constant 0 : index
    %c0_11 = arith.constant 0 : index
    %50 = vector.load %arg5[%c0_10, %c0_11] : memref<1x64xf32, #tpu.memory_space<vmem>>, vector<1x64xf32>
    %51 = vector.shape_cast %50 : vector<1x64xf32> to vector<1x64xf32>
    %52 = vector.broadcast %51 : vector<1x64xf32> to vector<2x64xf32>
    %c0_12 = arith.constant 0 : index
    %c0_13 = arith.constant 0 : index
    %c0_14 = arith.constant 0 : index
    %53 = vector.load %arg1[%c0_12, %c0_13, %c0_14] : memref<4x2x32xf32, #tpu.memory_space<vmem>>, vector<1x2x32xf32>
    %54 = vector.shape_cast %53 : vector<1x2x32xf32> to vector<2x32xf32>
    %c1 = arith.constant 1 : index
    %c0_15 = arith.constant 0 : index
    %c0_16 = arith.constant 0 : index
    %55 = vector.load %arg1[%c1, %c0_15, %c0_16] : memref<4x2x32xf32, #tpu.memory_space<vmem>>, vector<1x2x32xf32>
    %56 = vector.shape_cast %55 : vector<1x2x32xf32> to vector<2x32xf32>
    %57 = tpu.concatenate %54, %56 in 1 : vector<2x32xf32>, vector<2x32xf32> -> vector<2x64xf32>
    %58 = arith.truncf %57 : vector<2x64xf32> to vector<2x64xbf16>
    %cst_17 = arith.constant dense<0.000000e+00> : vector<2x192xf32>
    %59 = tpu.matmul %58, %49, %cst_17 {dimension_numbers = #tpu.dot_dimension_numbers<[1], [0], [0], [1], [0, 0, 1, 1], [], []>} : vector<2x64xbf16>, vector<64x192xbf16>, vector<2x192xf32> -> vector<2x192xf32>
    %60 = vector.extract_strided_slice %27 {offsets = [0, 0], sizes = [2, 128], strides = [1, 1]} : vector<2x192xf32> to vector<2x128xf32>
    %61 = vector.extract_strided_slice %59 {offsets = [0, 0], sizes = [2, 128], strides = [1, 1]} : vector<2x192xf32> to vector<2x128xf32>
    %62 = arith.addf %60, %61 : vector<2x128xf32>
    %63 = arith.negf %62 : vector<2x128xf32>
    %64 = math.exp %63 : vector<2x128xf32>
    %cst_18 = arith.constant 1.000000e+00 : f32
    %65 = vector.broadcast %cst_18 : f32 to vector<2x128xf32>
    %66 = arith.addf %65, %64 : vector<2x128xf32>
    %67 = arith.divf %65, %66 : vector<2x128xf32>
    %68 = vector.extract_strided_slice %67 {offsets = [0, 0], sizes = [2, 64], strides = [1, 1]} : vector<2x128xf32> to vector<2x64xf32>
    %69 = vector.extract_strided_slice %67 {offsets = [0, 64], sizes = [2, 64], strides = [1, 1]} : vector<2x128xf32> to vector<2x64xf32>
    %70 = vector.extract_strided_slice %27 {offsets = [0, 128], sizes = [2, 64], strides = [1, 1]} : vector<2x192xf32> to vector<2x64xf32>
    %71 = vector.extract_strided_slice %59 {offsets = [0, 128], sizes = [2, 64], strides = [1, 1]} : vector<2x192xf32> to vector<2x64xf32>
    %72 = arith.addf %71, %52 : vector<2x64xf32>
    %73 = arith.mulf %68, %72 : vector<2x64xf32>
    %74 = arith.addf %70, %73 : vector<2x64xf32>
    %75 = math.tanh %74 : vector<2x64xf32>
    %cst_19 = arith.constant 1.000000e+00 : f32
    %76 = vector.broadcast %cst_19 : f32 to vector<2x64xf32>
    %77 = arith.subf %76, %69 : vector<2x64xf32>
    %78 = arith.mulf %77, %75 : vector<2x64xf32>
    %79 = arith.mulf %69, %57 : vector<2x64xf32>
    %80 = arith.addf %78, %79 : vector<2x64xf32>
    %81 = vector.extract_strided_slice %80 {offsets = [0, 0], sizes = [2, 32], strides = [1, 1]} : vector<2x64xf32> to vector<2x32xf32>
    %c0_20 = arith.constant 0 : index
    %c0_21 = arith.constant 0 : index
    %c0_22 = arith.constant 0 : index
    %c0_23 = arith.constant 0 : index
    %82 = vector.load %arg16[%c0_20, %c0_21, %c0_22, %c0_23] : memref<2x8x2x32xf32, #tpu.memory_space<vmem>>, vector<1x1x2x32xf32>
    %83 = vector.shape_cast %82 : vector<1x1x2x32xf32> to vector<2x32xf32>
    %84 = vector.shape_cast %81 : vector<2x32xf32> to vector<1x1x2x32xf32>
    tpu.vector_store %arg16[%c0_20, %c0_21, %c0_22, %c0_23], %84 {strides = array<i32>} : memref<2x8x2x32xf32, #tpu.memory_space<vmem>>, vector<1x1x2x32xf32>,
    %85 = vector.extract_strided_slice %80 {offsets = [0, 32], sizes = [2, 32], strides = [1, 1]} : vector<2x64xf32> to vector<2x32xf32>
    %c1_24 = arith.constant 1 : index
    %c7 = arith.constant 7 : index
    %c0_25 = arith.constant 0 : index
    %c0_26 = arith.constant 0 : index
    %86 = vector.load %arg16[%c1_24, %c7, %c0_25, %c0_26] : memref<2x8x2x32xf32, #tpu.memory_space<vmem>>, vector<1x1x2x32xf32>
    %87 = vector.shape_cast %86 : vector<1x1x2x32xf32> to vector<2x32xf32>
    %88 = vector.shape_cast %85 : vector<2x32xf32> to vector<1x1x2x32xf32>
    tpu.vector_store %arg16[%c1_24, %c7, %c0_25, %c0_26], %88 {strides = array<i32>} : memref<2x8x2x32xf32, #tpu.memory_space<vmem>>, vector<1x1x2x32xf32>,
    %89 = arith.truncf %80 : vector<2x64xf32> to vector<2x64xbf16>
    %cst_27 = arith.constant dense<0.000000e+00> : vector<2x192xf32>
    %90 = tpu.matmul %89, %49, %cst_27 {dimension_numbers = #tpu.dot_dimension_numbers<[1], [0], [0], [1], [0, 0, 1, 1], [], []>} : vector<2x64xbf16>, vector<64x192xbf16>, vector<2x192xf32> -> vector<2x192xf32>
    %91 = vector.extract_strided_slice %30 {offsets = [0, 0], sizes = [2, 128], strides = [1, 1]} : vector<2x192xf32> to vector<2x128xf32>
    %92 = vector.extract_strided_slice %90 {offsets = [0, 0], sizes = [2, 128], strides = [1, 1]} : vector<2x192xf32> to vector<2x128xf32>
    %93 = arith.addf %91, %92 : vector<2x128xf32>
    %94 = arith.negf %93 : vector<2x128xf32>
    %95 = math.exp %94 : vector<2x128xf32>
    %cst_28 = arith.constant 1.000000e+00 : f32
    %96 = vector.broadcast %cst_28 : f32 to vector<2x128xf32>
    %97 = arith.addf %96, %95 : vector<2x128xf32>
    %98 = arith.divf %96, %97 : vector<2x128xf32>
    %99 = vector.extract_strided_slice %98 {offsets = [0, 0], sizes = [2, 64], strides = [1, 1]} : vector<2x128xf32> to vector<2x64xf32>
    %100 = vector.extract_strided_slice %98 {offsets = [0, 64], sizes = [2, 64], strides = [1, 1]} : vector<2x128xf32> to vector<2x64xf32>
    %101 = vector.extract_strided_slice %30 {offsets = [0, 128], sizes = [2, 64], strides = [1, 1]} : vector<2x192xf32> to vector<2x64xf32>
    %102 = vector.extract_strided_slice %90 {offsets = [0, 128], sizes = [2, 64], strides = [1, 1]} : vector<2x192xf32> to vector<2x64xf32>
    %103 = arith.addf %102, %52 : vector<2x64xf32>
    %104 = arith.mulf %99, %103 : vector<2x64xf32>
    %105 = arith.addf %101, %104 : vector<2x64xf32>
    %106 = math.tanh %105 : vector<2x64xf32>
    %cst_29 = arith.constant 1.000000e+00 : f32
    %107 = vector.broadcast %cst_29 : f32 to vector<2x64xf32>
    %108 = arith.subf %107, %100 : vector<2x64xf32>
    %109 = arith.mulf %108, %106 : vector<2x64xf32>
    %110 = arith.mulf %100, %80 : vector<2x64xf32>
    %111 = arith.addf %109, %110 : vector<2x64xf32>
    %112 = vector.extract_strided_slice %111 {offsets = [0, 0], sizes = [2, 32], strides = [1, 1]} : vector<2x64xf32> to vector<2x32xf32>
    %c0_30 = arith.constant 0 : index
    %c1_31 = arith.constant 1 : index
    %c0_32 = arith.constant 0 : index
    %c0_33 = arith.constant 0 : index
    %113 = vector.load %arg16[%c0_30, %c1_31, %c0_32, %c0_33] : memref<2x8x2x32xf32, #tpu.memory_space<vmem>>, vector<1x1x2x32xf32>
    %114 = vector.shape_cast %113 : vector<1x1x2x32xf32> to vector<2x32xf32>
    %115 = vector.shape_cast %112 : vector<2x32xf32> to vector<1x1x2x32xf32>
    tpu.vector_store %arg16[%c0_30, %c1_31, %c0_32, %c0_33], %115 {strides = array<i32>} : memref<2x8x2x32xf32, #tpu.memory_space<vmem>>, vector<1x1x2x32xf32>,
    %116 = vector.extract_strided_slice %111 {offsets = [0, 32], sizes = [2, 32], strides = [1, 1]} : vector<2x64xf32> to vector<2x32xf32>
    %c1_34 = arith.constant 1 : index
    %c6 = arith.constant 6 : index
    %c0_35 = arith.constant 0 : index
    %c0_36 = arith.constant 0 : index
    %117 = vector.load %arg16[%c1_34, %c6, %c0_35, %c0_36] : memref<2x8x2x32xf32, #tpu.memory_space<vmem>>, vector<1x1x2x32xf32>
    %118 = vector.shape_cast %117 : vector<1x1x2x32xf32> to vector<2x32xf32>
    %119 = vector.shape_cast %116 : vector<2x32xf32> to vector<1x1x2x32xf32>
    tpu.vector_store %arg16[%c1_34, %c6, %c0_35, %c0_36], %119 {strides = array<i32>} : memref<2x8x2x32xf32, #tpu.memory_space<vmem>>, vector<1x1x2x32xf32>,
    %120 = arith.truncf %111 : vector<2x64xf32> to vector<2x64xbf16>
    %cst_37 = arith.constant dense<0.000000e+00> : vector<2x192xf32>
    %121 = tpu.matmul %120, %49, %cst_37 {dimension_numbers = #tpu.dot_dimension_numbers<[1], [0], [0], [1], [0, 0, 1, 1], [], []>} : vector<2x64xbf16>, vector<64x192xbf16>, vector<2x192xf32> -> vector<2x192xf32>
    %122 = vector.extract_strided_slice %33 {offsets = [0, 0], sizes = [2, 128], strides = [1, 1]} : vector<2x192xf32> to vector<2x128xf32>
    %123 = vector.extract_strided_slice %121 {offsets = [0, 0], sizes = [2, 128], strides = [1, 1]} : vector<2x192xf32> to vector<2x128xf32>
    %124 = arith.addf %122, %123 : vector<2x128xf32>
    %125 = arith.negf %124 : vector<2x128xf32>
    %126 = math.exp %125 : vector<2x128xf32>
    %cst_38 = arith.constant 1.000000e+00 : f32
    %127 = vector.broadcast %cst_38 : f32 to vector<2x128xf32>
    %128 = arith.addf %127, %126 : vector<2x128xf32>
    %129 = arith.divf %127, %128 : vector<2x128xf32>
    %130 = vector.extract_strided_slice %129 {offsets = [0, 0], sizes = [2, 64], strides = [1, 1]} : vector<2x128xf32> to vector<2x64xf32>
    %131 = vector.extract_strided_slice %129 {offsets = [0, 64], sizes = [2, 64], strides = [1, 1]} : vector<2x128xf32> to vector<2x64xf32>
    %132 = vector.extract_strided_slice %33 {offsets = [0, 128], sizes = [2, 64], strides = [1, 1]} : vector<2x192xf32> to vector<2x64xf32>
    %133 = vector.extract_strided_slice %121 {offsets = [0, 128], sizes = [2, 64], strides = [1, 1]} : vector<2x192xf32> to vector<2x64xf32>
    %134 = arith.addf %133, %52 : vector<2x64xf32>
    %135 = arith.mulf %130, %134 : vector<2x64xf32>
    %136 = arith.addf %132, %135 : vector<2x64xf32>
    %137 = math.tanh %136 : vector<2x64xf32>
    %cst_39 = arith.constant 1.000000e+00 : f32
    %138 = vector.broadcast %cst_39 : f32 to vector<2x64xf32>
    %139 = arith.subf %138, %131 : vector<2x64xf32>
    %140 = arith.mulf %139, %137 : vector<2x64xf32>
    %141 = arith.mulf %131, %111 : vector<2x64xf32>
    %142 = arith.addf %140, %141 : vector<2x64xf32>
    %143 = vector.extract_strided_slice %142 {offsets = [0, 0], sizes = [2, 32], strides = [1, 1]} : vector<2x64xf32> to vector<2x32xf32>
    %c0_40 = arith.constant 0 : index
    %c2 = arith.constant 2 : index
    %c0_41 = arith.constant 0 : index
    %c0_42 = arith.constant 0 : index
    %144 = vector.load %arg16[%c0_40, %c2, %c0_41, %c0_42] : memref<2x8x2x32xf32, #tpu.memory_space<vmem>>, vector<1x1x2x32xf32>
    %145 = vector.shape_cast %144 : vector<1x1x2x32xf32> to vector<2x32xf32>
    %146 = vector.shape_cast %143 : vector<2x32xf32> to vector<1x1x2x32xf32>
    tpu.vector_store %arg16[%c0_40, %c2, %c0_41, %c0_42], %146 {strides = array<i32>} : memref<2x8x2x32xf32, #tpu.memory_space<vmem>>, vector<1x1x2x32xf32>,
    %147 = vector.extract_strided_slice %142 {offsets = [0, 32], sizes = [2, 32], strides = [1, 1]} : vector<2x64xf32> to vector<2x32xf32>
    %c1_43 = arith.constant 1 : index
    %c5 = arith.constant 5 : index
    %c0_44 = arith.constant 0 : index
    %c0_45 = arith.constant 0 : index
    %148 = vector.load %arg16[%c1_43, %c5, %c0_44, %c0_45] : memref<2x8x2x32xf32, #tpu.memory_space<vmem>>, vector<1x1x2x32xf32>
    %149 = vector.shape_cast %148 : vector<1x1x2x32xf32> to vector<2x32xf32>
    %150 = vector.shape_cast %147 : vector<2x32xf32> to vector<1x1x2x32xf32>
    tpu.vector_store %arg16[%c1_43, %c5, %c0_44, %c0_45], %150 {strides = array<i32>} : memref<2x8x2x32xf32, #tpu.memory_space<vmem>>, vector<1x1x2x32xf32>,
    %151 = arith.truncf %142 : vector<2x64xf32> to vector<2x64xbf16>
    %cst_46 = arith.constant dense<0.000000e+00> : vector<2x192xf32>
    %152 = tpu.matmul %151, %49, %cst_46 {dimension_numbers = #tpu.dot_dimension_numbers<[1], [0], [0], [1], [0, 0, 1, 1], [], []>} : vector<2x64xbf16>, vector<64x192xbf16>, vector<2x192xf32> -> vector<2x192xf32>
    %153 = vector.extract_strided_slice %36 {offsets = [0, 0], sizes = [2, 128], strides = [1, 1]} : vector<2x192xf32> to vector<2x128xf32>
    %154 = vector.extract_strided_slice %152 {offsets = [0, 0], sizes = [2, 128], strides = [1, 1]} : vector<2x192xf32> to vector<2x128xf32>
    %155 = arith.addf %153, %154 : vector<2x128xf32>
    %156 = arith.negf %155 : vector<2x128xf32>
    %157 = math.exp %156 : vector<2x128xf32>
    %cst_47 = arith.constant 1.000000e+00 : f32
    %158 = vector.broadcast %cst_47 : f32 to vector<2x128xf32>
    %159 = arith.addf %158, %157 : vector<2x128xf32>
    %160 = arith.divf %158, %159 : vector<2x128xf32>
    %161 = vector.extract_strided_slice %160 {offsets = [0, 0], sizes = [2, 64], strides = [1, 1]} : vector<2x128xf32> to vector<2x64xf32>
    %162 = vector.extract_strided_slice %160 {offsets = [0, 64], sizes = [2, 64], strides = [1, 1]} : vector<2x128xf32> to vector<2x64xf32>
    %163 = vector.extract_strided_slice %36 {offsets = [0, 128], sizes = [2, 64], strides = [1, 1]} : vector<2x192xf32> to vector<2x64xf32>
    %164 = vector.extract_strided_slice %152 {offsets = [0, 128], sizes = [2, 64], strides = [1, 1]} : vector<2x192xf32> to vector<2x64xf32>
    %165 = arith.addf %164, %52 : vector<2x64xf32>
    %166 = arith.mulf %161, %165 : vector<2x64xf32>
    %167 = arith.addf %163, %166 : vector<2x64xf32>
    %168 = math.tanh %167 : vector<2x64xf32>
    %cst_48 = arith.constant 1.000000e+00 : f32
    %169 = vector.broadcast %cst_48 : f32 to vector<2x64xf32>
    %170 = arith.subf %169, %162 : vector<2x64xf32>
    %171 = arith.mulf %170, %168 : vector<2x64xf32>
    %172 = arith.mulf %162, %142 : vector<2x64xf32>
    %173 = arith.addf %171, %172 : vector<2x64xf32>
    %174 = vector.extract_strided_slice %173 {offsets = [0, 0], sizes = [2, 32], strides = [1, 1]} : vector<2x64xf32> to vector<2x32xf32>
    %c0_49 = arith.constant 0 : index
    %c3 = arith.constant 3 : index
    %c0_50 = arith.constant 0 : index
    %c0_51 = arith.constant 0 : index
    %175 = vector.load %arg16[%c0_49, %c3, %c0_50, %c0_51] : memref<2x8x2x32xf32, #tpu.memory_space<vmem>>, vector<1x1x2x32xf32>
    %176 = vector.shape_cast %175 : vector<1x1x2x32xf32> to vector<2x32xf32>
    %177 = vector.shape_cast %174 : vector<2x32xf32> to vector<1x1x2x32xf32>
    tpu.vector_store %arg16[%c0_49, %c3, %c0_50, %c0_51], %177 {strides = array<i32>} : memref<2x8x2x32xf32, #tpu.memory_space<vmem>>, vector<1x1x2x32xf32>,
    %178 = vector.extract_strided_slice %173 {offsets = [0, 32], sizes = [2, 32], strides = [1, 1]} : vector<2x64xf32> to vector<2x32xf32>
    %c1_52 = arith.constant 1 : index
    %c4 = arith.constant 4 : index
    %c0_53 = arith.constant 0 : index
    %c0_54 = arith.constant 0 : index
    %179 = vector.load %arg16[%c1_52, %c4, %c0_53, %c0_54] : memref<2x8x2x32xf32, #tpu.memory_space<vmem>>, vector<1x1x2x32xf32>
    %180 = vector.shape_cast %179 : vector<1x1x2x32xf32> to vector<2x32xf32>
    %181 = vector.shape_cast %178 : vector<2x32xf32> to vector<1x1x2x32xf32>
    tpu.vector_store %arg16[%c1_52, %c4, %c0_53, %c0_54], %181 {strides = array<i32>} : memref<2x8x2x32xf32, #tpu.memory_space<vmem>>, vector<1x1x2x32xf32>,
    %182 = arith.truncf %173 : vector<2x64xf32> to vector<2x64xbf16>
    %cst_55 = arith.constant dense<0.000000e+00> : vector<2x192xf32>
    %183 = tpu.matmul %182, %49, %cst_55 {dimension_numbers = #tpu.dot_dimension_numbers<[1], [0], [0], [1], [0, 0, 1, 1], [], []>} : vector<2x64xbf16>, vector<64x192xbf16>, vector<2x192xf32> -> vector<2x192xf32>
    %184 = vector.extract_strided_slice %39 {offsets = [0, 0], sizes = [2, 128], strides = [1, 1]} : vector<2x192xf32> to vector<2x128xf32>
    %185 = vector.extract_strided_slice %183 {offsets = [0, 0], sizes = [2, 128], strides = [1, 1]} : vector<2x192xf32> to vector<2x128xf32>
    %186 = arith.addf %184, %185 : vector<2x128xf32>
    %187 = arith.negf %186 : vector<2x128xf32>
    %188 = math.exp %187 : vector<2x128xf32>
    %cst_56 = arith.constant 1.000000e+00 : f32
    %189 = vector.broadcast %cst_56 : f32 to vector<2x128xf32>
    %190 = arith.addf %189, %188 : vector<2x128xf32>
    %191 = arith.divf %189, %190 : vector<2x128xf32>
    %192 = vector.extract_strided_slice %191 {offsets = [0, 0], sizes = [2, 64], strides = [1, 1]} : vector<2x128xf32> to vector<2x64xf32>
    %193 = vector.extract_strided_slice %191 {offsets = [0, 64], sizes = [2, 64], strides = [1, 1]} : vector<2x128xf32> to vector<2x64xf32>
    %194 = vector.extract_strided_slice %39 {offsets = [0, 128], sizes = [2, 64], strides = [1, 1]} : vector<2x192xf32> to vector<2x64xf32>
    %195 = vector.extract_strided_slice %183 {offsets = [0, 128], sizes = [2, 64], strides = [1, 1]} : vector<2x192xf32> to vector<2x64xf32>
    %196 = arith.addf %195, %52 : vector<2x64xf32>
    %197 = arith.mulf %192, %196 : vector<2x64xf32>
    %198 = arith.addf %194, %197 : vector<2x64xf32>
    %199 = math.tanh %198 : vector<2x64xf32>
    %cst_57 = arith.constant 1.000000e+00 : f32
    %200 = vector.broadcast %cst_57 : f32 to vector<2x64xf32>
    %201 = arith.subf %200, %193 : vector<2x64xf32>
    %202 = arith.mulf %201, %199 : vector<2x64xf32>
    %203 = arith.mulf %193, %173 : vector<2x64xf32>
    %204 = arith.addf %202, %203 : vector<2x64xf32>
    %205 = vector.extract_strided_slice %204 {offsets = [0, 0], sizes = [2, 32], strides = [1, 1]} : vector<2x64xf32> to vector<2x32xf32>
    %c0_58 = arith.constant 0 : index
    %c4_59 = arith.constant 4 : index
    %c0_60 = arith.constant 0 : index
    %c0_61 = arith.constant 0 : index
    %206 = vector.load %arg16[%c0_58, %c4_59, %c0_60, %c0_61] : memref<2x8x2x32xf32, #tpu.memory_space<vmem>>, vector<1x1x2x32xf32>
    %207 = vector.shape_cast %206 : vector<1x1x2x32xf32> to vector<2x32xf32>
    %208 = vector.shape_cast %205 : vector<2x32xf32> to vector<1x1x2x32xf32>
    tpu.vector_store %arg16[%c0_58, %c4_59, %c0_60, %c0_61], %208 {strides = array<i32>} : memref<2x8x2x32xf32, #tpu.memory_space<vmem>>, vector<1x1x2x32xf32>,
    %209 = vector.extract_strided_slice %204 {offsets = [0, 32], sizes = [2, 32], strides = [1, 1]} : vector<2x64xf32> to vector<2x32xf32>
    %c1_62 = arith.constant 1 : index
    %c3_63 = arith.constant 3 : index
    %c0_64 = arith.constant 0 : index
    %c0_65 = arith.constant 0 : index
    %210 = vector.load %arg16[%c1_62, %c3_63, %c0_64, %c0_65] : memref<2x8x2x32xf32, #tpu.memory_space<vmem>>, vector<1x1x2x32xf32>
    %211 = vector.shape_cast %210 : vector<1x1x2x32xf32> to vector<2x32xf32>
    %212 = vector.shape_cast %209 : vector<2x32xf32> to vector<1x1x2x32xf32>
    tpu.vector_store %arg16[%c1_62, %c3_63, %c0_64, %c0_65], %212 {strides = array<i32>} : memref<2x8x2x32xf32, #tpu.memory_space<vmem>>, vector<1x1x2x32xf32>,
    %213 = arith.truncf %204 : vector<2x64xf32> to vector<2x64xbf16>
    %cst_66 = arith.constant dense<0.000000e+00> : vector<2x192xf32>
    %214 = tpu.matmul %213, %49, %cst_66 {dimension_numbers = #tpu.dot_dimension_numbers<[1], [0], [0], [1], [0, 0, 1, 1], [], []>} : vector<2x64xbf16>, vector<64x192xbf16>, vector<2x192xf32> -> vector<2x192xf32>
    %215 = vector.extract_strided_slice %42 {offsets = [0, 0], sizes = [2, 128], strides = [1, 1]} : vector<2x192xf32> to vector<2x128xf32>
    %216 = vector.extract_strided_slice %214 {offsets = [0, 0], sizes = [2, 128], strides = [1, 1]} : vector<2x192xf32> to vector<2x128xf32>
    %217 = arith.addf %215, %216 : vector<2x128xf32>
    %218 = arith.negf %217 : vector<2x128xf32>
    %219 = math.exp %218 : vector<2x128xf32>
    %cst_67 = arith.constant 1.000000e+00 : f32
    %220 = vector.broadcast %cst_67 : f32 to vector<2x128xf32>
    %221 = arith.addf %220, %219 : vector<2x128xf32>
    %222 = arith.divf %220, %221 : vector<2x128xf32>
    %223 = vector.extract_strided_slice %222 {offsets = [0, 0], sizes = [2, 64], strides = [1, 1]} : vector<2x128xf32> to vector<2x64xf32>
    %224 = vector.extract_strided_slice %222 {offsets = [0, 64], sizes = [2, 64], strides = [1, 1]} : vector<2x128xf32> to vector<2x64xf32>
    %225 = vector.extract_strided_slice %42 {offsets = [0, 128], sizes = [2, 64], strides = [1, 1]} : vector<2x192xf32> to vector<2x64xf32>
    %226 = vector.extract_strided_slice %214 {offsets = [0, 128], sizes = [2, 64], strides = [1, 1]} : vector<2x192xf32> to vector<2x64xf32>
    %227 = arith.addf %226, %52 : vector<2x64xf32>
    %228 = arith.mulf %223, %227 : vector<2x64xf32>
    %229 = arith.addf %225, %228 : vector<2x64xf32>
    %230 = math.tanh %229 : vector<2x64xf32>
    %cst_68 = arith.constant 1.000000e+00 : f32
    %231 = vector.broadcast %cst_68 : f32 to vector<2x64xf32>
    %232 = arith.subf %231, %224 : vector<2x64xf32>
    %233 = arith.mulf %232, %230 : vector<2x64xf32>
    %234 = arith.mulf %224, %204 : vector<2x64xf32>
    %235 = arith.addf %233, %234 : vector<2x64xf32>
    %236 = vector.extract_strided_slice %235 {offsets = [0, 0], sizes = [2, 32], strides = [1, 1]} : vector<2x64xf32> to vector<2x32xf32>
    %c0_69 = arith.constant 0 : index
    %c5_70 = arith.constant 5 : index
    %c0_71 = arith.constant 0 : index
    %c0_72 = arith.constant 0 : index
    %237 = vector.load %arg16[%c0_69, %c5_70, %c0_71, %c0_72] : memref<2x8x2x32xf32, #tpu.memory_space<vmem>>, vector<1x1x2x32xf32>
    %238 = vector.shape_cast %237 : vector<1x1x2x32xf32> to vector<2x32xf32>
    %239 = vector.shape_cast %236 : vector<2x32xf32> to vector<1x1x2x32xf32>
    tpu.vector_store %arg16[%c0_69, %c5_70, %c0_71, %c0_72], %239 {strides = array<i32>} : memref<2x8x2x32xf32, #tpu.memory_space<vmem>>, vector<1x1x2x32xf32>,
    %240 = vector.extract_strided_slice %235 {offsets = [0, 32], sizes = [2, 32], strides = [1, 1]} : vector<2x64xf32> to vector<2x32xf32>
    %c1_73 = arith.constant 1 : index
    %c2_74 = arith.constant 2 : index
    %c0_75 = arith.constant 0 : index
    %c0_76 = arith.constant 0 : index
    %241 = vector.load %arg16[%c1_73, %c2_74, %c0_75, %c0_76] : memref<2x8x2x32xf32, #tpu.memory_space<vmem>>, vector<1x1x2x32xf32>
    %242 = vector.shape_cast %241 : vector<1x1x2x32xf32> to vector<2x32xf32>
    %243 = vector.shape_cast %240 : vector<2x32xf32> to vector<1x1x2x32xf32>
    tpu.vector_store %arg16[%c1_73, %c2_74, %c0_75, %c0_76], %243 {strides = array<i32>} : memref<2x8x2x32xf32, #tpu.memory_space<vmem>>, vector<1x1x2x32xf32>,
    %244 = arith.truncf %235 : vector<2x64xf32> to vector<2x64xbf16>
    %cst_77 = arith.constant dense<0.000000e+00> : vector<2x192xf32>
    %245 = tpu.matmul %244, %49, %cst_77 {dimension_numbers = #tpu.dot_dimension_numbers<[1], [0], [0], [1], [0, 0, 1, 1], [], []>} : vector<2x64xbf16>, vector<64x192xbf16>, vector<2x192xf32> -> vector<2x192xf32>
    %246 = vector.extract_strided_slice %45 {offsets = [0, 0], sizes = [2, 128], strides = [1, 1]} : vector<2x192xf32> to vector<2x128xf32>
    %247 = vector.extract_strided_slice %245 {offsets = [0, 0], sizes = [2, 128], strides = [1, 1]} : vector<2x192xf32> to vector<2x128xf32>
    %248 = arith.addf %246, %247 : vector<2x128xf32>
    %249 = arith.negf %248 : vector<2x128xf32>
    %250 = math.exp %249 : vector<2x128xf32>
    %cst_78 = arith.constant 1.000000e+00 : f32
    %251 = vector.broadcast %cst_78 : f32 to vector<2x128xf32>
    %252 = arith.addf %251, %250 : vector<2x128xf32>
    %253 = arith.divf %251, %252 : vector<2x128xf32>
    %254 = vector.extract_strided_slice %253 {offsets = [0, 0], sizes = [2, 64], strides = [1, 1]} : vector<2x128xf32> to vector<2x64xf32>
    %255 = vector.extract_strided_slice %253 {offsets = [0, 64], sizes = [2, 64], strides = [1, 1]} : vector<2x128xf32> to vector<2x64xf32>
    %256 = vector.extract_strided_slice %45 {offsets = [0, 128], sizes = [2, 64], strides = [1, 1]} : vector<2x192xf32> to vector<2x64xf32>
    %257 = vector.extract_strided_slice %245 {offsets = [0, 128], sizes = [2, 64], strides = [1, 1]} : vector<2x192xf32> to vector<2x64xf32>
    %258 = arith.addf %257, %52 : vector<2x64xf32>
    %259 = arith.mulf %254, %258 : vector<2x64xf32>
    %260 = arith.addf %256, %259 : vector<2x64xf32>
    %261 = math.tanh %260 : vector<2x64xf32>
    %cst_79 = arith.constant 1.000000e+00 : f32
    %262 = vector.broadcast %cst_79 : f32 to vector<2x64xf32>
    %263 = arith.subf %262, %255 : vector<2x64xf32>
    %264 = arith.mulf %263, %261 : vector<2x64xf32>
    %265 = arith.mulf %255, %235 : vector<2x64xf32>
    %266 = arith.addf %264, %265 : vector<2x64xf32>
    %267 = vector.extract_strided_slice %266 {offsets = [0, 0], sizes = [2, 32], strides = [1, 1]} : vector<2x64xf32> to vector<2x32xf32>
    %c0_80 = arith.constant 0 : index
    %c6_81 = arith.constant 6 : index
    %c0_82 = arith.constant 0 : index
    %c0_83 = arith.constant 0 : index
    %268 = vector.load %arg16[%c0_80, %c6_81, %c0_82, %c0_83] : memref<2x8x2x32xf32, #tpu.memory_space<vmem>>, vector<1x1x2x32xf32>
    %269 = vector.shape_cast %268 : vector<1x1x2x32xf32> to vector<2x32xf32>
    %270 = vector.shape_cast %267 : vector<2x32xf32> to vector<1x1x2x32xf32>
    tpu.vector_store %arg16[%c0_80, %c6_81, %c0_82, %c0_83], %270 {strides = array<i32>} : memref<2x8x2x32xf32, #tpu.memory_space<vmem>>, vector<1x1x2x32xf32>,
    %271 = vector.extract_strided_slice %266 {offsets = [0, 32], sizes = [2, 32], strides = [1, 1]} : vector<2x64xf32> to vector<2x32xf32>
    %c1_84 = arith.constant 1 : index
    %c1_85 = arith.constant 1 : index
    %c0_86 = arith.constant 0 : index
    %c0_87 = arith.constant 0 : index
    %272 = vector.load %arg16[%c1_84, %c1_85, %c0_86, %c0_87] : memref<2x8x2x32xf32, #tpu.memory_space<vmem>>, vector<1x1x2x32xf32>
    %273 = vector.shape_cast %272 : vector<1x1x2x32xf32> to vector<2x32xf32>
    %274 = vector.shape_cast %271 : vector<2x32xf32> to vector<1x1x2x32xf32>
    tpu.vector_store %arg16[%c1_84, %c1_85, %c0_86, %c0_87], %274 {strides = array<i32>} : memref<2x8x2x32xf32, #tpu.memory_space<vmem>>, vector<1x1x2x32xf32>,
    %275 = arith.truncf %266 : vector<2x64xf32> to vector<2x64xbf16>
    %cst_88 = arith.constant dense<0.000000e+00> : vector<2x192xf32>
    %276 = tpu.matmul %275, %49, %cst_88 {dimension_numbers = #tpu.dot_dimension_numbers<[1], [0], [0], [1], [0, 0, 1, 1], [], []>} : vector<2x64xbf16>, vector<64x192xbf16>, vector<2x192xf32> -> vector<2x192xf32>
    %277 = vector.extract_strided_slice %48 {offsets = [0, 0], sizes = [2, 128], strides = [1, 1]} : vector<2x192xf32> to vector<2x128xf32>
    %278 = vector.extract_strided_slice %276 {offsets = [0, 0], sizes = [2, 128], strides = [1, 1]} : vector<2x192xf32> to vector<2x128xf32>
    %279 = arith.addf %277, %278 : vector<2x128xf32>
    %280 = arith.negf %279 : vector<2x128xf32>
    %281 = math.exp %280 : vector<2x128xf32>
    %cst_89 = arith.constant 1.000000e+00 : f32
    %282 = vector.broadcast %cst_89 : f32 to vector<2x128xf32>
    %283 = arith.addf %282, %281 : vector<2x128xf32>
    %284 = arith.divf %282, %283 : vector<2x128xf32>
    %285 = vector.extract_strided_slice %284 {offsets = [0, 0], sizes = [2, 64], strides = [1, 1]} : vector<2x128xf32> to vector<2x64xf32>
    %286 = vector.extract_strided_slice %284 {offsets = [0, 64], sizes = [2, 64], strides = [1, 1]} : vector<2x128xf32> to vector<2x64xf32>
    %287 = vector.extract_strided_slice %48 {offsets = [0, 128], sizes = [2, 64], strides = [1, 1]} : vector<2x192xf32> to vector<2x64xf32>
    %288 = vector.extract_strided_slice %276 {offsets = [0, 128], sizes = [2, 64], strides = [1, 1]} : vector<2x192xf32> to vector<2x64xf32>
    %289 = arith.addf %288, %52 : vector<2x64xf32>
    %290 = arith.mulf %285, %289 : vector<2x64xf32>
    %291 = arith.addf %287, %290 : vector<2x64xf32>
    %292 = math.tanh %291 : vector<2x64xf32>
    %cst_90 = arith.constant 1.000000e+00 : f32
    %293 = vector.broadcast %cst_90 : f32 to vector<2x64xf32>
    %294 = arith.subf %293, %286 : vector<2x64xf32>
    %295 = arith.mulf %294, %292 : vector<2x64xf32>
    %296 = arith.mulf %286, %266 : vector<2x64xf32>
    %297 = arith.addf %295, %296 : vector<2x64xf32>
    %298 = vector.extract_strided_slice %297 {offsets = [0, 0], sizes = [2, 32], strides = [1, 1]} : vector<2x64xf32> to vector<2x32xf32>
    %c0_91 = arith.constant 0 : index
    %c7_92 = arith.constant 7 : index
    %c0_93 = arith.constant 0 : index
    %c0_94 = arith.constant 0 : index
    %299 = vector.load %arg16[%c0_91, %c7_92, %c0_93, %c0_94] : memref<2x8x2x32xf32, #tpu.memory_space<vmem>>, vector<1x1x2x32xf32>
    %300 = vector.shape_cast %299 : vector<1x1x2x32xf32> to vector<2x32xf32>
    %301 = vector.shape_cast %298 : vector<2x32xf32> to vector<1x1x2x32xf32>
    tpu.vector_store %arg16[%c0_91, %c7_92, %c0_93, %c0_94], %301 {strides = array<i32>} : memref<2x8x2x32xf32, #tpu.memory_space<vmem>>, vector<1x1x2x32xf32>,
    %302 = vector.extract_strided_slice %297 {offsets = [0, 32], sizes = [2, 32], strides = [1, 1]} : vector<2x64xf32> to vector<2x32xf32>
    %c1_95 = arith.constant 1 : index
    %c0_96 = arith.constant 0 : index
    %c0_97 = arith.constant 0 : index
    %c0_98 = arith.constant 0 : index
    %303 = vector.load %arg16[%c1_95, %c0_96, %c0_97, %c0_98] : memref<2x8x2x32xf32, #tpu.memory_space<vmem>>, vector<1x1x2x32xf32>
    %304 = vector.shape_cast %303 : vector<1x1x2x32xf32> to vector<2x32xf32>
    %305 = vector.shape_cast %302 : vector<2x32xf32> to vector<1x1x2x32xf32>
    tpu.vector_store %arg16[%c1_95, %c0_96, %c0_97, %c0_98], %305 {strides = array<i32>} : memref<2x8x2x32xf32, #tpu.memory_space<vmem>>, vector<1x1x2x32xf32>,
    %306 = vector.extract_strided_slice %297 {offsets = [0, 0], sizes = [2, 32], strides = [1, 1]} : vector<2x64xf32> to vector<2x32xf32>
    %c0_99 = arith.constant 0 : index
    %c0_100 = arith.constant 0 : index
    %c0_101 = arith.constant 0 : index
    %307 = vector.load %arg15[%c0_99, %c0_100, %c0_101] : memref<4x2x32xf32, #tpu.memory_space<vmem>>, vector<1x2x32xf32>
    %308 = vector.shape_cast %307 : vector<1x2x32xf32> to vector<2x32xf32>
    %309 = vector.shape_cast %306 : vector<2x32xf32> to vector<1x2x32xf32>
    tpu.vector_store %arg15[%c0_99, %c0_100, %c0_101], %309 {strides = array<i32>} : memref<4x2x32xf32, #tpu.memory_space<vmem>>, vector<1x2x32xf32>,
    %310 = vector.extract_strided_slice %297 {offsets = [0, 32], sizes = [2, 32], strides = [1, 1]} : vector<2x64xf32> to vector<2x32xf32>
    %c1_102 = arith.constant 1 : index
    %c0_103 = arith.constant 0 : index
    %c0_104 = arith.constant 0 : index
    %311 = vector.load %arg15[%c1_102, %c0_103, %c0_104] : memref<4x2x32xf32, #tpu.memory_space<vmem>>, vector<1x2x32xf32>
    %312 = vector.shape_cast %311 : vector<1x2x32xf32> to vector<2x32xf32>
    %313 = vector.shape_cast %310 : vector<2x32xf32> to vector<1x2x32xf32>
    tpu.vector_store %arg15[%c1_102, %c0_103, %c0_104], %313 {strides = array<i32>} : memref<4x2x32xf32, #tpu.memory_space<vmem>>, vector<1x2x32xf32>,
    %c0_105 = arith.constant 0 : index
    %c0_106 = arith.constant 0 : index
    %c0_107 = arith.constant 0 : index
    %c0_108 = arith.constant 0 : index
    %314 = vector.load %arg16[%c0_105, %c0_106, %c0_107, %c0_108] : memref<2x8x2x32xf32, #tpu.memory_space<vmem>>, vector<1x8x2x32xf32>
    %315 = vector.shape_cast %314 : vector<1x8x2x32xf32> to vector<8x2x32xf32>
    %c1_109 = arith.constant 1 : index
    %c0_110 = arith.constant 0 : index
    %c0_111 = arith.constant 0 : index
    %c0_112 = arith.constant 0 : index
    %316 = vector.load %arg16[%c1_109, %c0_110, %c0_111, %c0_112] : memref<2x8x2x32xf32, #tpu.memory_space<vmem>>, vector<1x8x2x32xf32>
    %317 = vector.shape_cast %316 : vector<1x8x2x32xf32> to vector<8x2x32xf32>
    %318 = tpu.concatenate %315, %317 in 2 : vector<8x2x32xf32>, vector<8x2x32xf32> -> vector<8x2x64xf32>
    %319 = vector.shape_cast %318 : vector<8x2x64xf32> to vector<16x64xf32>
    %320 = arith.truncf %319 : vector<16x64xf32> to vector<16x64xbf16>
    %c0_113 = arith.constant 0 : index
    %c0_114 = arith.constant 0 : index
    %321 = vector.load %arg6[%c0_113, %c0_114] : memref<64x192xbf16, #tpu.memory_space<vmem>>, vector<64x192xbf16>
    %cst_115 = arith.constant dense<0.000000e+00> : vector<16x192xf32>
    %322 = tpu.matmul %320, %321, %cst_115 {dimension_numbers = #tpu.dot_dimension_numbers<[1], [0], [0], [1], [0, 0, 1, 1], [], []>} : vector<16x64xbf16>, vector<64x192xbf16>, vector<16x192xf32> -> vector<16x192xf32>
    %c0_116 = arith.constant 0 : index
    %c0_117 = arith.constant 0 : index
    %323 = vector.load %arg7[%c0_116, %c0_117] : memref<1x192xf32, #tpu.memory_space<vmem>>, vector<1x192xf32>
    %324 = vector.broadcast %323 : vector<1x192xf32> to vector<16x192xf32>
    %325 = arith.addf %322, %324 : vector<16x192xf32>
    %326 = vector.extract_strided_slice %325 {offsets = [0, 0], sizes = [2, 192], strides = [1, 1]} : vector<16x192xf32> to vector<2x192xf32>
    %327 = vector.extract_strided_slice %325 {offsets = [14, 0], sizes = [2, 192], strides = [1, 1]} : vector<16x192xf32> to vector<2x192xf32>
    %328 = arith.select %18, %326, %327 : vector<2x192xi1>, vector<2x192xf32>
    %329 = vector.extract_strided_slice %325 {offsets = [2, 0], sizes = [2, 192], strides = [1, 1]} : vector<16x192xf32> to vector<2x192xf32>
    %330 = vector.extract_strided_slice %325 {offsets = [12, 0], sizes = [2, 192], strides = [1, 1]} : vector<16x192xf32> to vector<2x192xf32>
    %331 = arith.select %18, %329, %330 : vector<2x192xi1>, vector<2x192xf32>
    %332 = vector.extract_strided_slice %325 {offsets = [4, 0], sizes = [2, 192], strides = [1, 1]} : vector<16x192xf32> to vector<2x192xf32>
    %333 = vector.extract_strided_slice %325 {offsets = [10, 0], sizes = [2, 192], strides = [1, 1]} : vector<16x192xf32> to vector<2x192xf32>
    %334 = arith.select %18, %332, %333 : vector<2x192xi1>, vector<2x192xf32>
    %335 = vector.extract_strided_slice %325 {offsets = [6, 0], sizes = [2, 192], strides = [1, 1]} : vector<16x192xf32> to vector<2x192xf32>
    %336 = vector.extract_strided_slice %325 {offsets = [8, 0], sizes = [2, 192], strides = [1, 1]} : vector<16x192xf32> to vector<2x192xf32>
    %337 = arith.select %18, %335, %336 : vector<2x192xi1>, vector<2x192xf32>
    %338 = vector.extract_strided_slice %325 {offsets = [8, 0], sizes = [2, 192], strides = [1, 1]} : vector<16x192xf32> to vector<2x192xf32>
    %339 = vector.extract_strided_slice %325 {offsets = [6, 0], sizes = [2, 192], strides = [1, 1]} : vector<16x192xf32> to vector<2x192xf32>
    %340 = arith.select %18, %338, %339 : vector<2x192xi1>, vector<2x192xf32>
    %341 = vector.extract_strided_slice %325 {offsets = [10, 0], sizes = [2, 192], strides = [1, 1]} : vector<16x192xf32> to vector<2x192xf32>
    %342 = vector.extract_strided_slice %325 {offsets = [4, 0], sizes = [2, 192], strides = [1, 1]} : vector<16x192xf32> to vector<2x192xf32>
    %343 = arith.select %18, %341, %342 : vector<2x192xi1>, vector<2x192xf32>
    %344 = vector.extract_strided_slice %325 {offsets = [12, 0], sizes = [2, 192], strides = [1, 1]} : vector<16x192xf32> to vector<2x192xf32>
    %345 = vector.extract_strided_slice %325 {offsets = [2, 0], sizes = [2, 192], strides = [1, 1]} : vector<16x192xf32> to vector<2x192xf32>
    %346 = arith.select %18, %344, %345 : vector<2x192xi1>, vector<2x192xf32>
    %347 = vector.extract_strided_slice %325 {offsets = [14, 0], sizes = [2, 192], strides = [1, 1]} : vector<16x192xf32> to vector<2x192xf32>
    %348 = vector.extract_strided_slice %325 {offsets = [0, 0], sizes = [2, 192], strides = [1, 1]} : vector<16x192xf32> to vector<2x192xf32>
    %349 = arith.select %18, %347, %348 : vector<2x192xi1>, vector<2x192xf32>
    %c0_118 = arith.constant 0 : index
    %c0_119 = arith.constant 0 : index
    %350 = vector.load %arg8[%c0_118, %c0_119] : memref<64x192xbf16, #tpu.memory_space<vmem>>, vector<64x192xbf16>
    %c0_120 = arith.constant 0 : index
    %c0_121 = arith.constant 0 : index
    %351 = vector.load %arg9[%c0_120, %c0_121] : memref<1x64xf32, #tpu.memory_space<vmem>>, vector<1x64xf32>
    %352 = vector.shape_cast %351 : vector<1x64xf32> to vector<1x64xf32>
    %353 = vector.broadcast %352 : vector<1x64xf32> to vector<2x64xf32>
    %c2_122 = arith.constant 2 : index
    %c0_123 = arith.constant 0 : index
    %c0_124 = arith.constant 0 : index
    %354 = vector.load %arg1[%c2_122, %c0_123, %c0_124] : memref<4x2x32xf32, #tpu.memory_space<vmem>>, vector<1x2x32xf32>
    %355 = vector.shape_cast %354 : vector<1x2x32xf32> to vector<2x32xf32>
    %c3_125 = arith.constant 3 : index
    %c0_126 = arith.constant 0 : index
    %c0_127 = arith.constant 0 : index
    %356 = vector.load %arg1[%c3_125, %c0_126, %c0_127] : memref<4x2x32xf32, #tpu.memory_space<vmem>>, vector<1x2x32xf32>
    %357 = vector.shape_cast %356 : vector<1x2x32xf32> to vector<2x32xf32>
    %358 = tpu.concatenate %355, %357 in 1 : vector<2x32xf32>, vector<2x32xf32> -> vector<2x64xf32>
    %359 = arith.truncf %358 : vector<2x64xf32> to vector<2x64xbf16>
    %cst_128 = arith.constant dense<0.000000e+00> : vector<2x192xf32>
    %360 = tpu.matmul %359, %350, %cst_128 {dimension_numbers = #tpu.dot_dimension_numbers<[1], [0], [0], [1], [0, 0, 1, 1], [], []>} : vector<2x64xbf16>, vector<64x192xbf16>, vector<2x192xf32> -> vector<2x192xf32>
    %361 = vector.extract_strided_slice %328 {offsets = [0, 0], sizes = [2, 128], strides = [1, 1]} : vector<2x192xf32> to vector<2x128xf32>
    %362 = vector.extract_strided_slice %360 {offsets = [0, 0], sizes = [2, 128], strides = [1, 1]} : vector<2x192xf32> to vector<2x128xf32>
    %363 = arith.addf %361, %362 : vector<2x128xf32>
    %364 = arith.negf %363 : vector<2x128xf32>
    %365 = math.exp %364 : vector<2x128xf32>
    %cst_129 = arith.constant 1.000000e+00 : f32
    %366 = vector.broadcast %cst_129 : f32 to vector<2x128xf32>
    %367 = arith.addf %366, %365 : vector<2x128xf32>
    %368 = arith.divf %366, %367 : vector<2x128xf32>
    %369 = vector.extract_strided_slice %368 {offsets = [0, 0], sizes = [2, 64], strides = [1, 1]} : vector<2x128xf32> to vector<2x64xf32>
    %370 = vector.extract_strided_slice %368 {offsets = [0, 64], sizes = [2, 64], strides = [1, 1]} : vector<2x128xf32> to vector<2x64xf32>
    %371 = vector.extract_strided_slice %328 {offsets = [0, 128], sizes = [2, 64], strides = [1, 1]} : vector<2x192xf32> to vector<2x64xf32>
    %372 = vector.extract_strided_slice %360 {offsets = [0, 128], sizes = [2, 64], strides = [1, 1]} : vector<2x192xf32> to vector<2x64xf32>
    %373 = arith.addf %372, %353 : vector<2x64xf32>
    %374 = arith.mulf %369, %373 : vector<2x64xf32>
    %375 = arith.addf %371, %374 : vector<2x64xf32>
    %376 = math.tanh %375 : vector<2x64xf32>
    %cst_130 = arith.constant 1.000000e+00 : f32
    %377 = vector.broadcast %cst_130 : f32 to vector<2x64xf32>
    %378 = arith.subf %377, %370 : vector<2x64xf32>
    %379 = arith.mulf %378, %376 : vector<2x64xf32>
    %380 = arith.mulf %370, %358 : vector<2x64xf32>
    %381 = arith.addf %379, %380 : vector<2x64xf32>
    %382 = vector.extract_strided_slice %381 {offsets = [0, 0], sizes = [2, 32], strides = [1, 1]} : vector<2x64xf32> to vector<2x32xf32>
    %c0_131 = arith.constant 0 : index
    %c0_132 = arith.constant 0 : index
    %c0_133 = arith.constant 0 : index
    %c0_134 = arith.constant 0 : index
    %383 = vector.load %arg16[%c0_131, %c0_132, %c0_133, %c0_134] : memref<2x8x2x32xf32, #tpu.memory_space<vmem>>, vector<1x1x2x32xf32>
    %384 = vector.shape_cast %383 : vector<1x1x2x32xf32> to vector<2x32xf32>
    %385 = vector.shape_cast %382 : vector<2x32xf32> to vector<1x1x2x32xf32>
    tpu.vector_store %arg16[%c0_131, %c0_132, %c0_133, %c0_134], %385 {strides = array<i32>} : memref<2x8x2x32xf32, #tpu.memory_space<vmem>>, vector<1x1x2x32xf32>,
    %386 = vector.extract_strided_slice %381 {offsets = [0, 32], sizes = [2, 32], strides = [1, 1]} : vector<2x64xf32> to vector<2x32xf32>
    %c1_135 = arith.constant 1 : index
    %c7_136 = arith.constant 7 : index
    %c0_137 = arith.constant 0 : index
    %c0_138 = arith.constant 0 : index
    %387 = vector.load %arg16[%c1_135, %c7_136, %c0_137, %c0_138] : memref<2x8x2x32xf32, #tpu.memory_space<vmem>>, vector<1x1x2x32xf32>
    %388 = vector.shape_cast %387 : vector<1x1x2x32xf32> to vector<2x32xf32>
    %389 = vector.shape_cast %386 : vector<2x32xf32> to vector<1x1x2x32xf32>
    tpu.vector_store %arg16[%c1_135, %c7_136, %c0_137, %c0_138], %389 {strides = array<i32>} : memref<2x8x2x32xf32, #tpu.memory_space<vmem>>, vector<1x1x2x32xf32>,
    %390 = arith.truncf %381 : vector<2x64xf32> to vector<2x64xbf16>
    %cst_139 = arith.constant dense<0.000000e+00> : vector<2x192xf32>
    %391 = tpu.matmul %390, %350, %cst_139 {dimension_numbers = #tpu.dot_dimension_numbers<[1], [0], [0], [1], [0, 0, 1, 1], [], []>} : vector<2x64xbf16>, vector<64x192xbf16>, vector<2x192xf32> -> vector<2x192xf32>
    %392 = vector.extract_strided_slice %331 {offsets = [0, 0], sizes = [2, 128], strides = [1, 1]} : vector<2x192xf32> to vector<2x128xf32>
    %393 = vector.extract_strided_slice %391 {offsets = [0, 0], sizes = [2, 128], strides = [1, 1]} : vector<2x192xf32> to vector<2x128xf32>
    %394 = arith.addf %392, %393 : vector<2x128xf32>
    %395 = arith.negf %394 : vector<2x128xf32>
    %396 = math.exp %395 : vector<2x128xf32>
    %cst_140 = arith.constant 1.000000e+00 : f32
    %397 = vector.broadcast %cst_140 : f32 to vector<2x128xf32>
    %398 = arith.addf %397, %396 : vector<2x128xf32>
    %399 = arith.divf %397, %398 : vector<2x128xf32>
    %400 = vector.extract_strided_slice %399 {offsets = [0, 0], sizes = [2, 64], strides = [1, 1]} : vector<2x128xf32> to vector<2x64xf32>
    %401 = vector.extract_strided_slice %399 {offsets = [0, 64], sizes = [2, 64], strides = [1, 1]} : vector<2x128xf32> to vector<2x64xf32>
    %402 = vector.extract_strided_slice %331 {offsets = [0, 128], sizes = [2, 64], strides = [1, 1]} : vector<2x192xf32> to vector<2x64xf32>
    %403 = vector.extract_strided_slice %391 {offsets = [0, 128], sizes = [2, 64], strides = [1, 1]} : vector<2x192xf32> to vector<2x64xf32>
    %404 = arith.addf %403, %353 : vector<2x64xf32>
    %405 = arith.mulf %400, %404 : vector<2x64xf32>
    %406 = arith.addf %402, %405 : vector<2x64xf32>
    %407 = math.tanh %406 : vector<2x64xf32>
    %cst_141 = arith.constant 1.000000e+00 : f32
    %408 = vector.broadcast %cst_141 : f32 to vector<2x64xf32>
    %409 = arith.subf %408, %401 : vector<2x64xf32>
    %410 = arith.mulf %409, %407 : vector<2x64xf32>
    %411 = arith.mulf %401, %381 : vector<2x64xf32>
    %412 = arith.addf %410, %411 : vector<2x64xf32>
    %413 = vector.extract_strided_slice %412 {offsets = [0, 0], sizes = [2, 32], strides = [1, 1]} : vector<2x64xf32> to vector<2x32xf32>
    %c0_142 = arith.constant 0 : index
    %c1_143 = arith.constant 1 : index
    %c0_144 = arith.constant 0 : index
    %c0_145 = arith.constant 0 : index
    %414 = vector.load %arg16[%c0_142, %c1_143, %c0_144, %c0_145] : memref<2x8x2x32xf32, #tpu.memory_space<vmem>>, vector<1x1x2x32xf32>
    %415 = vector.shape_cast %414 : vector<1x1x2x32xf32> to vector<2x32xf32>
    %416 = vector.shape_cast %413 : vector<2x32xf32> to vector<1x1x2x32xf32>
    tpu.vector_store %arg16[%c0_142, %c1_143, %c0_144, %c0_145], %416 {strides = array<i32>} : memref<2x8x2x32xf32, #tpu.memory_space<vmem>>, vector<1x1x2x32xf32>,
    %417 = vector.extract_strided_slice %412 {offsets = [0, 32], sizes = [2, 32], strides = [1, 1]} : vector<2x64xf32> to vector<2x32xf32>
    %c1_146 = arith.constant 1 : index
    %c6_147 = arith.constant 6 : index
    %c0_148 = arith.constant 0 : index
    %c0_149 = arith.constant 0 : index
    %418 = vector.load %arg16[%c1_146, %c6_147, %c0_148, %c0_149] : memref<2x8x2x32xf32, #tpu.memory_space<vmem>>, vector<1x1x2x32xf32>
    %419 = vector.shape_cast %418 : vector<1x1x2x32xf32> to vector<2x32xf32>
    %420 = vector.shape_cast %417 : vector<2x32xf32> to vector<1x1x2x32xf32>
    tpu.vector_store %arg16[%c1_146, %c6_147, %c0_148, %c0_149], %420 {strides = array<i32>} : memref<2x8x2x32xf32, #tpu.memory_space<vmem>>, vector<1x1x2x32xf32>,
    %421 = arith.truncf %412 : vector<2x64xf32> to vector<2x64xbf16>
    %cst_150 = arith.constant dense<0.000000e+00> : vector<2x192xf32>
    %422 = tpu.matmul %421, %350, %cst_150 {dimension_numbers = #tpu.dot_dimension_numbers<[1], [0], [0], [1], [0, 0, 1, 1], [], []>} : vector<2x64xbf16>, vector<64x192xbf16>, vector<2x192xf32> -> vector<2x192xf32>
    %423 = vector.extract_strided_slice %334 {offsets = [0, 0], sizes = [2, 128], strides = [1, 1]} : vector<2x192xf32> to vector<2x128xf32>
    %424 = vector.extract_strided_slice %422 {offsets = [0, 0], sizes = [2, 128], strides = [1, 1]} : vector<2x192xf32> to vector<2x128xf32>
    %425 = arith.addf %423, %424 : vector<2x128xf32>
    %426 = arith.negf %425 : vector<2x128xf32>
    %427 = math.exp %426 : vector<2x128xf32>
    %cst_151 = arith.constant 1.000000e+00 : f32
    %428 = vector.broadcast %cst_151 : f32 to vector<2x128xf32>
    %429 = arith.addf %428, %427 : vector<2x128xf32>
    %430 = arith.divf %428, %429 : vector<2x128xf32>
    %431 = vector.extract_strided_slice %430 {offsets = [0, 0], sizes = [2, 64], strides = [1, 1]} : vector<2x128xf32> to vector<2x64xf32>
    %432 = vector.extract_strided_slice %430 {offsets = [0, 64], sizes = [2, 64], strides = [1, 1]} : vector<2x128xf32> to vector<2x64xf32>
    %433 = vector.extract_strided_slice %334 {offsets = [0, 128], sizes = [2, 64], strides = [1, 1]} : vector<2x192xf32> to vector<2x64xf32>
    %434 = vector.extract_strided_slice %422 {offsets = [0, 128], sizes = [2, 64], strides = [1, 1]} : vector<2x192xf32> to vector<2x64xf32>
    %435 = arith.addf %434, %353 : vector<2x64xf32>
    %436 = arith.mulf %431, %435 : vector<2x64xf32>
    %437 = arith.addf %433, %436 : vector<2x64xf32>
    %438 = math.tanh %437 : vector<2x64xf32>
    %cst_152 = arith.constant 1.000000e+00 : f32
    %439 = vector.broadcast %cst_152 : f32 to vector<2x64xf32>
    %440 = arith.subf %439, %432 : vector<2x64xf32>
    %441 = arith.mulf %440, %438 : vector<2x64xf32>
    %442 = arith.mulf %432, %412 : vector<2x64xf32>
    %443 = arith.addf %441, %442 : vector<2x64xf32>
    %444 = vector.extract_strided_slice %443 {offsets = [0, 0], sizes = [2, 32], strides = [1, 1]} : vector<2x64xf32> to vector<2x32xf32>
    %c0_153 = arith.constant 0 : index
    %c2_154 = arith.constant 2 : index
    %c0_155 = arith.constant 0 : index
    %c0_156 = arith.constant 0 : index
    %445 = vector.load %arg16[%c0_153, %c2_154, %c0_155, %c0_156] : memref<2x8x2x32xf32, #tpu.memory_space<vmem>>, vector<1x1x2x32xf32>
    %446 = vector.shape_cast %445 : vector<1x1x2x32xf32> to vector<2x32xf32>
    %447 = vector.shape_cast %444 : vector<2x32xf32> to vector<1x1x2x32xf32>
    tpu.vector_store %arg16[%c0_153, %c2_154, %c0_155, %c0_156], %447 {strides = array<i32>} : memref<2x8x2x32xf32, #tpu.memory_space<vmem>>, vector<1x1x2x32xf32>,
    %448 = vector.extract_strided_slice %443 {offsets = [0, 32], sizes = [2, 32], strides = [1, 1]} : vector<2x64xf32> to vector<2x32xf32>
    %c1_157 = arith.constant 1 : index
    %c5_158 = arith.constant 5 : index
    %c0_159 = arith.constant 0 : index
    %c0_160 = arith.constant 0 : index
    %449 = vector.load %arg16[%c1_157, %c5_158, %c0_159, %c0_160] : memref<2x8x2x32xf32, #tpu.memory_space<vmem>>, vector<1x1x2x32xf32>
    %450 = vector.shape_cast %449 : vector<1x1x2x32xf32> to vector<2x32xf32>
    %451 = vector.shape_cast %448 : vector<2x32xf32> to vector<1x1x2x32xf32>
    tpu.vector_store %arg16[%c1_157, %c5_158, %c0_159, %c0_160], %451 {strides = array<i32>} : memref<2x8x2x32xf32, #tpu.memory_space<vmem>>, vector<1x1x2x32xf32>,
    %452 = arith.truncf %443 : vector<2x64xf32> to vector<2x64xbf16>
    %cst_161 = arith.constant dense<0.000000e+00> : vector<2x192xf32>
    %453 = tpu.matmul %452, %350, %cst_161 {dimension_numbers = #tpu.dot_dimension_numbers<[1], [0], [0], [1], [0, 0, 1, 1], [], []>} : vector<2x64xbf16>, vector<64x192xbf16>, vector<2x192xf32> -> vector<2x192xf32>
    %454 = vector.extract_strided_slice %337 {offsets = [0, 0], sizes = [2, 128], strides = [1, 1]} : vector<2x192xf32> to vector<2x128xf32>
    %455 = vector.extract_strided_slice %453 {offsets = [0, 0], sizes = [2, 128], strides = [1, 1]} : vector<2x192xf32> to vector<2x128xf32>
    %456 = arith.addf %454, %455 : vector<2x128xf32>
    %457 = arith.negf %456 : vector<2x128xf32>
    %458 = math.exp %457 : vector<2x128xf32>
    %cst_162 = arith.constant 1.000000e+00 : f32
    %459 = vector.broadcast %cst_162 : f32 to vector<2x128xf32>
    %460 = arith.addf %459, %458 : vector<2x128xf32>
    %461 = arith.divf %459, %460 : vector<2x128xf32>
    %462 = vector.extract_strided_slice %461 {offsets = [0, 0], sizes = [2, 64], strides = [1, 1]} : vector<2x128xf32> to vector<2x64xf32>
    %463 = vector.extract_strided_slice %461 {offsets = [0, 64], sizes = [2, 64], strides = [1, 1]} : vector<2x128xf32> to vector<2x64xf32>
    %464 = vector.extract_strided_slice %337 {offsets = [0, 128], sizes = [2, 64], strides = [1, 1]} : vector<2x192xf32> to vector<2x64xf32>
    %465 = vector.extract_strided_slice %453 {offsets = [0, 128], sizes = [2, 64], strides = [1, 1]} : vector<2x192xf32> to vector<2x64xf32>
    %466 = arith.addf %465, %353 : vector<2x64xf32>
    %467 = arith.mulf %462, %466 : vector<2x64xf32>
    %468 = arith.addf %464, %467 : vector<2x64xf32>
    %469 = math.tanh %468 : vector<2x64xf32>
    %cst_163 = arith.constant 1.000000e+00 : f32
    %470 = vector.broadcast %cst_163 : f32 to vector<2x64xf32>
    %471 = arith.subf %470, %463 : vector<2x64xf32>
    %472 = arith.mulf %471, %469 : vector<2x64xf32>
    %473 = arith.mulf %463, %443 : vector<2x64xf32>
    %474 = arith.addf %472, %473 : vector<2x64xf32>
    %475 = vector.extract_strided_slice %474 {offsets = [0, 0], sizes = [2, 32], strides = [1, 1]} : vector<2x64xf32> to vector<2x32xf32>
    %c0_164 = arith.constant 0 : index
    %c3_165 = arith.constant 3 : index
    %c0_166 = arith.constant 0 : index
    %c0_167 = arith.constant 0 : index
    %476 = vector.load %arg16[%c0_164, %c3_165, %c0_166, %c0_167] : memref<2x8x2x32xf32, #tpu.memory_space<vmem>>, vector<1x1x2x32xf32>
    %477 = vector.shape_cast %476 : vector<1x1x2x32xf32> to vector<2x32xf32>
    %478 = vector.shape_cast %475 : vector<2x32xf32> to vector<1x1x2x32xf32>
    tpu.vector_store %arg16[%c0_164, %c3_165, %c0_166, %c0_167], %478 {strides = array<i32>} : memref<2x8x2x32xf32, #tpu.memory_space<vmem>>, vector<1x1x2x32xf32>,
    %479 = vector.extract_strided_slice %474 {offsets = [0, 32], sizes = [2, 32], strides = [1, 1]} : vector<2x64xf32> to vector<2x32xf32>
    %c1_168 = arith.constant 1 : index
    %c4_169 = arith.constant 4 : index
    %c0_170 = arith.constant 0 : index
    %c0_171 = arith.constant 0 : index
    %480 = vector.load %arg16[%c1_168, %c4_169, %c0_170, %c0_171] : memref<2x8x2x32xf32, #tpu.memory_space<vmem>>, vector<1x1x2x32xf32>
    %481 = vector.shape_cast %480 : vector<1x1x2x32xf32> to vector<2x32xf32>
    %482 = vector.shape_cast %479 : vector<2x32xf32> to vector<1x1x2x32xf32>
    tpu.vector_store %arg16[%c1_168, %c4_169, %c0_170, %c0_171], %482 {strides = array<i32>} : memref<2x8x2x32xf32, #tpu.memory_space<vmem>>, vector<1x1x2x32xf32>,
    %483 = arith.truncf %474 : vector<2x64xf32> to vector<2x64xbf16>
    %cst_172 = arith.constant dense<0.000000e+00> : vector<2x192xf32>
    %484 = tpu.matmul %483, %350, %cst_172 {dimension_numbers = #tpu.dot_dimension_numbers<[1], [0], [0], [1], [0, 0, 1, 1], [], []>} : vector<2x64xbf16>, vector<64x192xbf16>, vector<2x192xf32> -> vector<2x192xf32>
    %485 = vector.extract_strided_slice %340 {offsets = [0, 0], sizes = [2, 128], strides = [1, 1]} : vector<2x192xf32> to vector<2x128xf32>
    %486 = vector.extract_strided_slice %484 {offsets = [0, 0], sizes = [2, 128], strides = [1, 1]} : vector<2x192xf32> to vector<2x128xf32>
    %487 = arith.addf %485, %486 : vector<2x128xf32>
    %488 = arith.negf %487 : vector<2x128xf32>
    %489 = math.exp %488 : vector<2x128xf32>
    %cst_173 = arith.constant 1.000000e+00 : f32
    %490 = vector.broadcast %cst_173 : f32 to vector<2x128xf32>
    %491 = arith.addf %490, %489 : vector<2x128xf32>
    %492 = arith.divf %490, %491 : vector<2x128xf32>
    %493 = vector.extract_strided_slice %492 {offsets = [0, 0], sizes = [2, 64], strides = [1, 1]} : vector<2x128xf32> to vector<2x64xf32>
    %494 = vector.extract_strided_slice %492 {offsets = [0, 64], sizes = [2, 64], strides = [1, 1]} : vector<2x128xf32> to vector<2x64xf32>
    %495 = vector.extract_strided_slice %340 {offsets = [0, 128], sizes = [2, 64], strides = [1, 1]} : vector<2x192xf32> to vector<2x64xf32>
    %496 = vector.extract_strided_slice %484 {offsets = [0, 128], sizes = [2, 64], strides = [1, 1]} : vector<2x192xf32> to vector<2x64xf32>
    %497 = arith.addf %496, %353 : vector<2x64xf32>
    %498 = arith.mulf %493, %497 : vector<2x64xf32>
    %499 = arith.addf %495, %498 : vector<2x64xf32>
    %500 = math.tanh %499 : vector<2x64xf32>
    %cst_174 = arith.constant 1.000000e+00 : f32
    %501 = vector.broadcast %cst_174 : f32 to vector<2x64xf32>
    %502 = arith.subf %501, %494 : vector<2x64xf32>
    %503 = arith.mulf %502, %500 : vector<2x64xf32>
    %504 = arith.mulf %494, %474 : vector<2x64xf32>
    %505 = arith.addf %503, %504 : vector<2x64xf32>
    %506 = vector.extract_strided_slice %505 {offsets = [0, 0], sizes = [2, 32], strides = [1, 1]} : vector<2x64xf32> to vector<2x32xf32>
    %c0_175 = arith.constant 0 : index
    %c4_176 = arith.constant 4 : index
    %c0_177 = arith.constant 0 : index
    %c0_178 = arith.constant 0 : index
    %507 = vector.load %arg16[%c0_175, %c4_176, %c0_177, %c0_178] : memref<2x8x2x32xf32, #tpu.memory_space<vmem>>, vector<1x1x2x32xf32>
    %508 = vector.shape_cast %507 : vector<1x1x2x32xf32> to vector<2x32xf32>
    %509 = vector.shape_cast %506 : vector<2x32xf32> to vector<1x1x2x32xf32>
    tpu.vector_store %arg16[%c0_175, %c4_176, %c0_177, %c0_178], %509 {strides = array<i32>} : memref<2x8x2x32xf32, #tpu.memory_space<vmem>>, vector<1x1x2x32xf32>,
    %510 = vector.extract_strided_slice %505 {offsets = [0, 32], sizes = [2, 32], strides = [1, 1]} : vector<2x64xf32> to vector<2x32xf32>
    %c1_179 = arith.constant 1 : index
    %c3_180 = arith.constant 3 : index
    %c0_181 = arith.constant 0 : index
    %c0_182 = arith.constant 0 : index
    %511 = vector.load %arg16[%c1_179, %c3_180, %c0_181, %c0_182] : memref<2x8x2x32xf32, #tpu.memory_space<vmem>>, vector<1x1x2x32xf32>
    %512 = vector.shape_cast %511 : vector<1x1x2x32xf32> to vector<2x32xf32>
    %513 = vector.shape_cast %510 : vector<2x32xf32> to vector<1x1x2x32xf32>
    tpu.vector_store %arg16[%c1_179, %c3_180, %c0_181, %c0_182], %513 {strides = array<i32>} : memref<2x8x2x32xf32, #tpu.memory_space<vmem>>, vector<1x1x2x32xf32>,
    %514 = arith.truncf %505 : vector<2x64xf32> to vector<2x64xbf16>
    %cst_183 = arith.constant dense<0.000000e+00> : vector<2x192xf32>
    %515 = tpu.matmul %514, %350, %cst_183 {dimension_numbers = #tpu.dot_dimension_numbers<[1], [0], [0], [1], [0, 0, 1, 1], [], []>} : vector<2x64xbf16>, vector<64x192xbf16>, vector<2x192xf32> -> vector<2x192xf32>
    %516 = vector.extract_strided_slice %343 {offsets = [0, 0], sizes = [2, 128], strides = [1, 1]} : vector<2x192xf32> to vector<2x128xf32>
    %517 = vector.extract_strided_slice %515 {offsets = [0, 0], sizes = [2, 128], strides = [1, 1]} : vector<2x192xf32> to vector<2x128xf32>
    %518 = arith.addf %516, %517 : vector<2x128xf32>
    %519 = arith.negf %518 : vector<2x128xf32>
    %520 = math.exp %519 : vector<2x128xf32>
    %cst_184 = arith.constant 1.000000e+00 : f32
    %521 = vector.broadcast %cst_184 : f32 to vector<2x128xf32>
    %522 = arith.addf %521, %520 : vector<2x128xf32>
    %523 = arith.divf %521, %522 : vector<2x128xf32>
    %524 = vector.extract_strided_slice %523 {offsets = [0, 0], sizes = [2, 64], strides = [1, 1]} : vector<2x128xf32> to vector<2x64xf32>
    %525 = vector.extract_strided_slice %523 {offsets = [0, 64], sizes = [2, 64], strides = [1, 1]} : vector<2x128xf32> to vector<2x64xf32>
    %526 = vector.extract_strided_slice %343 {offsets = [0, 128], sizes = [2, 64], strides = [1, 1]} : vector<2x192xf32> to vector<2x64xf32>
    %527 = vector.extract_strided_slice %515 {offsets = [0, 128], sizes = [2, 64], strides = [1, 1]} : vector<2x192xf32> to vector<2x64xf32>
    %528 = arith.addf %527, %353 : vector<2x64xf32>
    %529 = arith.mulf %524, %528 : vector<2x64xf32>
    %530 = arith.addf %526, %529 : vector<2x64xf32>
    %531 = math.tanh %530 : vector<2x64xf32>
    %cst_185 = arith.constant 1.000000e+00 : f32
    %532 = vector.broadcast %cst_185 : f32 to vector<2x64xf32>
    %533 = arith.subf %532, %525 : vector<2x64xf32>
    %534 = arith.mulf %533, %531 : vector<2x64xf32>
    %535 = arith.mulf %525, %505 : vector<2x64xf32>
    %536 = arith.addf %534, %535 : vector<2x64xf32>
    %537 = vector.extract_strided_slice %536 {offsets = [0, 0], sizes = [2, 32], strides = [1, 1]} : vector<2x64xf32> to vector<2x32xf32>
    %c0_186 = arith.constant 0 : index
    %c5_187 = arith.constant 5 : index
    %c0_188 = arith.constant 0 : index
    %c0_189 = arith.constant 0 : index
    %538 = vector.load %arg16[%c0_186, %c5_187, %c0_188, %c0_189] : memref<2x8x2x32xf32, #tpu.memory_space<vmem>>, vector<1x1x2x32xf32>
    %539 = vector.shape_cast %538 : vector<1x1x2x32xf32> to vector<2x32xf32>
    %540 = vector.shape_cast %537 : vector<2x32xf32> to vector<1x1x2x32xf32>
    tpu.vector_store %arg16[%c0_186, %c5_187, %c0_188, %c0_189], %540 {strides = array<i32>} : memref<2x8x2x32xf32, #tpu.memory_space<vmem>>, vector<1x1x2x32xf32>,
    %541 = vector.extract_strided_slice %536 {offsets = [0, 32], sizes = [2, 32], strides = [1, 1]} : vector<2x64xf32> to vector<2x32xf32>
    %c1_190 = arith.constant 1 : index
    %c2_191 = arith.constant 2 : index
    %c0_192 = arith.constant 0 : index
    %c0_193 = arith.constant 0 : index
    %542 = vector.load %arg16[%c1_190, %c2_191, %c0_192, %c0_193] : memref<2x8x2x32xf32, #tpu.memory_space<vmem>>, vector<1x1x2x32xf32>
    %543 = vector.shape_cast %542 : vector<1x1x2x32xf32> to vector<2x32xf32>
    %544 = vector.shape_cast %541 : vector<2x32xf32> to vector<1x1x2x32xf32>
    tpu.vector_store %arg16[%c1_190, %c2_191, %c0_192, %c0_193], %544 {strides = array<i32>} : memref<2x8x2x32xf32, #tpu.memory_space<vmem>>, vector<1x1x2x32xf32>,
    %545 = arith.truncf %536 : vector<2x64xf32> to vector<2x64xbf16>
    %cst_194 = arith.constant dense<0.000000e+00> : vector<2x192xf32>
    %546 = tpu.matmul %545, %350, %cst_194 {dimension_numbers = #tpu.dot_dimension_numbers<[1], [0], [0], [1], [0, 0, 1, 1], [], []>} : vector<2x64xbf16>, vector<64x192xbf16>, vector<2x192xf32> -> vector<2x192xf32>
    %547 = vector.extract_strided_slice %346 {offsets = [0, 0], sizes = [2, 128], strides = [1, 1]} : vector<2x192xf32> to vector<2x128xf32>
    %548 = vector.extract_strided_slice %546 {offsets = [0, 0], sizes = [2, 128], strides = [1, 1]} : vector<2x192xf32> to vector<2x128xf32>
    %549 = arith.addf %547, %548 : vector<2x128xf32>
    %550 = arith.negf %549 : vector<2x128xf32>
    %551 = math.exp %550 : vector<2x128xf32>
    %cst_195 = arith.constant 1.000000e+00 : f32
    %552 = vector.broadcast %cst_195 : f32 to vector<2x128xf32>
    %553 = arith.addf %552, %551 : vector<2x128xf32>
    %554 = arith.divf %552, %553 : vector<2x128xf32>
    %555 = vector.extract_strided_slice %554 {offsets = [0, 0], sizes = [2, 64], strides = [1, 1]} : vector<2x128xf32> to vector<2x64xf32>
    %556 = vector.extract_strided_slice %554 {offsets = [0, 64], sizes = [2, 64], strides = [1, 1]} : vector<2x128xf32> to vector<2x64xf32>
    %557 = vector.extract_strided_slice %346 {offsets = [0, 128], sizes = [2, 64], strides = [1, 1]} : vector<2x192xf32> to vector<2x64xf32>
    %558 = vector.extract_strided_slice %546 {offsets = [0, 128], sizes = [2, 64], strides = [1, 1]} : vector<2x192xf32> to vector<2x64xf32>
    %559 = arith.addf %558, %353 : vector<2x64xf32>
    %560 = arith.mulf %555, %559 : vector<2x64xf32>
    %561 = arith.addf %557, %560 : vector<2x64xf32>
    %562 = math.tanh %561 : vector<2x64xf32>
    %cst_196 = arith.constant 1.000000e+00 : f32
    %563 = vector.broadcast %cst_196 : f32 to vector<2x64xf32>
    %564 = arith.subf %563, %556 : vector<2x64xf32>
    %565 = arith.mulf %564, %562 : vector<2x64xf32>
    %566 = arith.mulf %556, %536 : vector<2x64xf32>
    %567 = arith.addf %565, %566 : vector<2x64xf32>
    %568 = vector.extract_strided_slice %567 {offsets = [0, 0], sizes = [2, 32], strides = [1, 1]} : vector<2x64xf32> to vector<2x32xf32>
    %c0_197 = arith.constant 0 : index
    %c6_198 = arith.constant 6 : index
    %c0_199 = arith.constant 0 : index
    %c0_200 = arith.constant 0 : index
    %569 = vector.load %arg16[%c0_197, %c6_198, %c0_199, %c0_200] : memref<2x8x2x32xf32, #tpu.memory_space<vmem>>, vector<1x1x2x32xf32>
    %570 = vector.shape_cast %569 : vector<1x1x2x32xf32> to vector<2x32xf32>
    %571 = vector.shape_cast %568 : vector<2x32xf32> to vector<1x1x2x32xf32>
    tpu.vector_store %arg16[%c0_197, %c6_198, %c0_199, %c0_200], %571 {strides = array<i32>} : memref<2x8x2x32xf32, #tpu.memory_space<vmem>>, vector<1x1x2x32xf32>,
    %572 = vector.extract_strided_slice %567 {offsets = [0, 32], sizes = [2, 32], strides = [1, 1]} : vector<2x64xf32> to vector<2x32xf32>
    %c1_201 = arith.constant 1 : index
    %c1_202 = arith.constant 1 : index
    %c0_203 = arith.constant 0 : index
    %c0_204 = arith.constant 0 : index
    %573 = vector.load %arg16[%c1_201, %c1_202, %c0_203, %c0_204] : memref<2x8x2x32xf32, #tpu.memory_space<vmem>>, vector<1x1x2x32xf32>
    %574 = vector.shape_cast %573 : vector<1x1x2x32xf32> to vector<2x32xf32>
    %575 = vector.shape_cast %572 : vector<2x32xf32> to vector<1x1x2x32xf32>
    tpu.vector_store %arg16[%c1_201, %c1_202, %c0_203, %c0_204], %575 {strides = array<i32>} : memref<2x8x2x32xf32, #tpu.memory_space<vmem>>, vector<1x1x2x32xf32>,
    %576 = arith.truncf %567 : vector<2x64xf32> to vector<2x64xbf16>
    %cst_205 = arith.constant dense<0.000000e+00> : vector<2x192xf32>
    %577 = tpu.matmul %576, %350, %cst_205 {dimension_numbers = #tpu.dot_dimension_numbers<[1], [0], [0], [1], [0, 0, 1, 1], [], []>} : vector<2x64xbf16>, vector<64x192xbf16>, vector<2x192xf32> -> vector<2x192xf32>
    %578 = vector.extract_strided_slice %349 {offsets = [0, 0], sizes = [2, 128], strides = [1, 1]} : vector<2x192xf32> to vector<2x128xf32>
    %579 = vector.extract_strided_slice %577 {offsets = [0, 0], sizes = [2, 128], strides = [1, 1]} : vector<2x192xf32> to vector<2x128xf32>
    %580 = arith.addf %578, %579 : vector<2x128xf32>
    %581 = arith.negf %580 : vector<2x128xf32>
    %582 = math.exp %581 : vector<2x128xf32>
    %cst_206 = arith.constant 1.000000e+00 : f32
    %583 = vector.broadcast %cst_206 : f32 to vector<2x128xf32>
    %584 = arith.addf %583, %582 : vector<2x128xf32>
    %585 = arith.divf %583, %584 : vector<2x128xf32>
    %586 = vector.extract_strided_slice %585 {offsets = [0, 0], sizes = [2, 64], strides = [1, 1]} : vector<2x128xf32> to vector<2x64xf32>
    %587 = vector.extract_strided_slice %585 {offsets = [0, 64], sizes = [2, 64], strides = [1, 1]} : vector<2x128xf32> to vector<2x64xf32>
    %588 = vector.extract_strided_slice %349 {offsets = [0, 128], sizes = [2, 64], strides = [1, 1]} : vector<2x192xf32> to vector<2x64xf32>
    %589 = vector.extract_strided_slice %577 {offsets = [0, 128], sizes = [2, 64], strides = [1, 1]} : vector<2x192xf32> to vector<2x64xf32>
    %590 = arith.addf %589, %353 : vector<2x64xf32>
    %591 = arith.mulf %586, %590 : vector<2x64xf32>
    %592 = arith.addf %588, %591 : vector<2x64xf32>
    %593 = math.tanh %592 : vector<2x64xf32>
    %cst_207 = arith.constant 1.000000e+00 : f32
    %594 = vector.broadcast %cst_207 : f32 to vector<2x64xf32>
    %595 = arith.subf %594, %587 : vector<2x64xf32>
    %596 = arith.mulf %595, %593 : vector<2x64xf32>
    %597 = arith.mulf %587, %567 : vector<2x64xf32>
    %598 = arith.addf %596, %597 : vector<2x64xf32>
    %599 = vector.extract_strided_slice %598 {offsets = [0, 0], sizes = [2, 32], strides = [1, 1]} : vector<2x64xf32> to vector<2x32xf32>
    %c0_208 = arith.constant 0 : index
    %c7_209 = arith.constant 7 : index
    %c0_210 = arith.constant 0 : index
    %c0_211 = arith.constant 0 : index
    %600 = vector.load %arg16[%c0_208, %c7_209, %c0_210, %c0_211] : memref<2x8x2x32xf32, #tpu.memory_space<vmem>>, vector<1x1x2x32xf32>
    %601 = vector.shape_cast %600 : vector<1x1x2x32xf32> to vector<2x32xf32>
    %602 = vector.shape_cast %599 : vector<2x32xf32> to vector<1x1x2x32xf32>
    tpu.vector_store %arg16[%c0_208, %c7_209, %c0_210, %c0_211], %602 {strides = array<i32>} : memref<2x8x2x32xf32, #tpu.memory_space<vmem>>, vector<1x1x2x32xf32>,
    %603 = vector.extract_strided_slice %598 {offsets = [0, 32], sizes = [2, 32], strides = [1, 1]} : vector<2x64xf32> to vector<2x32xf32>
    %c1_212 = arith.constant 1 : index
    %c0_213 = arith.constant 0 : index
    %c0_214 = arith.constant 0 : index
    %c0_215 = arith.constant 0 : index
    %604 = vector.load %arg16[%c1_212, %c0_213, %c0_214, %c0_215] : memref<2x8x2x32xf32, #tpu.memory_space<vmem>>, vector<1x1x2x32xf32>
    %605 = vector.shape_cast %604 : vector<1x1x2x32xf32> to vector<2x32xf32>
    %606 = vector.shape_cast %603 : vector<2x32xf32> to vector<1x1x2x32xf32>
    tpu.vector_store %arg16[%c1_212, %c0_213, %c0_214, %c0_215], %606 {strides = array<i32>} : memref<2x8x2x32xf32, #tpu.memory_space<vmem>>, vector<1x1x2x32xf32>,
    %607 = vector.extract_strided_slice %598 {offsets = [0, 0], sizes = [2, 32], strides = [1, 1]} : vector<2x64xf32> to vector<2x32xf32>
    %c2_216 = arith.constant 2 : index
    %c0_217 = arith.constant 0 : index
    %c0_218 = arith.constant 0 : index
    %608 = vector.load %arg15[%c2_216, %c0_217, %c0_218] : memref<4x2x32xf32, #tpu.memory_space<vmem>>, vector<1x2x32xf32>
    %609 = vector.shape_cast %608 : vector<1x2x32xf32> to vector<2x32xf32>
    %610 = vector.shape_cast %607 : vector<2x32xf32> to vector<1x2x32xf32>
    tpu.vector_store %arg15[%c2_216, %c0_217, %c0_218], %610 {strides = array<i32>} : memref<4x2x32xf32, #tpu.memory_space<vmem>>, vector<1x2x32xf32>,
    %611 = vector.extract_strided_slice %598 {offsets = [0, 32], sizes = [2, 32], strides = [1, 1]} : vector<2x64xf32> to vector<2x32xf32>
    %c3_219 = arith.constant 3 : index
    %c0_220 = arith.constant 0 : index
    %c0_221 = arith.constant 0 : index
    %612 = vector.load %arg15[%c3_219, %c0_220, %c0_221] : memref<4x2x32xf32, #tpu.memory_space<vmem>>, vector<1x2x32xf32>
    %613 = vector.shape_cast %612 : vector<1x2x32xf32> to vector<2x32xf32>
    %614 = vector.shape_cast %611 : vector<2x32xf32> to vector<1x2x32xf32>
    tpu.vector_store %arg15[%c3_219, %c0_220, %c0_221], %614 {strides = array<i32>} : memref<4x2x32xf32, #tpu.memory_space<vmem>>, vector<1x2x32xf32>,
    %c0_222 = arith.constant 0 : index
    %c7_223 = arith.constant 7 : index
    %c0_224 = arith.constant 0 : index
    %c0_225 = arith.constant 0 : index
    %615 = vector.load %arg16[%c0_222, %c7_223, %c0_224, %c0_225] : memref<2x8x2x32xf32, #tpu.memory_space<vmem>>, vector<1x1x2x32xf32>
    %616 = vector.shape_cast %615 : vector<1x1x2x32xf32> to vector<2x32xf32>
    %c1_226 = arith.constant 1 : index
    %c7_227 = arith.constant 7 : index
    %c0_228 = arith.constant 0 : index
    %c0_229 = arith.constant 0 : index
    %617 = vector.load %arg16[%c1_226, %c7_227, %c0_228, %c0_229] : memref<2x8x2x32xf32, #tpu.memory_space<vmem>>, vector<1x1x2x32xf32>
    %618 = vector.shape_cast %617 : vector<1x1x2x32xf32> to vector<2x32xf32>
    %619 = tpu.concatenate %616, %618 in 1 : vector<2x32xf32>, vector<2x32xf32> -> vector<2x64xf32>
    %620 = arith.truncf %619 : vector<2x64xf32> to vector<2x64xbf16>
    %c0_230 = arith.constant 0 : index
    %c0_231 = arith.constant 0 : index
    %621 = vector.load %arg10[%c0_230, %c0_231] : memref<64x16xbf16, #tpu.memory_space<vmem>>, vector<64x16xbf16>
    %cst_232 = arith.constant dense<0.000000e+00> : vector<2x16xf32>
    %622 = tpu.matmul %620, %621, %cst_232 {dimension_numbers = #tpu.dot_dimension_numbers<[1], [0], [0], [1], [0, 0, 1, 1], [], []>} : vector<2x64xbf16>, vector<64x16xbf16>, vector<2x16xf32> -> vector<2x16xf32>
    %c0_233 = arith.constant 0 : index
    %c0_234 = arith.constant 0 : index
    %623 = vector.load %arg11[%c0_233, %c0_234] : memref<1x16xf32, #tpu.memory_space<vmem>>, vector<1x16xf32>
    %624 = vector.broadcast %623 : vector<1x16xf32> to vector<2x16xf32>
    %625 = arith.addf %622, %624 : vector<2x16xf32>
    %cst_235 = arith.constant 0.000000e+00 : f32
    %626 = vector.broadcast %cst_235 : f32 to vector<2x16xf32>
    %627 = arith.cmpf ogt, %625, %626 : vector<2x16xf32>
    %cst_236 = arith.constant 0.000000e+00 : f32
    %628 = vector.broadcast %cst_236 : f32 to vector<2x16xf32>
    %629 = arith.minimumf %625, %628 : vector<2x16xf32>
    %630 = math.exp %629 : vector<2x16xf32>
    %cst_237 = arith.constant 1.000000e+00 : f32
    %631 = vector.broadcast %cst_237 : f32 to vector<2x16xf32>
    %632 = arith.subf %630, %631 : vector<2x16xf32>
    %cst_238 = arith.constant 1.67326319 : f32
    %633 = vector.broadcast %cst_238 : f32 to vector<2x16xf32>
    %634 = arith.mulf %633, %632 : vector<2x16xf32>
    %635 = arith.select %627, %625, %634 : vector<2x16xi1>, vector<2x16xf32>
    %cst_239 = arith.constant 1.05070102 : f32
    %636 = vector.broadcast %cst_239 : f32 to vector<2x16xf32>
    %637 = arith.mulf %636, %635 : vector<2x16xf32>
    %638 = arith.truncf %637 : vector<2x16xf32> to vector<2x16xbf16>
    %c0_240 = arith.constant 0 : index
    %c0_241 = arith.constant 0 : index
    %639 = vector.load %arg12[%c0_240, %c0_241] : memref<16x24xbf16, #tpu.memory_space<vmem>>, vector<16x24xbf16>
    %cst_242 = arith.constant dense<0.000000e+00> : vector<2x24xf32>
    %640 = tpu.matmul %638, %639, %cst_242 {dimension_numbers = #tpu.dot_dimension_numbers<[1], [0], [0], [1], [0, 0, 1, 1], [], []>} : vector<2x16xbf16>, vector<16x24xbf16>, vector<2x24xf32> -> vector<2x24xf32>
    %c0_243 = arith.constant 0 : index
    %c0_244 = arith.constant 0 : index
    %641 = vector.load %arg13[%c0_243, %c0_244] : memref<1x24xf32, #tpu.memory_space<vmem>>, vector<1x24xf32>
    %642 = vector.broadcast %641 : vector<1x24xf32> to vector<2x24xf32>
    %643 = arith.addf %640, %642 : vector<2x24xf32>
    %cst_245 = arith.constant 0.000000e+00 : f32
    %644 = vector.broadcast %cst_245 : f32 to vector<2x24xf32>
    %645 = arith.maximumf %643, %644 : vector<2x24xf32>
    %c0_246 = arith.constant 0 : index
    %c0_247 = arith.constant 0 : index
    %646 = vector.load %arg14[%c0_246, %c0_247] : memref<2x24xf32, #tpu.memory_space<vmem>>, vector<2x24xf32>
    tpu.vector_store %arg14[%c0_246, %c0_247], %645 {strides = array<i32>} : memref<2x24xf32, #tpu.memory_space<vmem>>, vector<2x24xf32>,
    return
  }
}

</mosaic_0001>

<llo_original>
// kernel: tpu_custom_call.1
$region0: #{tpu_custom_call.1}
  #allocation0 [shape = 'u32[]', space=smem, size = 0x4, offset = 0x4, fixed_abs, tag = 'smem constant byte address 0x4 - core index']
  #allocation1 [shape = 'u32[144,128]{1,0:T(1,128)}', space=vmem, size = 0x12000, scoped, tag = 'internal scratch']
  #allocation2 [shape = 'f32[2,8,2,32]{3,2,1,0:T(2,128)}', space=vmem, size = 0x4000, scoped, tag = 'scratch operand']
  %s0 = inlined_call_operand.vmem [shape: bf16[16,16], index: 0, kind: input, shape index: {}]
  %s1 = inlined_call_operand.vmem [shape: f32[4,2,32], index: 1, kind: input, shape index: {}]
  %s2 = inlined_call_operand.vmem [shape: bf16[16,192], index: 2, kind: input, shape index: {}]
  %s3 = inlined_call_operand.vmem [shape: f32[1,192], index: 3, kind: input, shape index: {}]
  %s4 = inlined_call_operand.hbm [shape: bf16[64,192], index: 4, kind: input, shape index: {}]
  %s5 = inlined_call_operand.vmem [shape: f32[1,64], index: 5, kind: input, shape index: {}]
  %s6 = inlined_call_operand.hbm [shape: bf16[64,192], index: 6, kind: input, shape index: {}]
  %s7 = inlined_call_operand.vmem [shape: f32[1,192], index: 7, kind: input, shape index: {}]
  %s8 = inlined_call_operand.hbm [shape: bf16[64,192], index: 8, kind: input, shape index: {}]
  %s9 = inlined_call_operand.vmem [shape: f32[1,64], index: 9, kind: input, shape index: {}]
  %s10 = inlined_call_operand.vmem [shape: bf16[64,16], index: 10, kind: input, shape index: {}]
  %s11 = inlined_call_operand.vmem [shape: f32[1,16], index: 11, kind: input, shape index: {}]
  %s12 = inlined_call_operand.vmem [shape: bf16[16,24], index: 12, kind: input, shape index: {}]
  %s13 = inlined_call_operand.vmem [shape: f32[1,24], index: 13, kind: input, shape index: {}]
  %s14 = inlined_call_operand.hbm [shape: f32[2,24], index: 14, kind: output, shape index: {0}]
  %s15 = inlined_call_operand.hbm [shape: f32[4,2,32], index: 15, kind: output, shape index: {1}]
  %16 = xla_tuple %s14, %s15
  %s17 = sld [smem:[#allocation0]]
  $region86: #{tpu_custom_call.1} parent=0
    _
  %s19 = ssub.s32 1, %s17
  %s20 = scalar_select 0, %s19, %s17
  $region1: #{tpu_custom_call.1} parent=0
    #allocation3 [shape = 'u8[32768]{0}', space=vmem, size = 0x8000, scoped, tag = 'input window, operand 4, single buffered']
    #allocation4 [shape = 's32[1]{0}', space=sflag, size = 0x4, scoped, tag = 'scoped memory for tpu_custom_call.1']
    #allocation5 [shape = 's32[1]{0}', space=sflag, size = 0x4, scoped, tag = 'scoped memory for tpu_custom_call.1']
    #allocation6 [shape = 'u8[32768]{0}', space=vmem, size = 0x8000, scoped, tag = 'input window, operand 6, single buffered']
    #allocation7 [shape = 's32[1]{0}', space=sflag, size = 0x4, scoped, tag = 'scoped memory for tpu_custom_call.1']
    #allocation8 [shape = 'u8[32768]{0}', space=vmem, size = 0x8000, scoped, tag = 'input window, operand 8, single buffered']
    #allocation9 [shape = 'u8[1024]{0}', space=vmem, size = 0x400, scoped, tag = 'output window, operand 0, single buffered']
    #allocation10 [shape = 'u8[4096]{0}', space=vmem, size = 0x1000, scoped, tag = 'output window, operand 1, single buffered']
    #allocation11 [shape = 's32[1]{0}', space=sflag, size = 0x4, scoped, tag = 'scoped memory for tpu_custom_call.1']
    %21 = vsyncpa [#allocation4], 0
    %22 = vsyncpa [#allocation7], 0
    %23 = vsyncpa [#allocation5], 0
    %24 = vsyncpa [#allocation11], 0
    // Predicated region
    $region2: #{tpu_custom_call.1} parent=1 // pred_check
      _
    $region3: #{tpu_custom_call.1} parent=1 // pred_check_branch
      %26 = sbr.rel (0) target = $region5
    $region4: #{tpu_custom_call.1} parent=1 // pred_region
      _
    $region5: #{tpu_custom_call.1} parent=1 // pred_fallthru
      _
    // Predicated region
    $region6: #{tpu_custom_call.1} parent=1 // pred_check
      _
    $region7: #{tpu_custom_call.1} parent=1 // pred_check_branch
      %28 = sbr.rel (0) target = $region9
    $region8: #{tpu_custom_call.1} parent=1 // pred_region
      _
    $region9: #{tpu_custom_call.1} parent=1 // pred_fallthru
      _
    // Predicated region
    $region10: #{tpu_custom_call.1} parent=1 // pred_check
      _
    $region11: #{tpu_custom_call.1} parent=1 // pred_check_branch
      %30 = sbr.rel (0) target = $region13
    $region12: #{tpu_custom_call.1} parent=1 // pred_region
      _
    $region13: #{tpu_custom_call.1} parent=1 // pred_fallthru
      _
    // Predicated region
    $region14: #{tpu_custom_call.1} parent=1 // pred_check
      _
    $region15: #{tpu_custom_call.1} parent=1 // pred_check_branch
      %32 = sbr.rel (0) target = $region17
    $region16: #{tpu_custom_call.1} parent=1 // pred_region
      _
    $region17: #{tpu_custom_call.1} parent=1 // pred_fallthru
      _
    // Predicated region
    $region18: #{tpu_custom_call.1} parent=1 // pred_check
      _
    $region19: #{tpu_custom_call.1} parent=1 // pred_check_branch
      %34 = sbr.rel (0) target = $region21
    $region20: #{tpu_custom_call.1} parent=1 // pred_region
      %s36 = ssub.s32 1024, 1024
      %37 = vsyncadd [#allocation4], %s36
      %s38 = sshll.u32 [#allocation3], 4
      %s39 = int_to_ptr.vmem [resolvable:$true] %s38
      %44 = dma.hbm_to_vmem [thread:$0]  %s4, 1024, %s39, [#allocation4], 128, 128, 8
    $region21: #{tpu_custom_call.1} parent=1 // pred_fallthru
      _
    // Predicated region
    $region22: #{tpu_custom_call.1} parent=1 // pred_check
      _
    $region23: #{tpu_custom_call.1} parent=1 // pred_check_branch
      %46 = sbr.rel (0) target = $region25
    $region24: #{tpu_custom_call.1} parent=1 // pred_region
      _
    $region25: #{tpu_custom_call.1} parent=1 // pred_fallthru
      _
    // Predicated region
    $region26: #{tpu_custom_call.1} parent=1 // pred_check
      _
    $region27: #{tpu_custom_call.1} parent=1 // pred_check_branch
      %48 = sbr.rel (0) target = $region29
    $region28: #{tpu_custom_call.1} parent=1 // pred_region
      %s50 = ssub.s32 1024, 1024
      %51 = vsyncadd [#allocation7], %s50
      %s52 = sshll.u32 [#allocation6], 4
      %s53 = int_to_ptr.vmem [resolvable:$true] %s52
      %58 = dma.hbm_to_vmem [thread:$0]  %s6, 1024, %s53, [#allocation7], 128, 128, 8
    $region29: #{tpu_custom_call.1} parent=1 // pred_fallthru
      _
    // Predicated region
    $region30: #{tpu_custom_call.1} parent=1 // pred_check
      _
    $region31: #{tpu_custom_call.1} parent=1 // pred_check_branch
      %60 = sbr.rel (0) target = $region33
    $region32: #{tpu_custom_call.1} parent=1 // pred_region
      _
    $region33: #{tpu_custom_call.1} parent=1 // pred_fallthru
      _
    // Predicated region
    $region34: #{tpu_custom_call.1} parent=1 // pred_check
      _
    $region35: #{tpu_custom_call.1} parent=1 // pred_check_branch
      %62 = sbr.rel (0) target = $region37
    $region36: #{tpu_custom_call.1} parent=1 // pred_region
      %s64 = ssub.s32 1024, 1024
      %65 = vsyncadd [#allocation7], %s64
      %s66 = sshll.u32 [#allocation8], 4
      %s67 = int_to_ptr.vmem [resolvable:$true] %s66
      %72 = dma.hbm_to_vmem [thread:$0]  %s8, 1024, %s67, [#allocation7], 128, 128, 8
    $region37: #{tpu_custom_call.1} parent=1 // pred_fallthru
      _
    // Predicated region
    $region38: #{tpu_custom_call.1} parent=1 // pred_check
      _
    $region39: #{tpu_custom_call.1} parent=1 // pred_check_branch
      %74 = sbr.rel (0) target = $region41
    $region40: #{tpu_custom_call.1} parent=1 // pred_region
      _
    $region41: #{tpu_custom_call.1} parent=1 // pred_fallthru
      _
    // Predicated region
    $region42: #{tpu_custom_call.1} parent=1 // pred_check
      _
    $region43: #{tpu_custom_call.1} parent=1 // pred_check_branch
      %76 = sbr.rel (0) target = $region45
    $region44: #{tpu_custom_call.1} parent=1 // pred_region
      _
    $region45: #{tpu_custom_call.1} parent=1 // pred_fallthru
      _
    // Predicated region
    $region46: #{tpu_custom_call.1} parent=1 // pred_check
      _
    $region47: #{tpu_custom_call.1} parent=1 // pred_check_branch
      %78 = sbr.rel (0) target = $region49
    $region48: #{tpu_custom_call.1} parent=1 // pred_region
      _
    $region49: #{tpu_custom_call.1} parent=1 // pred_fallthru
      _
    // Predicated region
    $region50: #{tpu_custom_call.1} parent=1 // pred_check
      _
    $region51: #{tpu_custom_call.1} parent=1 // pred_check_branch
      %80 = sbr.rel (0) target = $region53
    $region52: #{tpu_custom_call.1} parent=1 // pred_region
      _
    $region53: #{tpu_custom_call.1} parent=1 // pred_fallthru
      _
    // Predicated region
    $region54: #{tpu_custom_call.1} parent=1 // pred_check
      _
    $region55: #{tpu_custom_call.1} parent=1 // pred_check_branch
      %82 = sbr.rel (0) target = $region57
    $region56: #{tpu_custom_call.1} parent=1 // pred_region
      _
    $region57: #{tpu_custom_call.1} parent=1 // pred_fallthru
      _
    // Predicated region
    $region58: #{tpu_custom_call.1} parent=1 // pred_check
      _
    $region59: #{tpu_custom_call.1} parent=1 // pred_check_branch
      %84 = sbr.rel (0) target = $region61
    $region60: #{tpu_custom_call.1} parent=1 // pred_region
      %85 = dma.done [#allocation4], 1024
    $region61: #{tpu_custom_call.1} parent=1 // pred_fallthru
      _
    // Predicated region
    $region62: #{tpu_custom_call.1} parent=1 // pred_check
      _
    $region63: #{tpu_custom_call.1} parent=1 // pred_check_branch
      %87 = sbr.rel (0) target = $region65
    $region64: #{tpu_custom_call.1} parent=1 // pred_region
      %88 = dma.done [#allocation7], 1024
    $region65: #{tpu_custom_call.1} parent=1 // pred_fallthru
      _
    // Predicated region
    $region66: #{tpu_custom_call.1} parent=1 // pred_check
      _
    $region67: #{tpu_custom_call.1} parent=1 // pred_check_branch
      %90 = sbr.rel (0) target = $region69
    $region68: #{tpu_custom_call.1} parent=1 // pred_region
      %91 = dma.done [#allocation7], 1024
    $region69: #{tpu_custom_call.1} parent=1 // pred_fallthru
      _
    %v93 = vlaneseq
    %v94 = vand.u32 %v93, 127
    %v95 = vadd.s32 %v94, 128
    %vm96 = vcmp.lt.s32.totalorder %v94, 0
    %v97 = vsub.s32 0, %v94
    %v98 = vsel %vm96, %v97, %v94
    %v99 = vshrl.u32 %v98, 6
    %v100 = vand.u32 %v98, 63
    %v101 = vsub.s32 0, %v100
    %v102 = vsel %vm96, %v101, %v100
    %vm103 = vcmp.lt.s32.totalorder %v95, 0
    %v104 = vsub.s32 0, %v95
    %v105 = vsel %vm103, %v104, %v95
    %v106 = vshrl.u32 %v105, 6
    %v107 = vand.u32 %v105, 63
    %v108 = vsub.s32 0, %v107
    %v109 = vsel %vm103, %v108, %v107
    %vm110 = vcmp.ne.s32.totalorder %v102, 0
    %vm111 = vcmp.ne.s32.totalorder %v109, 0
    %vm112 = vcmp.lt.s32.totalorder %v102, 0
    %vm113 = vcmp.lt.s32.totalorder %v109, 0
    %vm114 = vmand %vm112, %vm110
    %vm115 = vmand %vm113, %vm111
    %v116 = vadd.s32 %v102, 64
    %v117 = vadd.s32 %v109, 64
    %v118 = vsel %vm114, %v116, %v102
    %v119 = vsel %vm115, %v117, %v109
    %vm120 = vcmp.lt.s32.totalorder %v118, 32
    %vm121 = vcmp.lt.s32.totalorder %v119, 32
    %v122 = vld [vmem:[%s0] sm:$0xf]
    %v123 = vld [vmem:[%s0 + $0x4] sm:$0xf]
    %v124 = vld [vmem:[%s2] sm:$0xff]
    %v125 = vld [vmem:[%s2 + $0x8] sm:$0xff]
    %v126 = vld [vmem:[%s3] sm:$0x3]
    %v128 = vlaneseq
    %v129 = vshrl.u32 %v128, 7
    %v130 = vsub.s32 0, %v129
    %v131 = vrot.slane %v126, %v130
    %v132 = vlaneseq
    %v133 = vshrl.u32 %v132, 7
    %v134 = vsub.s32 1, %v133
    %v135 = vrot.slane %v126, %v134
    %v140 = vunpack.c.l.b16 %v122
    %v141 = vunpack.c.l.b16 %v123
    %v142 = vpack.c.b16 %v141, %v140
    %v145 = vunpack.c.l.b16 %v124
    %v146 = vunpack.c.h.b16 %v124
    %v147 = vunpack.c.l.b16 %v125
    %v148 = vunpack.c.h.b16 %v125
    %v149 = vpack.c.b16 %v147, %v145
    %v150 = vpack.c.b16 %v148, %v146
    %vm153 = vcmask 130048
    %v155 = vsel %vm153, %v142, 0
    %157 = vmatprep.subr.bf16.mxu0 0
    %158 = vmatpush1.bf16.msra.mxu0 0
    %159 = vmatprep.subr.bf16.mxu0 0
    %160 = vmatpush1.bf16.msra.mxu0 0
    %161 = vmatprep.subr.bf16.mxu0 0
    %162 = vmatpush1.bf16.msra.mxu0 0
    %163 = vmatprep.subr.bf16.mxu0 0
    %164 = vmatpush1.bf16.msra.mxu0 0
    %165 = vmatprep.subr.bf16.mxu0 0
    %166 = vmatpush1.bf16.msra.mxu0 0
    %167 = vmatprep.subr.bf16.mxu0 0
    %168 = vmatpush1.bf16.msra.mxu0 0
    %169 = vmatprep.subr.bf16.mxu0 0
    %170 = vmatpush1.bf16.msra.mxu0 0
    %171 = vmatprep.subr.bf16.mxu0 %v150
    %172 = vmatpush1.bf16.msra.mxu0 %v149
    %173 = vmatprep.subr.bf16.mxu0 0
    %174 = vmatpush2.bf16.msra.mxu0 0
    %175 = vmatprep.subr.bf16.mxu0 0
    %176 = vmatpush2.bf16.msra.mxu0 0
    %177 = vmatprep.subr.bf16.mxu0 0
    %178 = vmatpush2.bf16.msra.mxu0 0
    %179 = vmatprep.subr.bf16.mxu0 0
    %180 = vmatpush2.bf16.msra.mxu0 0
    %181 = vmatprep.subr.bf16.mxu0 0
    %182 = vmatpush2.bf16.msra.mxu0 0
    %183 = vmatprep.subr.bf16.mxu0 0
    %184 = vmatpush2.bf16.msra.mxu0 0
    %185 = vmatprep.subr.bf16.mxu0 0
    %186 = vmatpush2.bf16.msra.mxu0 0
    %187 = vmatprep.subr.bf16.mxu0 0
    %188 = vmatpush2.bf16.msra.mxu0 0
    %189 = vmatprep.mubr.bf16.mxu0 0
    %190 = vmatmul.mubr.bf16.gmra.mxu0 %v155
    %v191 = vpop.f32.mrf.mxu0
    %v192 = vadd.f32 %v131, %v191
    %v193 = vpop.f32.mrf.mxu0
    %v194 = vadd.f32 %v135, %v193
    %v195 = vpop.f32.mrf.mxu0
    %v196 = vadd.f32 %v131, %v195
    %v197 = vpop.f32.mrf.mxu0
    %v198 = vadd.f32 %v135, %v197
    %199 = vdwg.mxu0
    %v202 = vrot.slane %v196, 6
    %v203 = vrot.slane %v198, 6
    %v206 = vsel %vm120, %v192, %v202
    %v207 = vsel %vm121, %v194, %v203
    %v208 = vrot.slane %v196, 2
    %v209 = vrot.slane %v198, 2
    %v212 = vsel %vm120, %v192, %v208
    %v213 = vsel %vm121, %v194, %v209
    %v216 = vrot.slane %v192, 6
    %v217 = vrot.slane %v194, 6
    %v220 = vsel %vm120, %v196, %v216
    %v221 = vsel %vm121, %v198, %v217
    %v222 = vrot.slane %v192, 2
    %v223 = vrot.slane %v194, 2
    %v226 = vsel %vm120, %v196, %v222
    %v227 = vsel %vm121, %v198, %v223
    %v228 = vld [vmem:[#allocation3] sm:$0xff]
    %v229 = vld [vmem:[#allocation3 + $0x8] sm:$0xff]
    %v230 = vld [vmem:[#allocation3 + $0x10] sm:$0xff]
    %v231 = vld [vmem:[#allocation3 + $0x18] sm:$0xff]
    %v232 = vld [vmem:[#allocation3 + $0x20] sm:$0xff]
    %v233 = vld [vmem:[#allocation3 + $0x28] sm:$0xff]
    %v234 = vld [vmem:[#allocation3 + $0x30] sm:$0xff]
    %v235 = vld [vmem:[#allocation3 + $0x38] sm:$0xff]
    %v236 = vld [vmem:[%s5] sm:$0x1]
    %v238 = vlaneseq
    %v239 = vshrl.u32 %v238, 7
    %v240 = vsub.s32 0, %v239
    %v241 = vrot.slane %v236, %v240
    %v243 = vld [vmem:[%s1] sm:$0x3]
    %s244 = scalar_lea.vmem %s1, 2
    %v245 = vld [vmem:[%s244] sm:$0x3]
    %247 = vrot.lane.b32.xlu0 %v245, 32
    %v248 = vpop.permute.xlu0 %247
    %vm250 = vcmask 261120
    %v251 = vsel %vm250, %v243, %v248
    %v252 = vpack.c.bf16 %v251, %v251
    %v261 = vunpack.c.l.b16 %v228
    %v262 = vunpack.c.h.b16 %v228
    %v263 = vunpack.c.l.b16 %v229
    %v264 = vunpack.c.h.b16 %v229
    %v265 = vunpack.c.l.b16 %v230
    %v266 = vunpack.c.h.b16 %v230
    %v267 = vunpack.c.l.b16 %v231
    %v268 = vunpack.c.h.b16 %v231
    %v269 = vunpack.c.l.b16 %v232
    %v270 = vunpack.c.h.b16 %v232
    %v271 = vunpack.c.l.b16 %v233
    %v272 = vunpack.c.h.b16 %v233
    %v273 = vunpack.c.l.b16 %v234
    %v274 = vunpack.c.h.b16 %v234
    %v275 = vunpack.c.l.b16 %v235
    %v276 = vunpack.c.h.b16 %v235
    %v277 = vpack.c.b16 %v263, %v261
    %v278 = vpack.c.b16 %v264, %v262
    %v279 = vpack.c.b16 %v267, %v265
    %v280 = vpack.c.b16 %v268, %v266
    %v281 = vpack.c.b16 %v271, %v269
    %v282 = vpack.c.b16 %v272, %v270
    %v283 = vpack.c.b16 %v275, %v273
    %v284 = vpack.c.b16 %v276, %v274
    %vm293 = vcmask 523264
    %v295 = vsel %vm293, %v252, 0
    %297 = vmatprep.subr.bf16.mxu0 0
    %298 = vmatpush1.bf16.msra.mxu0 0
    %299 = vmatprep.subr.bf16.mxu0 0
    %300 = vmatpush1.bf16.msra.mxu0 0
    %301 = vmatprep.subr.bf16.mxu0 0
    %302 = vmatpush1.bf16.msra.mxu0 0
    %303 = vmatprep.subr.bf16.mxu0 0
    %304 = vmatpush1.bf16.msra.mxu0 0
    %305 = vmatprep.subr.bf16.mxu0 %v284
    %306 = vmatpush1.bf16.msra.mxu0 %v283
    %307 = vmatprep.subr.bf16.mxu0 %v282
    %308 = vmatpush1.bf16.msra.mxu0 %v281
    %309 = vmatprep.subr.bf16.mxu0 %v280
    %310 = vmatpush1.bf16.msra.mxu0 %v279
    %311 = vmatprep.subr.bf16.mxu0 %v278
    %312 = vmatpush1.bf16.msra.mxu0 %v277
    %313 = vmatprep.subr.bf16.mxu0 0
    %314 = vmatpush2.bf16.msra.mxu0 0
    %315 = vmatprep.subr.bf16.mxu0 0
    %316 = vmatpush2.bf16.msra.mxu0 0
    %317 = vmatprep.subr.bf16.mxu0 0
    %318 = vmatpush2.bf16.msra.mxu0 0
    %319 = vmatprep.subr.bf16.mxu0 0
    %320 = vmatpush2.bf16.msra.mxu0 0
    %321 = vmatprep.subr.bf16.mxu0 0
    %322 = vmatpush2.bf16.msra.mxu0 0
    %323 = vmatprep.subr.bf16.mxu0 0
    %324 = vmatpush2.bf16.msra.mxu0 0
    %325 = vmatprep.subr.bf16.mxu0 0
    %326 = vmatpush2.bf16.msra.mxu0 0
    %327 = vmatprep.subr.bf16.mxu0 0
    %328 = vmatpush2.bf16.msra.mxu0 0
    %329 = vmatprep.mubr.bf16.mxu0 0
    %330 = vmatmul.mubr.bf16.gmra.mxu0 %v295
    %v331 = vpop.f32.mrf.mxu0
    %v332 = vadd.f32 0.0, %v331
    %v333 = vpop.f32.mrf.mxu0
    %v334 = vadd.f32 0.0, %v333
    %v335 = vpop.f32.mrf.mxu0
    %v336 = vpop.f32.mrf.mxu0
    %337 = vdwg.mxu0
    %v338 = vadd.f32 %v206, %v332
    %v339 = vxor.u32 %v338, 2147483648
    %v340 = vmul.f32 %v339, 1.442695
    %v341 = vpow.pop %v340
    %v342 = vadd.f32 %v341, 1.0
    %v343 = vrcp.pop %v342
    %v344 = vmul.f32 1.0, %v343
    %v345 = vadd.f32 %v334, %v241
    %v346 = vmul.f32 %v344, %v345
    %v347 = vadd.f32 %v207, %v346
    %v348 = vtanh.pop %v347
    %v349 = vsub.f32 1.0, %v344
    %351 = vrot.lane.b32.xlu0 %v348, 64
    %v352 = vpop.permute.xlu0 %351
    %v354 = vmul.f32 %v349, %v352
    %356 = vrot.lane.b32.xlu0 %v251, 64
    %v357 = vpop.permute.xlu0 %356
    %v359 = vmul.f32 %v344, %v357
    %v360 = vadd.f32 %v354, %v359
    %362 = vrot.lane.b32.xlu0 %v360, 64
    %v363 = vpop.permute.xlu0 %362
    %vm365 = vcmask 254976
    %366 = vst.msk [vmem:[#allocation2] sm:$0x3] %vm365, %v363
    %367 = vrot.lane.b32.xlu0 %v360, 32
    %v368 = vpop.permute.xlu0 %367
    %s370 = scalar_lea.vmem [#allocation2], 30
    %371 = vst.msk [vmem:[%s370] sm:$0x3] %vm365, %v368
    %v372 = vpack.c.bf16 %v360, %v360
    %374 = vrot.lane.b32.xlu0 %v372, 64
    %v375 = vpop.permute.xlu0 %374
    %v377 = vsel %vm293, %v375, 0
    %379 = vmatprep.subr.bf16.mxu0 0
    %380 = vmatpush1.bf16.msra.mxu0 0
    %381 = vmatprep.subr.bf16.mxu0 0
    %382 = vmatpush1.bf16.msra.mxu0 0
    %383 = vmatprep.subr.bf16.mxu0 0
    %384 = vmatpush1.bf16.msra.mxu0 0
    %385 = vmatprep.subr.bf16.mxu0 0
    %386 = vmatpush1.bf16.msra.mxu0 0
    %387 = vmatprep.subr.bf16.mxu0 %v284
    %388 = vmatpush1.bf16.msra.mxu0 %v283
    %389 = vmatprep.subr.bf16.mxu0 %v282
    %390 = vmatpush1.bf16.msra.mxu0 %v281
    %391 = vmatprep.subr.bf16.mxu0 %v280
    %392 = vmatpush1.bf16.msra.mxu0 %v279
    %393 = vmatprep.subr.bf16.mxu0 %v278
    %394 = vmatpush1.bf16.msra.mxu0 %v277
    %395 = vmatprep.subr.bf16.mxu0 0
    %396 = vmatpush2.bf16.msra.mxu0 0
    %397 = vmatprep.subr.bf16.mxu0 0
    %398 = vmatpush2.bf16.msra.mxu0 0
    %399 = vmatprep.subr.bf16.mxu0 0
    %400 = vmatpush2.bf16.msra.mxu0 0
    %401 = vmatprep.subr.bf16.mxu0 0
    %402 = vmatpush2.bf16.msra.mxu0 0
    %403 = vmatprep.subr.bf16.mxu0 0
    %404 = vmatpush2.bf16.msra.mxu0 0
    %405 = vmatprep.subr.bf16.mxu0 0
    %406 = vmatpush2.bf16.msra.mxu0 0
    %407 = vmatprep.subr.bf16.mxu0 0
    %408 = vmatpush2.bf16.msra.mxu0 0
    %409 = vmatprep.subr.bf16.mxu0 0
    %410 = vmatpush2.bf16.msra.mxu0 0
    %411 = vmatprep.mubr.bf16.mxu0 0
    %412 = vmatmul.mubr.bf16.gmra.mxu0 %v377
    %v413 = vpop.f32.mrf.mxu0
    %v414 = vadd.f32 0.0, %v413
    %v415 = vpop.f32.mrf.mxu0
    %v416 = vadd.f32 0.0, %v415
    %v417 = vpop.f32.mrf.mxu0
    %v418 = vpop.f32.mrf.mxu0
    %419 = vdwg.mxu0
    %v421 = vrot.slane %v414, 6
    %v423 = vadd.f32 %v212, %v421
    %v424 = vxor.u32 %v423, 2147483648
    %v425 = vmul.f32 %v424, 1.442695
    %v426 = vpow.pop %v425
    %v427 = vadd.f32 %v426, 1.0
    %v428 = vrcp.pop %v427
    %v429 = vmul.f32 1.0, %v428
    %v430 = vadd.f32 %v416, %v241
    %v432 = vrot.slane %v430, 6
    %v434 = vmul.f32 %v429, %v432
    %v435 = vadd.f32 %v213, %v434
    %v436 = vtanh.pop %v435
    %v437 = vsub.f32 1.0, %v429
    %439 = vrot.lane.b32.xlu0 %v436, 64
    %v440 = vpop.permute.xlu0 %439
    %v442 = vmul.f32 %v437, %v440
    %v443 = vrot.slane %v360, 6
    %v445 = vmul.f32 %v429, %v443
    %v446 = vadd.f32 %v442, %v445
    %448 = vrot.lane.b32.xlu0 %v446, 64
    %v449 = vpop.permute.xlu0 %448
    %s451 = scalar_lea.vmem [#allocation2], 2
    %vm452 = vcmask 257026
    %453 = vst.msk [vmem:[%s451 - $0x2] sm:$0xc] %vm452, %v449
    %454 = vrot.lane.b32.xlu0 %v446, 32
    %v455 = vpop.permute.xlu0 %454
    %s457 = scalar_lea.vmem [#allocation2], 28
    %458 = vst.msk [vmem:[%s457 - $0x2] sm:$0xc] %vm452, %v455
    %v459 = vpack.c.bf16 %v446, %v446
    %v461 = vrot.slane %v459, 1
    %462 = vrot.lane.b32.xlu0 %v461, 64
    %v463 = vpop.permute.xlu0 %462
    %v465 = vsel %vm293, %v463, 0
    %467 = vmatprep.subr.bf16.mxu0 0
    %468 = vmatpush1.bf16.msra.mxu0 0
    %469 = vmatprep.subr.bf16.mxu0 0
    %470 = vmatpush1.bf16.msra.mxu0 0
    %471 = vmatprep.subr.bf16.mxu0 0
    %472 = vmatpush1.bf16.msra.mxu0 0
    %473 = vmatprep.subr.bf16.mxu0 0
    %474 = vmatpush1.bf16.msra.mxu0 0
    %475 = vmatprep.subr.bf16.mxu0 %v284
    %476 = vmatpush1.bf16.msra.mxu0 %v283
    %477 = vmatprep.subr.bf16.mxu0 %v282
    %478 = vmatpush1.bf16.msra.mxu0 %v281
    %479 = vmatprep.subr.bf16.mxu0 %v280
    %480 = vmatpush1.bf16.msra.mxu0 %v279
    %481 = vmatprep.subr.bf16.mxu0 %v278
    %482 = vmatpush1.bf16.msra.mxu0 %v277
    %483 = vmatprep.subr.bf16.mxu0 0
    %484 = vmatpush2.bf16.msra.mxu0 0
    %485 = vmatprep.subr.bf16.mxu0 0
    %486 = vmatpush2.bf16.msra.mxu0 0
    %487 = vmatprep.subr.bf16.mxu0 0
    %488 = vmatpush2.bf16.msra.mxu0 0
    %489 = vmatprep.subr.bf16.mxu0 0
    %490 = vmatpush2.bf16.msra.mxu0 0
    %491 = vmatprep.subr.bf16.mxu0 0
    %492 = vmatpush2.bf16.msra.mxu0 0
    %493 = vmatprep.subr.bf16.mxu0 0
    %494 = vmatpush2.bf16.msra.mxu0 0
    %495 = vmatprep.subr.bf16.mxu0 0
    %496 = vmatpush2.bf16.msra.mxu0 0
    %497 = vmatprep.subr.bf16.mxu0 0
    %498 = vmatpush2.bf16.msra.mxu0 0
    %499 = vmatprep.mubr.bf16.mxu0 0
    %500 = vmatmul.mubr.bf16.gmra.mxu0 %v465
    %v501 = vpop.f32.mrf.mxu0
    %v502 = vadd.f32 0.0, %v501
    %v503 = vpop.f32.mrf.mxu0
    %v504 = vadd.f32 0.0, %v503
    %v505 = vpop.f32.mrf.mxu0
    %v506 = vpop.f32.mrf.mxu0
    %507 = vdwg.mxu0
    %v509 = vrot.slane %v502, 4
    %v511 = vadd.f32 %v206, %v509
    %v512 = vxor.u32 %v511, 2147483648
    %v513 = vmul.f32 %v512, 1.442695
    %v514 = vpow.pop %v513
    %v515 = vadd.f32 %v514, 1.0
    %v516 = vrcp.pop %v515
    %v517 = vmul.f32 1.0, %v516
    %v518 = vadd.f32 %v504, %v241
    %v520 = vrot.slane %v518, 4
    %v522 = vmul.f32 %v517, %v520
    %v523 = vadd.f32 %v207, %v522
    %v524 = vtanh.pop %v523
    %v525 = vsub.f32 1.0, %v517
    %527 = vrot.lane.b32.xlu0 %v524, 64
    %v528 = vpop.permute.xlu0 %527
    %v530 = vmul.f32 %v525, %v528
    %v531 = vrot.slane %v446, 6
    %v533 = vmul.f32 %v517, %v531
    %v534 = vadd.f32 %v530, %v533
    %536 = vrot.lane.b32.xlu0 %v534, 64
    %v537 = vpop.permute.xlu0 %536
    %s539 = scalar_lea.vmem [#allocation2], 4
    %vm540 = vcmask 259076
    %541 = vst.msk [vmem:[%s539 - $0x4] sm:$0x30] %vm540, %v537
    %542 = vrot.lane.b32.xlu0 %v534, 32
    %v543 = vpop.permute.xlu0 %542
    %s545 = scalar_lea.vmem [#allocation2], 26
    %546 = vst.msk [vmem:[%s545 - $0x4] sm:$0x30] %vm540, %v543
    %v547 = vpack.c.bf16 %v534, %v534
    %v549 = vrot.slane %v547, 2
    %550 = vrot.lane.b32.xlu0 %v549, 64
    %v551 = vpop.permute.xlu0 %550
    %v553 = vsel %vm293, %v551, 0
    %555 = vmatprep.subr.bf16.mxu0 0
    %556 = vmatpush1.bf16.msra.mxu0 0
    %557 = vmatprep.subr.bf16.mxu0 0
    %558 = vmatpush1.bf16.msra.mxu0 0
    %559 = vmatprep.subr.bf16.mxu0 0
    %560 = vmatpush1.bf16.msra.mxu0 0
    %561 = vmatprep.subr.bf16.mxu0 0
    %562 = vmatpush1.bf16.msra.mxu0 0
    %563 = vmatprep.subr.bf16.mxu0 %v284
    %564 = vmatpush1.bf16.msra.mxu0 %v283
    %565 = vmatprep.subr.bf16.mxu0 %v282
    %566 = vmatpush1.bf16.msra.mxu0 %v281
    %567 = vmatprep.subr.bf16.mxu0 %v280
    %568 = vmatpush1.bf16.msra.mxu0 %v279
    %569 = vmatprep.subr.bf16.mxu0 %v278
    %570 = vmatpush1.bf16.msra.mxu0 %v277
    %571 = vmatprep.subr.bf16.mxu0 0
    %572 = vmatpush2.bf16.msra.mxu0 0
    %573 = vmatprep.subr.bf16.mxu0 0
    %574 = vmatpush2.bf16.msra.mxu0 0
    %575 = vmatprep.subr.bf16.mxu0 0
    %576 = vmatpush2.bf16.msra.mxu0 0
    %577 = vmatprep.subr.bf16.mxu0 0
    %578 = vmatpush2.bf16.msra.mxu0 0
    %579 = vmatprep.subr.bf16.mxu0 0
    %580 = vmatpush2.bf16.msra.mxu0 0
    %581 = vmatprep.subr.bf16.mxu0 0
    %582 = vmatpush2.bf16.msra.mxu0 0
    %583 = vmatprep.subr.bf16.mxu0 0
    %584 = vmatpush2.bf16.msra.mxu0 0
    %585 = vmatprep.subr.bf16.mxu0 0
    %586 = vmatpush2.bf16.msra.mxu0 0
    %587 = vmatprep.mubr.bf16.mxu0 0
    %588 = vmatmul.mubr.bf16.gmra.mxu0 %v553
    %v589 = vpop.f32.mrf.mxu0
    %v590 = vadd.f32 0.0, %v589
    %v591 = vpop.f32.mrf.mxu0
    %v592 = vadd.f32 0.0, %v591
    %v593 = vpop.f32.mrf.mxu0
    %v594 = vpop.f32.mrf.mxu0
    %595 = vdwg.mxu0
    %v597 = vrot.slane %v590, 2
    %v599 = vadd.f32 %v212, %v597
    %v600 = vxor.u32 %v599, 2147483648
    %v601 = vmul.f32 %v600, 1.442695
    %v602 = vpow.pop %v601
    %v603 = vadd.f32 %v602, 1.0
    %v604 = vrcp.pop %v603
    %v605 = vmul.f32 1.0, %v604
    %v606 = vadd.f32 %v592, %v241
    %v608 = vrot.slane %v606, 2
    %v610 = vmul.f32 %v605, %v608
    %v611 = vadd.f32 %v213, %v610
    %v612 = vtanh.pop %v611
    %v613 = vsub.f32 1.0, %v605
    %615 = vrot.lane.b32.xlu0 %v612, 64
    %v616 = vpop.permute.xlu0 %615
    %v618 = vmul.f32 %v613, %v616
    %v619 = vrot.slane %v534, 6
    %v621 = vmul.f32 %v605, %v619
    %v622 = vadd.f32 %v618, %v621
    %624 = vrot.lane.b32.xlu0 %v622, 64
    %v625 = vpop.permute.xlu0 %624
    %s627 = scalar_lea.vmem [#allocation2], 6
    %vm628 = vcmask 261126
    %629 = vst.msk [vmem:[%s627 - $0x6] sm:$0xc0] %vm628, %v625
    %630 = vrot.lane.b32.xlu0 %v622, 32
    %v631 = vpop.permute.xlu0 %630
    %s633 = scalar_lea.vmem [#allocation2], 24
    %634 = vst.msk [vmem:[%s633 - $0x6] sm:$0xc0] %vm628, %v631
    %v635 = vpack.c.bf16 %v622, %v622
    %v637 = vrot.slane %v635, 3
    %638 = vrot.lane.b32.xlu0 %v637, 64
    %v639 = vpop.permute.xlu0 %638
    %v641 = vsel %vm293, %v639, 0
    %643 = vmatprep.subr.bf16.mxu0 0
    %644 = vmatpush1.bf16.msra.mxu0 0
    %645 = vmatprep.subr.bf16.mxu0 0
    %646 = vmatpush1.bf16.msra.mxu0 0
    %647 = vmatprep.subr.bf16.mxu0 0
    %648 = vmatpush1.bf16.msra.mxu0 0
    %649 = vmatprep.subr.bf16.mxu0 0
    %650 = vmatpush1.bf16.msra.mxu0 0
    %651 = vmatprep.subr.bf16.mxu0 %v284
    %652 = vmatpush1.bf16.msra.mxu0 %v283
    %653 = vmatprep.subr.bf16.mxu0 %v282
    %654 = vmatpush1.bf16.msra.mxu0 %v281
    %655 = vmatprep.subr.bf16.mxu0 %v280
    %656 = vmatpush1.bf16.msra.mxu0 %v279
    %657 = vmatprep.subr.bf16.mxu0 %v278
    %658 = vmatpush1.bf16.msra.mxu0 %v277
    %659 = vmatprep.subr.bf16.mxu0 0
    %660 = vmatpush2.bf16.msra.mxu0 0
    %661 = vmatprep.subr.bf16.mxu0 0
    %662 = vmatpush2.bf16.msra.mxu0 0
    %663 = vmatprep.subr.bf16.mxu0 0
    %664 = vmatpush2.bf16.msra.mxu0 0
    %665 = vmatprep.subr.bf16.mxu0 0
    %666 = vmatpush2.bf16.msra.mxu0 0
    %667 = vmatprep.subr.bf16.mxu0 0
    %668 = vmatpush2.bf16.msra.mxu0 0
    %669 = vmatprep.subr.bf16.mxu0 0
    %670 = vmatpush2.bf16.msra.mxu0 0
    %671 = vmatprep.subr.bf16.mxu0 0
    %672 = vmatpush2.bf16.msra.mxu0 0
    %673 = vmatprep.subr.bf16.mxu0 0
    %674 = vmatpush2.bf16.msra.mxu0 0
    %675 = vmatprep.mubr.bf16.mxu0 0
    %676 = vmatmul.mubr.bf16.gmra.mxu0 %v641
    %v677 = vpop.f32.mrf.mxu0
    %v678 = vadd.f32 0.0, %v677
    %v679 = vpop.f32.mrf.mxu0
    %v680 = vadd.f32 0.0, %v679
    %v681 = vpop.f32.mrf.mxu0
    %v682 = vpop.f32.mrf.mxu0
    %683 = vdwg.mxu0
    %v684 = vadd.f32 %v220, %v678
    %v685 = vxor.u32 %v684, 2147483648
    %v686 = vmul.f32 %v685, 1.442695
    %v687 = vpow.pop %v686
    %v688 = vadd.f32 %v687, 1.0
    %v689 = vrcp.pop %v688
    %v690 = vmul.f32 1.0, %v689
    %v691 = vadd.f32 %v680, %v241
    %v692 = vmul.f32 %v690, %v691
    %v693 = vadd.f32 %v221, %v692
    %v694 = vtanh.pop %v693
    %v695 = vsub.f32 1.0, %v690
    %697 = vrot.lane.b32.xlu0 %v694, 64
    %v698 = vpop.permute.xlu0 %697
    %v700 = vmul.f32 %v695, %v698
    %v701 = vrot.slane %v622, 6
    %v703 = vmul.f32 %v690, %v701
    %v704 = vadd.f32 %v700, %v703
    %706 = vrot.lane.b32.xlu0 %v704, 64
    %v707 = vpop.permute.xlu0 %706
    %s709 = scalar_lea.vmem [#allocation2], 8
    %710 = vst.msk [vmem:[%s709] sm:$0x3] %vm365, %v707
    %711 = vrot.lane.b32.xlu0 %v704, 32
    %v712 = vpop.permute.xlu0 %711
    %s714 = scalar_lea.vmem [#allocation2], 22
    %715 = vst.msk [vmem:[%s714] sm:$0x3] %vm365, %v712
    %v716 = vpack.c.bf16 %v704, %v704
    %718 = vrot.lane.b32.xlu0 %v716, 64
    %v719 = vpop.permute.xlu0 %718
    %v721 = vsel %vm293, %v719, 0
    %723 = vmatprep.subr.bf16.mxu0 0
    %724 = vmatpush1.bf16.msra.mxu0 0
    %725 = vmatprep.subr.bf16.mxu0 0
    %726 = vmatpush1.bf16.msra.mxu0 0
    %727 = vmatprep.subr.bf16.mxu0 0
    %728 = vmatpush1.bf16.msra.mxu0 0
    %729 = vmatprep.subr.bf16.mxu0 0
    %730 = vmatpush1.bf16.msra.mxu0 0
    %731 = vmatprep.subr.bf16.mxu0 %v284
    %732 = vmatpush1.bf16.msra.mxu0 %v283
    %733 = vmatprep.subr.bf16.mxu0 %v282
    %734 = vmatpush1.bf16.msra.mxu0 %v281
    %735 = vmatprep.subr.bf16.mxu0 %v280
    %736 = vmatpush1.bf16.msra.mxu0 %v279
    %737 = vmatprep.subr.bf16.mxu0 %v278
    %738 = vmatpush1.bf16.msra.mxu0 %v277
    %739 = vmatprep.subr.bf16.mxu0 0
    %740 = vmatpush2.bf16.msra.mxu0 0
    %741 = vmatprep.subr.bf16.mxu0 0
    %742 = vmatpush2.bf16.msra.mxu0 0
    %743 = vmatprep.subr.bf16.mxu0 0
    %744 = vmatpush2.bf16.msra.mxu0 0
    %745 = vmatprep.subr.bf16.mxu0 0
    %746 = vmatpush2.bf16.msra.mxu0 0
    %747 = vmatprep.subr.bf16.mxu0 0
    %748 = vmatpush2.bf16.msra.mxu0 0
    %749 = vmatprep.subr.bf16.mxu0 0
    %750 = vmatpush2.bf16.msra.mxu0 0
    %751 = vmatprep.subr.bf16.mxu0 0
    %752 = vmatpush2.bf16.msra.mxu0 0
    %753 = vmatprep.subr.bf16.mxu0 0
    %754 = vmatpush2.bf16.msra.mxu0 0
    %755 = vmatprep.mubr.bf16.mxu0 0
    %756 = vmatmul.mubr.bf16.gmra.mxu0 %v721
    %v757 = vpop.f32.mrf.mxu0
    %v758 = vadd.f32 0.0, %v757
    %v759 = vpop.f32.mrf.mxu0
    %v760 = vadd.f32 0.0, %v759
    %v761 = vpop.f32.mrf.mxu0
    %v762 = vpop.f32.mrf.mxu0
    %763 = vdwg.mxu0
    %v765 = vrot.slane %v758, 6
    %v767 = vadd.f32 %v226, %v765
    %v768 = vxor.u32 %v767, 2147483648
    %v769 = vmul.f32 %v768, 1.442695
    %v770 = vpow.pop %v769
    %v771 = vadd.f32 %v770, 1.0
    %v772 = vrcp.pop %v771
    %v773 = vmul.f32 1.0, %v772
    %v774 = vadd.f32 %v760, %v241
    %v776 = vrot.slane %v774, 6
    %v778 = vmul.f32 %v773, %v776
    %v779 = vadd.f32 %v227, %v778
    %v780 = vtanh.pop %v779
    %v781 = vsub.f32 1.0, %v773
    %783 = vrot.lane.b32.xlu0 %v780, 64
    %v784 = vpop.permute.xlu0 %783
    %v786 = vmul.f32 %v781, %v784
    %v787 = vrot.slane %v704, 6
    %v789 = vmul.f32 %v773, %v787
    %v790 = vadd.f32 %v786, %v789
    %792 = vrot.lane.b32.xlu0 %v790, 64
    %v793 = vpop.permute.xlu0 %792
    %s795 = scalar_lea.vmem [#allocation2], 10
    %796 = vst.msk [vmem:[%s795 - $0x2] sm:$0xc] %vm452, %v793
    %797 = vrot.lane.b32.xlu0 %v790, 32
    %v798 = vpop.permute.xlu0 %797
    %s800 = scalar_lea.vmem [#allocation2], 20
    %801 = vst.msk [vmem:[%s800 - $0x2] sm:$0xc] %vm452, %v798
    %v802 = vpack.c.bf16 %v790, %v790
    %v804 = vrot.slane %v802, 1
    %805 = vrot.lane.b32.xlu0 %v804, 64
    %v806 = vpop.permute.xlu0 %805
    %v808 = vsel %vm293, %v806, 0
    %810 = vmatprep.subr.bf16.mxu0 0
    %811 = vmatpush1.bf16.msra.mxu0 0
    %812 = vmatprep.subr.bf16.mxu0 0
    %813 = vmatpush1.bf16.msra.mxu0 0
    %814 = vmatprep.subr.bf16.mxu0 0
    %815 = vmatpush1.bf16.msra.mxu0 0
    %816 = vmatprep.subr.bf16.mxu0 0
    %817 = vmatpush1.bf16.msra.mxu0 0
    %818 = vmatprep.subr.bf16.mxu0 %v284
    %819 = vmatpush1.bf16.msra.mxu0 %v283
    %820 = vmatprep.subr.bf16.mxu0 %v282
    %821 = vmatpush1.bf16.msra.mxu0 %v281
    %822 = vmatprep.subr.bf16.mxu0 %v280
    %823 = vmatpush1.bf16.msra.mxu0 %v279
    %824 = vmatprep.subr.bf16.mxu0 %v278
    %825 = vmatpush1.bf16.msra.mxu0 %v277
    %826 = vmatprep.subr.bf16.mxu0 0
    %827 = vmatpush2.bf16.msra.mxu0 0
    %828 = vmatprep.subr.bf16.mxu0 0
    %829 = vmatpush2.bf16.msra.mxu0 0
    %830 = vmatprep.subr.bf16.mxu0 0
    %831 = vmatpush2.bf16.msra.mxu0 0
    %832 = vmatprep.subr.bf16.mxu0 0
    %833 = vmatpush2.bf16.msra.mxu0 0
    %834 = vmatprep.subr.bf16.mxu0 0
    %835 = vmatpush2.bf16.msra.mxu0 0
    %836 = vmatprep.subr.bf16.mxu0 0
    %837 = vmatpush2.bf16.msra.mxu0 0
    %838 = vmatprep.subr.bf16.mxu0 0
    %839 = vmatpush2.bf16.msra.mxu0 0
    %840 = vmatprep.subr.bf16.mxu0 0
    %841 = vmatpush2.bf16.msra.mxu0 0
    %842 = vmatprep.mubr.bf16.mxu0 0
    %843 = vmatmul.mubr.bf16.gmra.mxu0 %v808
    %v844 = vpop.f32.mrf.mxu0
    %v845 = vadd.f32 0.0, %v844
    %v846 = vpop.f32.mrf.mxu0
    %v847 = vadd.f32 0.0, %v846
    %v848 = vpop.f32.mrf.mxu0
    %v849 = vpop.f32.mrf.mxu0
    %850 = vdwg.mxu0
    %v852 = vrot.slane %v845, 4
    %v854 = vadd.f32 %v220, %v852
    %v855 = vxor.u32 %v854, 2147483648
    %v856 = vmul.f32 %v855, 1.442695
    %v857 = vpow.pop %v856
    %v858 = vadd.f32 %v857, 1.0
    %v859 = vrcp.pop %v858
    %v860 = vmul.f32 1.0, %v859
    %v861 = vadd.f32 %v847, %v241
    %v863 = vrot.slane %v861, 4
    %v865 = vmul.f32 %v860, %v863
    %v866 = vadd.f32 %v221, %v865
    %v867 = vtanh.pop %v866
    %v868 = vsub.f32 1.0, %v860
    %870 = vrot.lane.b32.xlu0 %v867, 64
    %v871 = vpop.permute.xlu0 %870
    %v873 = vmul.f32 %v868, %v871
    %v874 = vrot.slane %v790, 6
    %v876 = vmul.f32 %v860, %v874
    %v877 = vadd.f32 %v873, %v876
    %879 = vrot.lane.b32.xlu0 %v877, 64
    %v880 = vpop.permute.xlu0 %879
    %s882 = scalar_lea.vmem [#allocation2], 12
    %883 = vst.msk [vmem:[%s882 - $0x4] sm:$0x30] %vm540, %v880
    %884 = vrot.lane.b32.xlu0 %v877, 32
    %v885 = vpop.permute.xlu0 %884
    %s887 = scalar_lea.vmem [#allocation2], 18
    %888 = vst.msk [vmem:[%s887 - $0x4] sm:$0x30] %vm540, %v885
    %v889 = vpack.c.bf16 %v877, %v877
    %v891 = vrot.slane %v889, 2
    %892 = vrot.lane.b32.xlu0 %v891, 64
    %v893 = vpop.permute.xlu0 %892
    %v895 = vsel %vm293, %v893, 0
    %897 = vmatprep.subr.bf16.mxu0 0
    %898 = vmatpush1.bf16.msra.mxu0 0
    %899 = vmatprep.subr.bf16.mxu0 0
    %900 = vmatpush1.bf16.msra.mxu0 0
    %901 = vmatprep.subr.bf16.mxu0 0
    %902 = vmatpush1.bf16.msra.mxu0 0
    %903 = vmatprep.subr.bf16.mxu0 0
    %904 = vmatpush1.bf16.msra.mxu0 0
    %905 = vmatprep.subr.bf16.mxu0 %v284
    %906 = vmatpush1.bf16.msra.mxu0 %v283
    %907 = vmatprep.subr.bf16.mxu0 %v282
    %908 = vmatpush1.bf16.msra.mxu0 %v281
    %909 = vmatprep.subr.bf16.mxu0 %v280
    %910 = vmatpush1.bf16.msra.mxu0 %v279
    %911 = vmatprep.subr.bf16.mxu0 %v278
    %912 = vmatpush1.bf16.msra.mxu0 %v277
    %913 = vmatprep.subr.bf16.mxu0 0
    %914 = vmatpush2.bf16.msra.mxu0 0
    %915 = vmatprep.subr.bf16.mxu0 0
    %916 = vmatpush2.bf16.msra.mxu0 0
    %917 = vmatprep.subr.bf16.mxu0 0
    %918 = vmatpush2.bf16.msra.mxu0 0
    %919 = vmatprep.subr.bf16.mxu0 0
    %920 = vmatpush2.bf16.msra.mxu0 0
    %921 = vmatprep.subr.bf16.mxu0 0
    %922 = vmatpush2.bf16.msra.mxu0 0
    %923 = vmatprep.subr.bf16.mxu0 0
    %924 = vmatpush2.bf16.msra.mxu0 0
    %925 = vmatprep.subr.bf16.mxu0 0
    %926 = vmatpush2.bf16.msra.mxu0 0
    %927 = vmatprep.subr.bf16.mxu0 0
    %928 = vmatpush2.bf16.msra.mxu0 0
    %929 = vmatprep.mubr.bf16.mxu0 0
    %930 = vmatmul.mubr.bf16.gmra.mxu0 %v895
    %v931 = vpop.f32.mrf.mxu0
    %v932 = vadd.f32 0.0, %v931
    %v933 = vpop.f32.mrf.mxu0
    %v934 = vadd.f32 0.0, %v933
    %v935 = vpop.f32.mrf.mxu0
    %v936 = vpop.f32.mrf.mxu0
    %937 = vdwg.mxu0
    %v939 = vrot.slane %v932, 2
    %v941 = vadd.f32 %v226, %v939
    %v942 = vxor.u32 %v941, 2147483648
    %v943 = vmul.f32 %v942, 1.442695
    %v944 = vpow.pop %v943
    %v945 = vadd.f32 %v944, 1.0
    %v946 = vrcp.pop %v945
    %v947 = vmul.f32 1.0, %v946
    %v948 = vadd.f32 %v934, %v241
    %v950 = vrot.slane %v948, 2
    %v952 = vmul.f32 %v947, %v950
    %v953 = vadd.f32 %v227, %v952
    %v954 = vtanh.pop %v953
    %v955 = vsub.f32 1.0, %v947
    %957 = vrot.lane.b32.xlu0 %v954, 64
    %v958 = vpop.permute.xlu0 %957
    %v960 = vmul.f32 %v955, %v958
    %v961 = vrot.slane %v877, 6
    %v963 = vmul.f32 %v947, %v961
    %v964 = vadd.f32 %v960, %v963
    %966 = vrot.lane.b32.xlu0 %v964, 64
    %v967 = vpop.permute.xlu0 %966
    %s969 = scalar_lea.vmem [#allocation2], 14
    %970 = vst.msk [vmem:[%s969 - $0x6] sm:$0xc0] %vm628, %v967
    %971 = vrot.lane.b32.xlu0 %v964, 32
    %v972 = vpop.permute.xlu0 %971
    %s974 = scalar_lea.vmem [#allocation2], 16
    %975 = vst.msk [vmem:[%s974 - $0x6] sm:$0xc0] %vm628, %v972
    %976 = vst.msk [vmem:[#allocation10 - $0x6] sm:$0xc0] %vm628, %v967
    %s977 = scalar_lea.vmem [#allocation10], 2
    %978 = vst.msk [vmem:[%s977 - $0x6] sm:$0xc0] %vm628, %v972
    %v979 = vld [vmem:[#allocation2] sm:$0x3]
    %v980 = vld [vmem:[#allocation2 + $0x2] sm:$0x3]
    %v981 = vld [vmem:[#allocation2 + $0x4] sm:$0x3]
    %v982 = vld [vmem:[#allocation2 + $0x6] sm:$0x3]
    %v983 = vld [vmem:[#allocation2 + $0x8] sm:$0x3]
    %v984 = vld [vmem:[#allocation2 + $0xa] sm:$0x3]
    %v985 = vld [vmem:[#allocation2 + $0xc] sm:$0x3]
    %v986 = vld [vmem:[#allocation2 + $0xe] sm:$0x3]
    %v987 = vld [vmem:[%s974] sm:$0x3]
    %v988 = vld [vmem:[%s974 + $0x2] sm:$0x3]
    %v989 = vld [vmem:[%s974 + $0x4] sm:$0x3]
    %v990 = vld [vmem:[%s974 + $0x6] sm:$0x3]
    %v991 = vld [vmem:[%s974 + $0x8] sm:$0x3]
    %v992 = vld [vmem:[%s974 + $0xa] sm:$0x3]
    %v993 = vld [vmem:[%s974 + $0xc] sm:$0x3]
    %v994 = vld [vmem:[%s974 + $0xe] sm:$0x3]
    %1003 = vrot.lane.b32.xlu0 %v987, 32
    %v1004 = vpop.permute.xlu0 %1003
    %1005 = vrot.lane.b32.xlu0 %v988, 32
    %v1006 = vpop.permute.xlu0 %1005
    %1007 = vrot.lane.b32.xlu0 %v989, 32
    %v1008 = vpop.permute.xlu0 %1007
    %1009 = vrot.lane.b32.xlu0 %v990, 32
    %v1010 = vpop.permute.xlu0 %1009
    %1011 = vrot.lane.b32.xlu0 %v991, 32
    %v1012 = vpop.permute.xlu0 %1011
    %1013 = vrot.lane.b32.xlu0 %v992, 32
    %v1014 = vpop.permute.xlu0 %1013
    %1015 = vrot.lane.b32.xlu0 %v993, 32
    %v1016 = vpop.permute.xlu0 %1015
    %1017 = vrot.lane.b32.xlu0 %v994, 32
    %v1018 = vpop.permute.xlu0 %1017
    %v1027 = vsel %vm250, %v979, %v1004
    %v1028 = vsel %vm250, %v980, %v1006
    %v1029 = vsel %vm250, %v981, %v1008
    %v1030 = vsel %vm250, %v982, %v1010
    %v1031 = vsel %vm250, %v983, %v1012
    %v1032 = vsel %vm250, %v984, %v1014
    %v1033 = vsel %vm250, %v985, %v1016
    %v1034 = vsel %vm250, %v986, %v1018
    %v1043 = vcombine.low %v1027, %v1028
    %v1044 = vcombine.low %v1029, %v1030
    %v1046 = vunpack.c.l.s4 1983009808
    %v1047 = vunpack.c.0.s8 %v1046
    %v1048 = vlaneseq
    %v1049 = vshrl.u32 %v1048, 7
    %v1050 = vsub.s32 %v1047, %v1049
    %v1051 = vrot.slane %v1043, %v1050
    %v1053 = vunpack.c.l.s4 1983009808
    %v1054 = vunpack.c.0.s8 %v1053
    %v1055 = vlaneseq
    %v1056 = vshrl.u32 %v1055, 7
    %v1057 = vsub.s32 %v1054, %v1056
    %v1058 = vrot.slane %v1044, %v1057
    %v1059 = vcombine.low %v1051, %v1058
    %v1060 = vcombine.low %v1031, %v1032
    %v1061 = vcombine.low %v1033, %v1034
    %v1063 = vunpack.c.l.s4 1983009808
    %v1064 = vunpack.c.0.s8 %v1063
    %v1065 = vlaneseq
    %v1066 = vshrl.u32 %v1065, 7
    %v1067 = vsub.s32 %v1064, %v1066
    %v1068 = vrot.slane %v1060, %v1067
    %v1070 = vunpack.c.l.s4 1983009808
    %v1071 = vunpack.c.0.s8 %v1070
    %v1072 = vlaneseq
    %v1073 = vshrl.u32 %v1072, 7
    %v1074 = vsub.s32 %v1071, %v1073
    %v1075 = vrot.slane %v1061, %v1074
    %v1076 = vcombine.low %v1068, %v1075
    %v1079 = vpack.c.bf16 %v1076, %v1059
    %v1080 = vld [vmem:[#allocation6] sm:$0xff]
    %v1081 = vld [vmem:[#allocation6 + $0x8] sm:$0xff]
    %v1082 = vld [vmem:[#allocation6 + $0x10] sm:$0xff]
    %v1083 = vld [vmem:[#allocation6 + $0x18] sm:$0xff]
    %v1084 = vld [vmem:[#allocation6 + $0x20] sm:$0xff]
    %v1085 = vld [vmem:[#allocation6 + $0x28] sm:$0xff]
    %v1086 = vld [vmem:[#allocation6 + $0x30] sm:$0xff]
    %v1087 = vld [vmem:[#allocation6 + $0x38] sm:$0xff]
    %v1088 = vld [vmem:[%s7] sm:$0x3]
    %v1090 = vlaneseq
    %v1091 = vshrl.u32 %v1090, 7
    %v1092 = vsub.s32 0, %v1091
    %v1093 = vrot.slane %v1088, %v1092
    %v1094 = vlaneseq
    %v1095 = vshrl.u32 %v1094, 7
    %v1096 = vsub.s32 1, %v1095
    %v1097 = vrot.slane %v1088, %v1096
    %v1108 = vunpack.c.l.b16 %v1080
    %v1109 = vunpack.c.h.b16 %v1080
    %v1110 = vunpack.c.l.b16 %v1081
    %v1111 = vunpack.c.h.b16 %v1081
    %v1112 = vunpack.c.l.b16 %v1082
    %v1113 = vunpack.c.h.b16 %v1082
    %v1114 = vunpack.c.l.b16 %v1083
    %v1115 = vunpack.c.h.b16 %v1083
    %v1116 = vunpack.c.l.b16 %v1084
    %v1117 = vunpack.c.h.b16 %v1084
    %v1118 = vunpack.c.l.b16 %v1085
    %v1119 = vunpack.c.h.b16 %v1085
    %v1120 = vunpack.c.l.b16 %v1086
    %v1121 = vunpack.c.h.b16 %v1086
    %v1122 = vunpack.c.l.b16 %v1087
    %v1123 = vunpack.c.h.b16 %v1087
    %v1124 = vpack.c.b16 %v1110, %v1108
    %v1125 = vpack.c.b16 %v1111, %v1109
    %v1126 = vpack.c.b16 %v1114, %v1112
    %v1127 = vpack.c.b16 %v1115, %v1113
    %v1128 = vpack.c.b16 %v1118, %v1116
    %v1129 = vpack.c.b16 %v1119, %v1117
    %v1130 = vpack.c.b16 %v1122, %v1120
    %v1131 = vpack.c.b16 %v1123, %v1121
    %v1141 = vsel %vm293, %v1079, 0
    %1143 = vmatprep.subr.bf16.mxu0 0
    %1144 = vmatpush1.bf16.msra.mxu0 0
    %1145 = vmatprep.subr.bf16.mxu0 0
    %1146 = vmatpush1.bf16.msra.mxu0 0
    %1147 = vmatprep.subr.bf16.mxu0 0
    %1148 = vmatpush1.bf16.msra.mxu0 0
    %1149 = vmatprep.subr.bf16.mxu0 0
    %1150 = vmatpush1.bf16.msra.mxu0 0
    %1151 = vmatprep.subr.bf16.mxu0 %v1131
    %1152 = vmatpush1.bf16.msra.mxu0 %v1130
    %1153 = vmatprep.subr.bf16.mxu0 %v1129
    %1154 = vmatpush1.bf16.msra.mxu0 %v1128
    %1155 = vmatprep.subr.bf16.mxu0 %v1127
    %1156 = vmatpush1.bf16.msra.mxu0 %v1126
    %1157 = vmatprep.subr.bf16.mxu0 %v1125
    %1158 = vmatpush1.bf16.msra.mxu0 %v1124
    %1159 = vmatprep.subr.bf16.mxu0 0
    %1160 = vmatpush2.bf16.msra.mxu0 0
    %1161 = vmatprep.subr.bf16.mxu0 0
    %1162 = vmatpush2.bf16.msra.mxu0 0
    %1163 = vmatprep.subr.bf16.mxu0 0
    %1164 = vmatpush2.bf16.msra.mxu0 0
    %1165 = vmatprep.subr.bf16.mxu0 0
    %1166 = vmatpush2.bf16.msra.mxu0 0
    %1167 = vmatprep.subr.bf16.mxu0 0
    %1168 = vmatpush2.bf16.msra.mxu0 0
    %1169 = vmatprep.subr.bf16.mxu0 0
    %1170 = vmatpush2.bf16.msra.mxu0 0
    %1171 = vmatprep.subr.bf16.mxu0 0
    %1172 = vmatpush2.bf16.msra.mxu0 0
    %1173 = vmatprep.subr.bf16.mxu0 0
    %1174 = vmatpush2.bf16.msra.mxu0 0
    %1175 = vmatprep.mubr.bf16.mxu0 0
    %1176 = vmatmul.mubr.bf16.gmra.mxu0 %v1141
    %v1177 = vpop.f32.mrf.mxu0
    %v1178 = vadd.f32 %v1093, %v1177
    %v1179 = vpop.f32.mrf.mxu0
    %v1180 = vadd.f32 %v1097, %v1179
    %v1181 = vpop.f32.mrf.mxu0
    %v1182 = vadd.f32 %v1093, %v1181
    %v1183 = vpop.f32.mrf.mxu0
    %v1184 = vadd.f32 %v1097, %v1183
    %1185 = vdwg.mxu0
    %v1188 = vrot.slane %v1182, 6
    %v1189 = vrot.slane %v1184, 6
    %v1192 = vsel %vm120, %v1178, %v1188
    %v1193 = vsel %vm121, %v1180, %v1189
    %v1194 = vrot.slane %v1182, 2
    %v1195 = vrot.slane %v1184, 2
    %v1198 = vsel %vm120, %v1178, %v1194
    %v1199 = vsel %vm121, %v1180, %v1195
    %v1202 = vrot.slane %v1178, 6
    %v1203 = vrot.slane %v1180, 6
    %v1206 = vsel %vm120, %v1182, %v1202
    %v1207 = vsel %vm121, %v1184, %v1203
    %v1208 = vrot.slane %v1178, 2
    %v1209 = vrot.slane %v1180, 2
    %v1212 = vsel %vm120, %v1182, %v1208
    %v1213 = vsel %vm121, %v1184, %v1209
    %v1214 = vld [vmem:[#allocation8] sm:$0xff]
    %v1215 = vld [vmem:[#allocation8 + $0x8] sm:$0xff]
    %v1216 = vld [vmem:[#allocation8 + $0x10] sm:$0xff]
    %v1217 = vld [vmem:[#allocation8 + $0x18] sm:$0xff]
    %v1218 = vld [vmem:[#allocation8 + $0x20] sm:$0xff]
    %v1219 = vld [vmem:[#allocation8 + $0x28] sm:$0xff]
    %v1220 = vld [vmem:[#allocation8 + $0x30] sm:$0xff]
    %v1221 = vld [vmem:[#allocation8 + $0x38] sm:$0xff]
    %v1222 = vld [vmem:[%s9] sm:$0x1]
    %v1224 = vlaneseq
    %v1225 = vshrl.u32 %v1224, 7
    %v1226 = vsub.s32 0, %v1225
    %v1227 = vrot.slane %v1222, %v1226
    %s1229 = scalar_lea.vmem %s1, 4
    %v1230 = vld [vmem:[%s1229] sm:$0x3]
    %s1231 = scalar_lea.vmem %s1, 6
    %v1232 = vld [vmem:[%s1231] sm:$0x3]
    %1234 = vrot.lane.b32.xlu0 %v1232, 32
    %v1235 = vpop.permute.xlu0 %1234
    %v1237 = vsel %vm250, %v1230, %v1235
    %v1238 = vpack.c.bf16 %v1237, %v1237
    %v1247 = vunpack.c.l.b16 %v1214
    %v1248 = vunpack.c.h.b16 %v1214
    %v1249 = vunpack.c.l.b16 %v1215
    %v1250 = vunpack.c.h.b16 %v1215
    %v1251 = vunpack.c.l.b16 %v1216
    %v1252 = vunpack.c.h.b16 %v1216
    %v1253 = vunpack.c.l.b16 %v1217
    %v1254 = vunpack.c.h.b16 %v1217
    %v1255 = vunpack.c.l.b16 %v1218
    %v1256 = vunpack.c.h.b16 %v1218
    %v1257 = vunpack.c.l.b16 %v1219
    %v1258 = vunpack.c.h.b16 %v1219
    %v1259 = vunpack.c.l.b16 %v1220
    %v1260 = vunpack.c.h.b16 %v1220
    %v1261 = vunpack.c.l.b16 %v1221
    %v1262 = vunpack.c.h.b16 %v1221
    %v1263 = vpack.c.b16 %v1249, %v1247
    %v1264 = vpack.c.b16 %v1250, %v1248
    %v1265 = vpack.c.b16 %v1253, %v1251
    %v1266 = vpack.c.b16 %v1254, %v1252
    %v1267 = vpack.c.b16 %v1257, %v1255
    %v1268 = vpack.c.b16 %v1258, %v1256
    %v1269 = vpack.c.b16 %v1261, %v1259
    %v1270 = vpack.c.b16 %v1262, %v1260
    %v1280 = vsel %vm293, %v1238, 0
    %1282 = vmatprep.subr.bf16.mxu0 0
    %1283 = vmatpush1.bf16.msra.mxu0 0
    %1284 = vmatprep.subr.bf16.mxu0 0
    %1285 = vmatpush1.bf16.msra.mxu0 0
    %1286 = vmatprep.subr.bf16.mxu0 0
    %1287 = vmatpush1.bf16.msra.mxu0 0
    %1288 = vmatprep.subr.bf16.mxu0 0
    %1289 = vmatpush1.bf16.msra.mxu0 0
    %1290 = vmatprep.subr.bf16.mxu0 %v1270
    %1291 = vmatpush1.bf16.msra.mxu0 %v1269
    %1292 = vmatprep.subr.bf16.mxu0 %v1268
    %1293 = vmatpush1.bf16.msra.mxu0 %v1267
    %1294 = vmatprep.subr.bf16.mxu0 %v1266
    %1295 = vmatpush1.bf16.msra.mxu0 %v1265
    %1296 = vmatprep.subr.bf16.mxu0 %v1264
    %1297 = vmatpush1.bf16.msra.mxu0 %v1263
    %1298 = vmatprep.subr.bf16.mxu0 0
    %1299 = vmatpush2.bf16.msra.mxu0 0
    %1300 = vmatprep.subr.bf16.mxu0 0
    %1301 = vmatpush2.bf16.msra.mxu0 0
    %1302 = vmatprep.subr.bf16.mxu0 0
    %1303 = vmatpush2.bf16.msra.mxu0 0
    %1304 = vmatprep.subr.bf16.mxu0 0
    %1305 = vmatpush2.bf16.msra.mxu0 0
    %1306 = vmatprep.subr.bf16.mxu0 0
    %1307 = vmatpush2.bf16.msra.mxu0 0
    %1308 = vmatprep.subr.bf16.mxu0 0
    %1309 = vmatpush2.bf16.msra.mxu0 0
    %1310 = vmatprep.subr.bf16.mxu0 0
    %1311 = vmatpush2.bf16.msra.mxu0 0
    %1312 = vmatprep.subr.bf16.mxu0 0
    %1313 = vmatpush2.bf16.msra.mxu0 0
    %1314 = vmatprep.mubr.bf16.mxu0 0
    %1315 = vmatmul.mubr.bf16.gmra.mxu0 %v1280
    %v1316 = vpop.f32.mrf.mxu0
    %v1317 = vadd.f32 0.0, %v1316
    %v1318 = vpop.f32.mrf.mxu0
    %v1319 = vadd.f32 0.0, %v1318
    %v1320 = vpop.f32.mrf.mxu0
    %v1321 = vpop.f32.mrf.mxu0
    %1322 = vdwg.mxu0
    %v1323 = vadd.f32 %v1192, %v1317
    %v1324 = vxor.u32 %v1323, 2147483648
    %v1325 = vmul.f32 %v1324, 1.442695
    %v1326 = vpow.pop %v1325
    %v1327 = vadd.f32 %v1326, 1.0
    %v1328 = vrcp.pop %v1327
    %v1329 = vmul.f32 1.0, %v1328
    %v1330 = vadd.f32 %v1319, %v1227
    %v1331 = vmul.f32 %v1329, %v1330
    %v1332 = vadd.f32 %v1193, %v1331
    %v1333 = vtanh.pop %v1332
    %v1334 = vsub.f32 1.0, %v1329
    %1336 = vrot.lane.b32.xlu0 %v1333, 64
    %v1337 = vpop.permute.xlu0 %1336
    %v1339 = vmul.f32 %v1334, %v1337
    %1341 = vrot.lane.b32.xlu0 %v1237, 64
    %v1342 = vpop.permute.xlu0 %1341
    %v1344 = vmul.f32 %v1329, %v1342
    %v1345 = vadd.f32 %v1339, %v1344
    %1347 = vrot.lane.b32.xlu0 %v1345, 64
    %v1348 = vpop.permute.xlu0 %1347
    %1350 = vst.msk [vmem:[#allocation2] sm:$0x3] %vm365, %v1348
    %1351 = vrot.lane.b32.xlu0 %v1345, 32
    %v1352 = vpop.permute.xlu0 %1351
    %1354 = vst.msk [vmem:[%s370] sm:$0x3] %vm365, %v1352
    %v1355 = vpack.c.bf16 %v1345, %v1345
    %1357 = vrot.lane.b32.xlu0 %v1355, 64
    %v1358 = vpop.permute.xlu0 %1357
    %v1360 = vsel %vm293, %v1358, 0
    %1362 = vmatprep.subr.bf16.mxu0 0
    %1363 = vmatpush1.bf16.msra.mxu0 0
    %1364 = vmatprep.subr.bf16.mxu0 0
    %1365 = vmatpush1.bf16.msra.mxu0 0
    %1366 = vmatprep.subr.bf16.mxu0 0
    %1367 = vmatpush1.bf16.msra.mxu0 0
    %1368 = vmatprep.subr.bf16.mxu0 0
    %1369 = vmatpush1.bf16.msra.mxu0 0
    %1370 = vmatprep.subr.bf16.mxu0 %v1270
    %1371 = vmatpush1.bf16.msra.mxu0 %v1269
    %1372 = vmatprep.subr.bf16.mxu0 %v1268
    %1373 = vmatpush1.bf16.msra.mxu0 %v1267
    %1374 = vmatprep.subr.bf16.mxu0 %v1266
    %1375 = vmatpush1.bf16.msra.mxu0 %v1265
    %1376 = vmatprep.subr.bf16.mxu0 %v1264
    %1377 = vmatpush1.bf16.msra.mxu0 %v1263
    %1378 = vmatprep.subr.bf16.mxu0 0
    %1379 = vmatpush2.bf16.msra.mxu0 0
    %1380 = vmatprep.subr.bf16.mxu0 0
    %1381 = vmatpush2.bf16.msra.mxu0 0
    %1382 = vmatprep.subr.bf16.mxu0 0
    %1383 = vmatpush2.bf16.msra.mxu0 0
    %1384 = vmatprep.subr.bf16.mxu0 0
    %1385 = vmatpush2.bf16.msra.mxu0 0
    %1386 = vmatprep.subr.bf16.mxu0 0
    %1387 = vmatpush2.bf16.msra.mxu0 0
    %1388 = vmatprep.subr.bf16.mxu0 0
    %1389 = vmatpush2.bf16.msra.mxu0 0
    %1390 = vmatprep.subr.bf16.mxu0 0
    %1391 = vmatpush2.bf16.msra.mxu0 0
    %1392 = vmatprep.subr.bf16.mxu0 0
    %1393 = vmatpush2.bf16.msra.mxu0 0
    %1394 = vmatprep.mubr.bf16.mxu0 0
    %1395 = vmatmul.mubr.bf16.gmra.mxu0 %v1360
    %v1396 = vpop.f32.mrf.mxu0
    %v1397 = vadd.f32 0.0, %v1396
    %v1398 = vpop.f32.mrf.mxu0
    %v1399 = vadd.f32 0.0, %v1398
    %v1400 = vpop.f32.mrf.mxu0
    %v1401 = vpop.f32.mrf.mxu0
    %1402 = vdwg.mxu0
    %v1404 = vrot.slane %v1397, 6
    %v1406 = vadd.f32 %v1198, %v1404
    %v1407 = vxor.u32 %v1406, 2147483648
    %v1408 = vmul.f32 %v1407, 1.442695
    %v1409 = vpow.pop %v1408
    %v1410 = vadd.f32 %v1409, 1.0
    %v1411 = vrcp.pop %v1410
    %v1412 = vmul.f32 1.0, %v1411
    %v1413 = vadd.f32 %v1399, %v1227
    %v1415 = vrot.slane %v1413, 6
    %v1417 = vmul.f32 %v1412, %v1415
    %v1418 = vadd.f32 %v1199, %v1417
    %v1419 = vtanh.pop %v1418
    %v1420 = vsub.f32 1.0, %v1412
    %1422 = vrot.lane.b32.xlu0 %v1419, 64
    %v1423 = vpop.permute.xlu0 %1422
    %v1425 = vmul.f32 %v1420, %v1423
    %v1426 = vrot.slane %v1345, 6
    %v1428 = vmul.f32 %v1412, %v1426
    %v1429 = vadd.f32 %v1425, %v1428
    %1431 = vrot.lane.b32.xlu0 %v1429, 64
    %v1432 = vpop.permute.xlu0 %1431
    %1434 = vst.msk [vmem:[%s451 - $0x2] sm:$0xc] %vm452, %v1432
    %1435 = vrot.lane.b32.xlu0 %v1429, 32
    %v1436 = vpop.permute.xlu0 %1435
    %1438 = vst.msk [vmem:[%s457 - $0x2] sm:$0xc] %vm452, %v1436
    %v1439 = vpack.c.bf16 %v1429, %v1429
    %v1441 = vrot.slane %v1439, 1
    %1442 = vrot.lane.b32.xlu0 %v1441, 64
    %v1443 = vpop.permute.xlu0 %1442
    %v1445 = vsel %vm293, %v1443, 0
    %1447 = vmatprep.subr.bf16.mxu0 0
    %1448 = vmatpush1.bf16.msra.mxu0 0
    %1449 = vmatprep.subr.bf16.mxu0 0
    %1450 = vmatpush1.bf16.msra.mxu0 0
    %1451 = vmatprep.subr.bf16.mxu0 0
    %1452 = vmatpush1.bf16.msra.mxu0 0
    %1453 = vmatprep.subr.bf16.mxu0 0
    %1454 = vmatpush1.bf16.msra.mxu0 0
    %1455 = vmatprep.subr.bf16.mxu0 %v1270
    %1456 = vmatpush1.bf16.msra.mxu0 %v1269
    %1457 = vmatprep.subr.bf16.mxu0 %v1268
    %1458 = vmatpush1.bf16.msra.mxu0 %v1267
    %1459 = vmatprep.subr.bf16.mxu0 %v1266
    %1460 = vmatpush1.bf16.msra.mxu0 %v1265
    %1461 = vmatprep.subr.bf16.mxu0 %v1264
    %1462 = vmatpush1.bf16.msra.mxu0 %v1263
    %1463 = vmatprep.subr.bf16.mxu0 0
    %1464 = vmatpush2.bf16.msra.mxu0 0
    %1465 = vmatprep.subr.bf16.mxu0 0
    %1466 = vmatpush2.bf16.msra.mxu0 0
    %1467 = vmatprep.subr.bf16.mxu0 0
    %1468 = vmatpush2.bf16.msra.mxu0 0
    %1469 = vmatprep.subr.bf16.mxu0 0
    %1470 = vmatpush2.bf16.msra.mxu0 0
    %1471 = vmatprep.subr.bf16.mxu0 0
    %1472 = vmatpush2.bf16.msra.mxu0 0
    %1473 = vmatprep.subr.bf16.mxu0 0
    %1474 = vmatpush2.bf16.msra.mxu0 0
    %1475 = vmatprep.subr.bf16.mxu0 0
    %1476 = vmatpush2.bf16.msra.mxu0 0
    %1477 = vmatprep.subr.bf16.mxu0 0
    %1478 = vmatpush2.bf16.msra.mxu0 0
    %1479 = vmatprep.mubr.bf16.mxu0 0
    %1480 = vmatmul.mubr.bf16.gmra.mxu0 %v1445
    %v1481 = vpop.f32.mrf.mxu0
    %v1482 = vadd.f32 0.0, %v1481
    %v1483 = vpop.f32.mrf.mxu0
    %v1484 = vadd.f32 0.0, %v1483
    %v1485 = vpop.f32.mrf.mxu0
    %v1486 = vpop.f32.mrf.mxu0
    %1487 = vdwg.mxu0
    %v1489 = vrot.slane %v1482, 4
    %v1491 = vadd.f32 %v1192, %v1489
    %v1492 = vxor.u32 %v1491, 2147483648
    %v1493 = vmul.f32 %v1492, 1.442695
    %v1494 = vpow.pop %v1493
    %v1495 = vadd.f32 %v1494, 1.0
    %v1496 = vrcp.pop %v1495
    %v1497 = vmul.f32 1.0, %v1496
    %v1498 = vadd.f32 %v1484, %v1227
    %v1500 = vrot.slane %v1498, 4
    %v1502 = vmul.f32 %v1497, %v1500
    %v1503 = vadd.f32 %v1193, %v1502
    %v1504 = vtanh.pop %v1503
    %v1505 = vsub.f32 1.0, %v1497
    %1507 = vrot.lane.b32.xlu0 %v1504, 64
    %v1508 = vpop.permute.xlu0 %1507
    %v1510 = vmul.f32 %v1505, %v1508
    %v1511 = vrot.slane %v1429, 6
    %v1513 = vmul.f32 %v1497, %v1511
    %v1514 = vadd.f32 %v1510, %v1513
    %1516 = vrot.lane.b32.xlu0 %v1514, 64
    %v1517 = vpop.permute.xlu0 %1516
    %1519 = vst.msk [vmem:[%s539 - $0x4] sm:$0x30] %vm540, %v1517
    %1520 = vrot.lane.b32.xlu0 %v1514, 32
    %v1521 = vpop.permute.xlu0 %1520
    %1523 = vst.msk [vmem:[%s545 - $0x4] sm:$0x30] %vm540, %v1521
    %v1524 = vpack.c.bf16 %v1514, %v1514
    %v1526 = vrot.slane %v1524, 2
    %1527 = vrot.lane.b32.xlu0 %v1526, 64
    %v1528 = vpop.permute.xlu0 %1527
    %v1530 = vsel %vm293, %v1528, 0
    %1532 = vmatprep.subr.bf16.mxu0 0
    %1533 = vmatpush1.bf16.msra.mxu0 0
    %1534 = vmatprep.subr.bf16.mxu0 0
    %1535 = vmatpush1.bf16.msra.mxu0 0
    %1536 = vmatprep.subr.bf16.mxu0 0
    %1537 = vmatpush1.bf16.msra.mxu0 0
    %1538 = vmatprep.subr.bf16.mxu0 0
    %1539 = vmatpush1.bf16.msra.mxu0 0
    %1540 = vmatprep.subr.bf16.mxu0 %v1270
    %1541 = vmatpush1.bf16.msra.mxu0 %v1269
    %1542 = vmatprep.subr.bf16.mxu0 %v1268
    %1543 = vmatpush1.bf16.msra.mxu0 %v1267
    %1544 = vmatprep.subr.bf16.mxu0 %v1266
    %1545 = vmatpush1.bf16.msra.mxu0 %v1265
    %1546 = vmatprep.subr.bf16.mxu0 %v1264
    %1547 = vmatpush1.bf16.msra.mxu0 %v1263
    %1548 = vmatprep.subr.bf16.mxu0 0
    %1549 = vmatpush2.bf16.msra.mxu0 0
    %1550 = vmatprep.subr.bf16.mxu0 0
    %1551 = vmatpush2.bf16.msra.mxu0 0
    %1552 = vmatprep.subr.bf16.mxu0 0
    %1553 = vmatpush2.bf16.msra.mxu0 0
    %1554 = vmatprep.subr.bf16.mxu0 0
    %1555 = vmatpush2.bf16.msra.mxu0 0
    %1556 = vmatprep.subr.bf16.mxu0 0
    %1557 = vmatpush2.bf16.msra.mxu0 0
    %1558 = vmatprep.subr.bf16.mxu0 0
    %1559 = vmatpush2.bf16.msra.mxu0 0
    %1560 = vmatprep.subr.bf16.mxu0 0
    %1561 = vmatpush2.bf16.msra.mxu0 0
    %1562 = vmatprep.subr.bf16.mxu0 0
    %1563 = vmatpush2.bf16.msra.mxu0 0
    %1564 = vmatprep.mubr.bf16.mxu0 0
    %1565 = vmatmul.mubr.bf16.gmra.mxu0 %v1530
    %v1566 = vpop.f32.mrf.mxu0
    %v1567 = vadd.f32 0.0, %v1566
    %v1568 = vpop.f32.mrf.mxu0
    %v1569 = vadd.f32 0.0, %v1568
    %v1570 = vpop.f32.mrf.mxu0
    %v1571 = vpop.f32.mrf.mxu0
    %1572 = vdwg.mxu0
    %v1574 = vrot.slane %v1567, 2
    %v1576 = vadd.f32 %v1198, %v1574
    %v1577 = vxor.u32 %v1576, 2147483648
    %v1578 = vmul.f32 %v1577, 1.442695
    %v1579 = vpow.pop %v1578
    %v1580 = vadd.f32 %v1579, 1.0
    %v1581 = vrcp.pop %v1580
    %v1582 = vmul.f32 1.0, %v1581
    %v1583 = vadd.f32 %v1569, %v1227
    %v1585 = vrot.slane %v1583, 2
    %v1587 = vmul.f32 %v1582, %v1585
    %v1588 = vadd.f32 %v1199, %v1587
    %v1589 = vtanh.pop %v1588
    %v1590 = vsub.f32 1.0, %v1582
    %1592 = vrot.lane.b32.xlu0 %v1589, 64
    %v1593 = vpop.permute.xlu0 %1592
    %v1595 = vmul.f32 %v1590, %v1593
    %v1596 = vrot.slane %v1514, 6
    %v1598 = vmul.f32 %v1582, %v1596
    %v1599 = vadd.f32 %v1595, %v1598
    %1601 = vrot.lane.b32.xlu0 %v1599, 64
    %v1602 = vpop.permute.xlu0 %1601
    %1604 = vst.msk [vmem:[%s627 - $0x6] sm:$0xc0] %vm628, %v1602
    %1605 = vrot.lane.b32.xlu0 %v1599, 32
    %v1606 = vpop.permute.xlu0 %1605
    %1608 = vst.msk [vmem:[%s633 - $0x6] sm:$0xc0] %vm628, %v1606
    %v1609 = vpack.c.bf16 %v1599, %v1599
    %v1611 = vrot.slane %v1609, 3
    %1612 = vrot.lane.b32.xlu0 %v1611, 64
    %v1613 = vpop.permute.xlu0 %1612
    %v1615 = vsel %vm293, %v1613, 0
    %1617 = vmatprep.subr.bf16.mxu0 0
    %1618 = vmatpush1.bf16.msra.mxu0 0
    %1619 = vmatprep.subr.bf16.mxu0 0
    %1620 = vmatpush1.bf16.msra.mxu0 0
    %1621 = vmatprep.subr.bf16.mxu0 0
    %1622 = vmatpush1.bf16.msra.mxu0 0
    %1623 = vmatprep.subr.bf16.mxu0 0
    %1624 = vmatpush1.bf16.msra.mxu0 0
    %1625 = vmatprep.subr.bf16.mxu0 %v1270
    %1626 = vmatpush1.bf16.msra.mxu0 %v1269
    %1627 = vmatprep.subr.bf16.mxu0 %v1268
    %1628 = vmatpush1.bf16.msra.mxu0 %v1267
    %1629 = vmatprep.subr.bf16.mxu0 %v1266
    %1630 = vmatpush1.bf16.msra.mxu0 %v1265
    %1631 = vmatprep.subr.bf16.mxu0 %v1264
    %1632 = vmatpush1.bf16.msra.mxu0 %v1263
    %1633 = vmatprep.subr.bf16.mxu0 0
    %1634 = vmatpush2.bf16.msra.mxu0 0
    %1635 = vmatprep.subr.bf16.mxu0 0
    %1636 = vmatpush2.bf16.msra.mxu0 0
    %1637 = vmatprep.subr.bf16.mxu0 0
    %1638 = vmatpush2.bf16.msra.mxu0 0
    %1639 = vmatprep.subr.bf16.mxu0 0
    %1640 = vmatpush2.bf16.msra.mxu0 0
    %1641 = vmatprep.subr.bf16.mxu0 0
    %1642 = vmatpush2.bf16.msra.mxu0 0
    %1643 = vmatprep.subr.bf16.mxu0 0
    %1644 = vmatpush2.bf16.msra.mxu0 0
    %1645 = vmatprep.subr.bf16.mxu0 0
    %1646 = vmatpush2.bf16.msra.mxu0 0
    %1647 = vmatprep.subr.bf16.mxu0 0
    %1648 = vmatpush2.bf16.msra.mxu0 0
    %1649 = vmatprep.mubr.bf16.mxu0 0
    %1650 = vmatmul.mubr.bf16.gmra.mxu0 %v1615
    %v1651 = vpop.f32.mrf.mxu0
    %v1652 = vadd.f32 0.0, %v1651
    %v1653 = vpop.f32.mrf.mxu0
    %v1654 = vadd.f32 0.0, %v1653
    %v1655 = vpop.f32.mrf.mxu0
    %v1656 = vpop.f32.mrf.mxu0
    %1657 = vdwg.mxu0
    %v1658 = vadd.f32 %v1206, %v1652
    %v1659 = vxor.u32 %v1658, 2147483648
    %v1660 = vmul.f32 %v1659, 1.442695
    %v1661 = vpow.pop %v1660
    %v1662 = vadd.f32 %v1661, 1.0
    %v1663 = vrcp.pop %v1662
    %v1664 = vmul.f32 1.0, %v1663
    %v1665 = vadd.f32 %v1654, %v1227
    %v1666 = vmul.f32 %v1664, %v1665
    %v1667 = vadd.f32 %v1207, %v1666
    %v1668 = vtanh.pop %v1667
    %v1669 = vsub.f32 1.0, %v1664
    %1671 = vrot.lane.b32.xlu0 %v1668, 64
    %v1672 = vpop.permute.xlu0 %1671
    %v1674 = vmul.f32 %v1669, %v1672
    %v1675 = vrot.slane %v1599, 6
    %v1677 = vmul.f32 %v1664, %v1675
    %v1678 = vadd.f32 %v1674, %v1677
    %1680 = vrot.lane.b32.xlu0 %v1678, 64
    %v1681 = vpop.permute.xlu0 %1680
    %1683 = vst.msk [vmem:[%s709] sm:$0x3] %vm365, %v1681
    %1684 = vrot.lane.b32.xlu0 %v1678, 32
    %v1685 = vpop.permute.xlu0 %1684
    %1687 = vst.msk [vmem:[%s714] sm:$0x3] %vm365, %v1685
    %v1688 = vpack.c.bf16 %v1678, %v1678
    %1690 = vrot.lane.b32.xlu0 %v1688, 64
    %v1691 = vpop.permute.xlu0 %1690
    %v1693 = vsel %vm293, %v1691, 0
    %1695 = vmatprep.subr.bf16.mxu0 0
    %1696 = vmatpush1.bf16.msra.mxu0 0
    %1697 = vmatprep.subr.bf16.mxu0 0
    %1698 = vmatpush1.bf16.msra.mxu0 0
    %1699 = vmatprep.subr.bf16.mxu0 0
    %1700 = vmatpush1.bf16.msra.mxu0 0
    %1701 = vmatprep.subr.bf16.mxu0 0
    %1702 = vmatpush1.bf16.msra.mxu0 0
    %1703 = vmatprep.subr.bf16.mxu0 %v1270
    %1704 = vmatpush1.bf16.msra.mxu0 %v1269
    %1705 = vmatprep.subr.bf16.mxu0 %v1268
    %1706 = vmatpush1.bf16.msra.mxu0 %v1267
    %1707 = vmatprep.subr.bf16.mxu0 %v1266
    %1708 = vmatpush1.bf16.msra.mxu0 %v1265
    %1709 = vmatprep.subr.bf16.mxu0 %v1264
    %1710 = vmatpush1.bf16.msra.mxu0 %v1263
    %1711 = vmatprep.subr.bf16.mxu0 0
    %1712 = vmatpush2.bf16.msra.mxu0 0
    %1713 = vmatprep.subr.bf16.mxu0 0
    %1714 = vmatpush2.bf16.msra.mxu0 0
    %1715 = vmatprep.subr.bf16.mxu0 0
    %1716 = vmatpush2.bf16.msra.mxu0 0
    %1717 = vmatprep.subr.bf16.mxu0 0
    %1718 = vmatpush2.bf16.msra.mxu0 0
    %1719 = vmatprep.subr.bf16.mxu0 0
    %1720 = vmatpush2.bf16.msra.mxu0 0
    %1721 = vmatprep.subr.bf16.mxu0 0
    %1722 = vmatpush2.bf16.msra.mxu0 0
    %1723 = vmatprep.subr.bf16.mxu0 0
    %1724 = vmatpush2.bf16.msra.mxu0 0
    %1725 = vmatprep.subr.bf16.mxu0 0
    %1726 = vmatpush2.bf16.msra.mxu0 0
    %1727 = vmatprep.mubr.bf16.mxu0 0
    %1728 = vmatmul.mubr.bf16.gmra.mxu0 %v1693
    %v1729 = vpop.f32.mrf.mxu0
    %v1730 = vadd.f32 0.0, %v1729
    %v1731 = vpop.f32.mrf.mxu0
    %v1732 = vadd.f32 0.0, %v1731
    %v1733 = vpop.f32.mrf.mxu0
    %v1734 = vpop.f32.mrf.mxu0
    %1735 = vdwg.mxu0
    %v1737 = vrot.slane %v1730, 6
    %v1739 = vadd.f32 %v1212, %v1737
    %v1740 = vxor.u32 %v1739, 2147483648
    %v1741 = vmul.f32 %v1740, 1.442695
    %v1742 = vpow.pop %v1741
    %v1743 = vadd.f32 %v1742, 1.0
    %v1744 = vrcp.pop %v1743
    %v1745 = vmul.f32 1.0, %v1744
    %v1746 = vadd.f32 %v1732, %v1227
    %v1748 = vrot.slane %v1746, 6
    %v1750 = vmul.f32 %v1745, %v1748
    %v1751 = vadd.f32 %v1213, %v1750
    %v1752 = vtanh.pop %v1751
    %v1753 = vsub.f32 1.0, %v1745
    %1755 = vrot.lane.b32.xlu0 %v1752, 64
    %v1756 = vpop.permute.xlu0 %1755
    %v1758 = vmul.f32 %v1753, %v1756
    %v1759 = vrot.slane %v1678, 6
    %v1761 = vmul.f32 %v1745, %v1759
    %v1762 = vadd.f32 %v1758, %v1761
    %1764 = vrot.lane.b32.xlu0 %v1762, 64
    %v1765 = vpop.permute.xlu0 %1764
    %1767 = vst.msk [vmem:[%s795 - $0x2] sm:$0xc] %vm452, %v1765
    %1768 = vrot.lane.b32.xlu0 %v1762, 32
    %v1769 = vpop.permute.xlu0 %1768
    %1771 = vst.msk [vmem:[%s800 - $0x2] sm:$0xc] %vm452, %v1769
    %v1772 = vpack.c.bf16 %v1762, %v1762
    %v1774 = vrot.slane %v1772, 1
    %1775 = vrot.lane.b32.xlu0 %v1774, 64
    %v1776 = vpop.permute.xlu0 %1775
    %v1778 = vsel %vm293, %v1776, 0
    %1780 = vmatprep.subr.bf16.mxu0 0
    %1781 = vmatpush1.bf16.msra.mxu0 0
    %1782 = vmatprep.subr.bf16.mxu0 0
    %1783 = vmatpush1.bf16.msra.mxu0 0
    %1784 = vmatprep.subr.bf16.mxu0 0
    %1785 = vmatpush1.bf16.msra.mxu0 0
    %1786 = vmatprep.subr.bf16.mxu0 0
    %1787 = vmatpush1.bf16.msra.mxu0 0
    %1788 = vmatprep.subr.bf16.mxu0 %v1270
    %1789 = vmatpush1.bf16.msra.mxu0 %v1269
    %1790 = vmatprep.subr.bf16.mxu0 %v1268
    %1791 = vmatpush1.bf16.msra.mxu0 %v1267
    %1792 = vmatprep.subr.bf16.mxu0 %v1266
    %1793 = vmatpush1.bf16.msra.mxu0 %v1265
    %1794 = vmatprep.subr.bf16.mxu0 %v1264
    %1795 = vmatpush1.bf16.msra.mxu0 %v1263
    %1796 = vmatprep.subr.bf16.mxu0 0
    %1797 = vmatpush2.bf16.msra.mxu0 0
    %1798 = vmatprep.subr.bf16.mxu0 0
    %1799 = vmatpush2.bf16.msra.mxu0 0
    %1800 = vmatprep.subr.bf16.mxu0 0
    %1801 = vmatpush2.bf16.msra.mxu0 0
    %1802 = vmatprep.subr.bf16.mxu0 0
    %1803 = vmatpush2.bf16.msra.mxu0 0
    %1804 = vmatprep.subr.bf16.mxu0 0
    %1805 = vmatpush2.bf16.msra.mxu0 0
    %1806 = vmatprep.subr.bf16.mxu0 0
    %1807 = vmatpush2.bf16.msra.mxu0 0
    %1808 = vmatprep.subr.bf16.mxu0 0
    %1809 = vmatpush2.bf16.msra.mxu0 0
    %1810 = vmatprep.subr.bf16.mxu0 0
    %1811 = vmatpush2.bf16.msra.mxu0 0
    %1812 = vmatprep.mubr.bf16.mxu0 0
    %1813 = vmatmul.mubr.bf16.gmra.mxu0 %v1778
    %v1814 = vpop.f32.mrf.mxu0
    %v1815 = vadd.f32 0.0, %v1814
    %v1816 = vpop.f32.mrf.mxu0
    %v1817 = vadd.f32 0.0, %v1816
    %v1818 = vpop.f32.mrf.mxu0
    %v1819 = vpop.f32.mrf.mxu0
    %1820 = vdwg.mxu0
    %v1822 = vrot.slane %v1815, 4
    %v1824 = vadd.f32 %v1206, %v1822
    %v1825 = vxor.u32 %v1824, 2147483648
    %v1826 = vmul.f32 %v1825, 1.442695
    %v1827 = vpow.pop %v1826
    %v1828 = vadd.f32 %v1827, 1.0
    %v1829 = vrcp.pop %v1828
    %v1830 = vmul.f32 1.0, %v1829
    %v1831 = vadd.f32 %v1817, %v1227
    %v1833 = vrot.slane %v1831, 4
    %v1835 = vmul.f32 %v1830, %v1833
    %v1836 = vadd.f32 %v1207, %v1835
    %v1837 = vtanh.pop %v1836
    %v1838 = vsub.f32 1.0, %v1830
    %1840 = vrot.lane.b32.xlu0 %v1837, 64
    %v1841 = vpop.permute.xlu0 %1840
    %v1843 = vmul.f32 %v1838, %v1841
    %v1844 = vrot.slane %v1762, 6
    %v1846 = vmul.f32 %v1830, %v1844
    %v1847 = vadd.f32 %v1843, %v1846
    %1849 = vrot.lane.b32.xlu0 %v1847, 64
    %v1850 = vpop.permute.xlu0 %1849
    %1852 = vst.msk [vmem:[%s882 - $0x4] sm:$0x30] %vm540, %v1850
    %1853 = vrot.lane.b32.xlu0 %v1847, 32
    %v1854 = vpop.permute.xlu0 %1853
    %1856 = vst.msk [vmem:[%s887 - $0x4] sm:$0x30] %vm540, %v1854
    %v1857 = vpack.c.bf16 %v1847, %v1847
    %v1859 = vrot.slane %v1857, 2
    %1860 = vrot.lane.b32.xlu0 %v1859, 64
    %v1861 = vpop.permute.xlu0 %1860
    %v1863 = vsel %vm293, %v1861, 0
    %1865 = vmatprep.subr.bf16.mxu0 0
    %1866 = vmatpush1.bf16.msra.mxu0 0
    %1867 = vmatprep.subr.bf16.mxu0 0
    %1868 = vmatpush1.bf16.msra.mxu0 0
    %1869 = vmatprep.subr.bf16.mxu0 0
    %1870 = vmatpush1.bf16.msra.mxu0 0
    %1871 = vmatprep.subr.bf16.mxu0 0
    %1872 = vmatpush1.bf16.msra.mxu0 0
    %1873 = vmatprep.subr.bf16.mxu0 %v1270
    %1874 = vmatpush1.bf16.msra.mxu0 %v1269
    %1875 = vmatprep.subr.bf16.mxu0 %v1268
    %1876 = vmatpush1.bf16.msra.mxu0 %v1267
    %1877 = vmatprep.subr.bf16.mxu0 %v1266
    %1878 = vmatpush1.bf16.msra.mxu0 %v1265
    %1879 = vmatprep.subr.bf16.mxu0 %v1264
    %1880 = vmatpush1.bf16.msra.mxu0 %v1263
    %1881 = vmatprep.subr.bf16.mxu0 0
    %1882 = vmatpush2.bf16.msra.mxu0 0
    %1883 = vmatprep.subr.bf16.mxu0 0
    %1884 = vmatpush2.bf16.msra.mxu0 0
    %1885 = vmatprep.subr.bf16.mxu0 0
    %1886 = vmatpush2.bf16.msra.mxu0 0
    %1887 = vmatprep.subr.bf16.mxu0 0
    %1888 = vmatpush2.bf16.msra.mxu0 0
    %1889 = vmatprep.subr.bf16.mxu0 0
    %1890 = vmatpush2.bf16.msra.mxu0 0
    %1891 = vmatprep.subr.bf16.mxu0 0
    %1892 = vmatpush2.bf16.msra.mxu0 0
    %1893 = vmatprep.subr.bf16.mxu0 0
    %1894 = vmatpush2.bf16.msra.mxu0 0
    %1895 = vmatprep.subr.bf16.mxu0 0
    %1896 = vmatpush2.bf16.msra.mxu0 0
    %1897 = vmatprep.mubr.bf16.mxu0 0
    %1898 = vmatmul.mubr.bf16.gmra.mxu0 %v1863
    %v1899 = vpop.f32.mrf.mxu0
    %v1900 = vadd.f32 0.0, %v1899
    %v1901 = vpop.f32.mrf.mxu0
    %v1902 = vadd.f32 0.0, %v1901
    %v1903 = vpop.f32.mrf.mxu0
    %v1904 = vpop.f32.mrf.mxu0
    %1905 = vdwg.mxu0
    %v1907 = vrot.slane %v1900, 2
    %v1909 = vadd.f32 %v1212, %v1907
    %v1910 = vxor.u32 %v1909, 2147483648
    %v1911 = vmul.f32 %v1910, 1.442695
    %v1912 = vpow.pop %v1911
    %v1913 = vadd.f32 %v1912, 1.0
    %v1914 = vrcp.pop %v1913
    %v1915 = vmul.f32 1.0, %v1914
    %v1916 = vadd.f32 %v1902, %v1227
    %v1918 = vrot.slane %v1916, 2
    %v1920 = vmul.f32 %v1915, %v1918
    %v1921 = vadd.f32 %v1213, %v1920
    %v1922 = vtanh.pop %v1921
    %v1923 = vsub.f32 1.0, %v1915
    %1925 = vrot.lane.b32.xlu0 %v1922, 64
    %v1926 = vpop.permute.xlu0 %1925
    %v1928 = vmul.f32 %v1923, %v1926
    %v1929 = vrot.slane %v1847, 6
    %v1931 = vmul.f32 %v1915, %v1929
    %v1932 = vadd.f32 %v1928, %v1931
    %1934 = vrot.lane.b32.xlu0 %v1932, 64
    %v1935 = vpop.permute.xlu0 %1934
    %1937 = vst.msk [vmem:[%s969 - $0x6] sm:$0xc0] %vm628, %v1935
    %1938 = vrot.lane.b32.xlu0 %v1932, 32
    %v1939 = vpop.permute.xlu0 %1938
    %1941 = vst.msk [vmem:[%s974 - $0x6] sm:$0xc0] %vm628, %v1939
    %s1942 = scalar_lea.vmem [#allocation10], 4
    %1943 = vst.msk [vmem:[%s1942 - $0x6] sm:$0xc0] %vm628, %v1935
    %s1944 = scalar_lea.vmem [#allocation10], 6
    %1945 = vst.msk [vmem:[%s1944 - $0x6] sm:$0xc0] %vm628, %v1939
    %v1946 = vld [vmem:[%s969] sm:$0x3]
    %v1947 = vld [vmem:[%s370] sm:$0x3]
    %1949 = vrot.lane.b32.xlu0 %v1947, 32
    %v1950 = vpop.permute.xlu0 %1949
    %v1952 = vsel %vm250, %v1946, %v1950
    %v1953 = vpack.c.bf16 %v1952, %v1952
    %v1954 = vld [vmem:[%s10] sm:$0xf]
    %v1955 = vld [vmem:[%s10 + $0x4] sm:$0xf]
    %v1956 = vld [vmem:[%s10 + $0x8] sm:$0xf]
    %v1957 = vld [vmem:[%s10 + $0xc] sm:$0xf]
    %v1958 = vld [vmem:[%s10 + $0x10] sm:$0xf]
    %v1959 = vld [vmem:[%s10 + $0x14] sm:$0xf]
    %v1960 = vld [vmem:[%s10 + $0x18] sm:$0xf]
    %v1961 = vld [vmem:[%s10 + $0x1c] sm:$0xf]
    %v1962 = vld [vmem:[%s11] sm:$0x1]
    %v1964 = vlaneseq
    %v1965 = vshrl.u32 %v1964, 7
    %v1966 = vsub.s32 0, %v1965
    %v1967 = vrot.slane %v1962, %v1966
    %v1977 = vunpack.c.l.b16 %v1954
    %v1978 = vunpack.c.l.b16 %v1955
    %v1979 = vunpack.c.l.b16 %v1956
    %v1980 = vunpack.c.l.b16 %v1957
    %v1981 = vunpack.c.l.b16 %v1958
    %v1982 = vunpack.c.l.b16 %v1959
    %v1983 = vunpack.c.l.b16 %v1960
    %v1984 = vunpack.c.l.b16 %v1961
    %v1985 = vpack.c.b16 %v1978, %v1977
    %v1986 = vpack.c.b16 %v1980, %v1979
    %v1987 = vpack.c.b16 %v1982, %v1981
    %v1988 = vpack.c.b16 %v1984, %v1983
    %v1994 = vsel %vm293, %v1953, 0
    %1996 = vmatprep.subr.bf16.mxu0 0
    %1997 = vmatpush1.bf16.msra.mxu0 0
    %1998 = vmatprep.subr.bf16.mxu0 0
    %1999 = vmatpush1.bf16.msra.mxu0 0
    %2000 = vmatprep.subr.bf16.mxu0 0
    %2001 = vmatpush1.bf16.msra.mxu0 0
    %2002 = vmatprep.subr.bf16.mxu0 0
    %2003 = vmatpush1.bf16.msra.mxu0 0
    %2004 = vmatprep.subr.bf16.mxu0 0
    %2005 = vmatpush1.bf16.msra.mxu0 %v1988
    %2006 = vmatprep.subr.bf16.mxu0 0
    %2007 = vmatpush1.bf16.msra.mxu0 %v1987
    %2008 = vmatprep.subr.bf16.mxu0 0
    %2009 = vmatpush1.bf16.msra.mxu0 %v1986
    %2010 = vmatprep.subr.bf16.mxu0 0
    %2011 = vmatpush1.bf16.msra.mxu0 %v1985
    %2012 = vmatprep.subr.bf16.mxu0 0
    %2013 = vmatpush2.bf16.msra.mxu0 0
    %2014 = vmatprep.subr.bf16.mxu0 0
    %2015 = vmatpush2.bf16.msra.mxu0 0
    %2016 = vmatprep.subr.bf16.mxu0 0
    %2017 = vmatpush2.bf16.msra.mxu0 0
    %2018 = vmatprep.subr.bf16.mxu0 0
    %2019 = vmatpush2.bf16.msra.mxu0 0
    %2020 = vmatprep.subr.bf16.mxu0 0
    %2021 = vmatpush2.bf16.msra.mxu0 0
    %2022 = vmatprep.subr.bf16.mxu0 0
    %2023 = vmatpush2.bf16.msra.mxu0 0
    %2024 = vmatprep.subr.bf16.mxu0 0
    %2025 = vmatpush2.bf16.msra.mxu0 0
    %2026 = vmatprep.subr.bf16.mxu0 0
    %2027 = vmatpush2.bf16.msra.mxu0 0
    %2028 = vmatprep.mubr.bf16.mxu0 0
    %2029 = vmatmul.mubr.bf16.gmra.mxu0 %v1994
    %v2030 = vpop.f32.mrf.mxu0
    %v2031 = vadd.f32 %v1967, %v2030
    %v2032 = vpop.f32.mrf.mxu0
    %v2033 = vpop.f32.mrf.mxu0
    %v2034 = vpop.f32.mrf.mxu0
    %2035 = vdwg.mxu0
    %vm2036 = vcmp.gt.f32.partialorder %v2031, 0.0
    %v2037 = vmin.f32 %v2031, 0.0
    %v2038 = vmul.f32 %v2037, 1.442695
    %v2039 = vpow.pop %v2038
    %v2040 = vsub.f32 %v2039, 1.0
    %v2041 = vmul.f32 %v2040, 1.6732632
    %v2042 = vsel %vm2036, %v2031, %v2041
    %v2043 = vmul.f32 %v2042, 1.050701
    %v2044 = vpack.c.bf16 %v2043, %v2043
    %v2045 = vld [vmem:[%s12] sm:$0xf]
    %v2046 = vld [vmem:[%s12 + $0x4] sm:$0xf]
    %v2047 = vld [vmem:[%s13] sm:$0x1]
    %v2049 = vlaneseq
    %v2050 = vshrl.u32 %v2049, 7
    %v2051 = vsub.s32 0, %v2050
    %v2052 = vrot.slane %v2047, %v2051
    %v2056 = vunpack.c.l.b16 %v2045
    %v2057 = vunpack.c.l.b16 %v2046
    %v2058 = vpack.c.b16 %v2057, %v2056
    %v2061 = vsel %vm153, %v2044, 0
    %2063 = vmatprep.subr.bf16.mxu0 0
    %2064 = vmatpush1.bf16.msra.mxu0 0
    %2065 = vmatprep.subr.bf16.mxu0 0
    %2066 = vmatpush1.bf16.msra.mxu0 0
    %2067 = vmatprep.subr.bf16.mxu0 0
    %2068 = vmatpush1.bf16.msra.mxu0 0
    %2069 = vmatprep.subr.bf16.mxu0 0
    %2070 = vmatpush1.bf16.msra.mxu0 0
    %2071 = vmatprep.subr.bf16.mxu0 0
    %2072 = vmatpush1.bf16.msra.mxu0 0
    %2073 = vmatprep.subr.bf16.mxu0 0
    %2074 = vmatpush1.bf16.msra.mxu0 0
    %2075 = vmatprep.subr.bf16.mxu0 0
    %2076 = vmatpush1.bf16.msra.mxu0 0
    %2077 = vmatprep.subr.bf16.mxu0 0
    %2078 = vmatpush1.bf16.msra.mxu0 %v2058
    %2079 = vmatprep.subr.bf16.mxu0 0
    %2080 = vmatpush2.bf16.msra.mxu0 0
    %2081 = vmatprep.subr.bf16.mxu0 0
    %2082 = vmatpush2.bf16.msra.mxu0 0
    %2083 = vmatprep.subr.bf16.mxu0 0
    %2084 = vmatpush2.bf16.msra.mxu0 0
    %2085 = vmatprep.subr.bf16.mxu0 0
    %2086 = vmatpush2.bf16.msra.mxu0 0
    %2087 = vmatprep.subr.bf16.mxu0 0
    %2088 = vmatpush2.bf16.msra.mxu0 0
    %2089 = vmatprep.subr.bf16.mxu0 0
    %2090 = vmatpush2.bf16.msra.mxu0 0
    %2091 = vmatprep.subr.bf16.mxu0 0
    %2092 = vmatpush2.bf16.msra.mxu0 0
    %2093 = vmatprep.subr.bf16.mxu0 0
    %2094 = vmatpush2.bf16.msra.mxu0 0
    %2095 = vmatprep.mubr.bf16.mxu0 0
    %2096 = vmatmul.mubr.bf16.gmra.mxu0 %v2061
    %v2097 = vpop.f32.mrf.mxu0
    %v2098 = vadd.f32 %v2052, %v2097
    %v2099 = vpop.f32.mrf.mxu0
    %v2100 = vpop.f32.mrf.mxu0
    %v2101 = vpop.f32.mrf.mxu0
    %2102 = vdwg.mxu0
    %v2103 = vmax.f32 %v2098, 0.0
    %vm2104 = vcmask 189440
    %2105 = vst.msk [vmem:[#allocation9] sm:$0x3] %vm2104, %v2103
    // Predicated region
    $region70: #{tpu_custom_call.1} parent=1 // pred_check
      _
    $region71: #{tpu_custom_call.1} parent=1 // pred_check_branch
      %2107 = sbr.rel (0) target = $region73
    $region72: #{tpu_custom_call.1} parent=1 // pred_region
      %s2109 = ssub.s32 32, 32
      %2110 = vsyncadd [#allocation5], %s2109
      %s2112 = sshll.u32 [#allocation9], 4
      %s2113 = int_to_ptr.vmem [resolvable:$true] %s2112
      %2115 = dma.vmem_to_hbm [thread:$0]  %s2113, 32, %s14, [#allocation5]
    $region73: #{tpu_custom_call.1} parent=1 // pred_fallthru
      _
    // Predicated region
    $region74: #{tpu_custom_call.1} parent=1 // pred_check
      _
    $region75: #{tpu_custom_call.1} parent=1 // pred_check_branch
      %2117 = sbr.rel (0) target = $region77
    $region76: #{tpu_custom_call.1} parent=1 // pred_region
      %s2119 = ssub.s32 128, 128
      %2120 = vsyncadd [#allocation11], %s2119
      %s2121 = sshll.u32 [#allocation10], 4
      %s2122 = int_to_ptr.vmem [resolvable:$true] %s2121
      %2127 = dma.vmem_to_hbm [thread:$0]  %s2122, 128, %s15, [#allocation11], 32, 32, 2
    $region77: #{tpu_custom_call.1} parent=1 // pred_fallthru
      _
    // Predicated region
    $region78: #{tpu_custom_call.1} parent=1 // pred_check
      _
    $region79: #{tpu_custom_call.1} parent=1 // pred_check_branch
      %2129 = sbr.rel (0) target = $region81
    $region80: #{tpu_custom_call.1} parent=1 // pred_region
      %2130 = dma.done [#allocation5], 32
    $region81: #{tpu_custom_call.1} parent=1 // pred_fallthru
      _
    // Predicated region
    $region82: #{tpu_custom_call.1} parent=1 // pred_check
      _
    $region83: #{tpu_custom_call.1} parent=1 // pred_check_branch
      %2132 = sbr.rel (0) target = $region85
    $region84: #{tpu_custom_call.1} parent=1 // pred_region
      %2133 = dma.done [#allocation11], 128
    $region85: #{tpu_custom_call.1} parent=1 // pred_fallthru
      _
    %2134 = vsyncpa [#allocation4], 1
    %2135 = vsyncpa [#allocation7], 1
    %2136 = vsyncpa [#allocation5], 1
    %2137 = vsyncpa [#allocation11], 1

</llo_original>
